<compile_context>
chip_gen: v7x
topology: tpu7x:2x2x1
jax: 0.10.0
libtpu: 0.0.40
codegen_flags: <defaults>
</compile_context>

<pallas_src>
import functools

import jax
import jax.numpy as jnp
from jax import lax
from jax.experimental import pallas as pl
from jax.experimental.pallas import tpu as pltpu

# ----------------------------- module config --------------------------------
IMG_SIZE = 16          # small spatial size for the demo (module default is 64)
TEXSIZE = 2            # cuboid.texsize (max(texsize, 2))
QUAD_CHANNEL = 3       # cuboid.n_channel
NEAR_PLANE = 0.0
FAR_PLANE = 100.0
SIGMA = 0.01
GAMMA = 0.1

SUB = 8                # sublane sub-tile: 8 batch rows per inner iteration
TARGET_BLOCK_N = 64    # batch rows per grid step (amortize pipeline overhead)
TARGET_HW_CHUNK = 512  # pixel-lane chunk (bounds vreg live set at img_size=64)

# cuboid_edge from __init__: in-plane scale dims of the 6 faces
CUBOID_EDGE = jnp.array([[0, 1], [0, 1], [0, 2], [0, 2], [1, 2], [1, 2]],
                        dtype=jnp.int32)

# per-face geometry parameter layout (17 scalars per face, see wrapper)
GEOM_P = 17


# ------------------------------ Pallas kernel --------------------------------
def _render_kernel(par_ref, img_ref, *, img_size, texsize, n_channel,
                   near, far, sigma, gamma, block_n, hw_chunk):
  HW = img_size * img_size
  C = n_channel
  T = texsize
  CH = hw_chunk
  n_sub = block_n // SUB
  n_chunk = HW // hw_chunk

  fx = fy = float(img_size)
  cx = cy = float(img_size // 2)
  inv_sigma = 1.0 / sigma
  inv_gamma = 1.0 / gamma
  inv_range = 1.0 / (far - near)
  pow2 = (img_size & (img_size - 1)) == 0
  shift = img_size.bit_length() - 1

  def tile(row, cbase):
    # pixel-center rays computed in-kernel from the flattened lane index
    lane = lax.broadcasted_iota(jnp.int32, (SUB, CH), 1) + cbase
    if pow2:
      ypix = (lane >> shift).astype(jnp.float32)
      xpix = (lane & (img_size - 1)).astype(jnp.float32)
    else:
      lane_f = lane.astype(jnp.float32)
      ypix = jnp.floor((lane_f + 0.5) * (1.0 / img_size))
      xpix = lane_f - ypix * img_size
    dx = (xpix + (0.5 - cx)) * (1.0 / fx)
    dy = (ypix + (0.5 - cy)) * (1.0 / fy)

    def gp(off):
      # per-(n, face) scalar as a (SUB, 1) column -> lane-broadcast on use
      return par_ref[pl.ds(row, SUB), off:off + 1]

    # background aggregation weight = 1 (zbar(far) = 0 -> exp(0) = 1)
    one_minus = jnp.ones((SUB, CH), jnp.float32)
    w_sum = jnp.ones((SUB, CH), jnp.float32)
    depth_acc = jnp.full((SUB, CH), far, jnp.float32)
    img_acc = [jnp.zeros((SUB, CH), jnp.float32) for _ in range(C)]

    for q in range(6):
      g = q * GEOM_P
      a0, a1, a2 = gp(g + 0), gp(g + 1), gp(g + 2)   # face normal (cam coords)
      numer = gp(g + 3)                              # n . t_face (precomputed)
      tx, ty, tz = gp(g + 4), gp(g + 5), gp(g + 6)   # face center (cam coords)
      r00, r10, r20 = gp(g + 7), gp(g + 8), gp(g + 9)    # local x axis
      r01, r11, r21 = gp(g + 10), gp(g + 11), gp(g + 12)  # local y axis
      half_sx, half_sy = gp(g + 13), gp(g + 14)
      inv_sx, inv_sy = gp(g + 15), gp(g + 16)

      # ray / face-plane intersection (ray dir = (dx, dy, 1))
      denom = a0 * dx + a1 * dy + a2
      denom_ok = jnp.abs(denom) > 1e-8
      denom_safe = jnp.where(denom_ok, denom, 1.0)
      t = numer / denom_safe          # exact reciprocal: feeds u/v/texel/depth
      valid = denom_ok & (t > near + 1e-6) & (t < far)

      # hit point relative to face center, projected onto the face axes
      rx = t * dx - tx
      ry = t * dy - ty
      rz = t - tz
      u = r00 * rx + r10 * ry + r20 * rz
      v = r01 * rx + r11 * ry + r21 * rz

      d_in = jnp.minimum(half_sx - jnp.abs(u), half_sy - jnp.abs(v))
      prob = jax.nn.sigmoid(d_in * inv_sigma)     # SoftRas soft coverage
      prob = jnp.where(valid, prob, 0.0)

      one_minus = one_minus * (1.0 - prob)
      zbar = jnp.clip((far - t) * inv_range, 0.0, 1.0)
      wq = prob * jnp.exp(zbar * inv_gamma)       # depth-softmax weight (0 if invalid)
      w_sum = w_sum + wq
      depth_acc = depth_acc + wq * t

      # nearest-texel lookup on the T x T face texture
      tu = jnp.clip(jnp.floor((u * inv_sx + 0.5) * T), 0.0, T - 1.0)
      tv = jnp.clip(jnp.floor((v * inv_sy + 0.5) * T), 0.0, T - 1.0)

      fbase = 6 * GEOM_P + q * T * T * C
      if T == 2:
        # arithmetic select (exact for tu,tv in {0,1}); coefficients are
        # narrow (SUB,1) ops, only 3 wide mul-adds per channel
        tutv = tu * tv
        for c in range(C):
          f00 = gp(fbase + 0 * C + c)
          f10 = gp(fbase + 1 * C + c)
          f01 = gp(fbase + 2 * C + c)
          f11 = gp(fbase + 3 * C + c)
          c1 = f10 - f00
          c2 = f01 - f00
          c3 = f11 - f10 - f01 + f00
          fpix = f00 + tu * c1 + tv * c2 + tutv * c3
          img_acc[c] = img_acc[c] + wq * fpix
      else:
        tidx = tv * T + tu
        for tt in range(T * T):
          w_tt = jnp.where(tidx == float(tt), wq, 0.0)
          for c in range(C):
            fval = gp(fbase + tt * C + c)
            img_acc[c] = img_acc[c] + w_tt * fval

    inv_w = pl.reciprocal(w_sum, approx=True)
    # contiguous, 128-aligned channel slabs -> unmasked stores
    for c in range(C):
      img_ref[pl.ds(row, SUB), pl.ds(c * HW + cbase, CH)] = img_acc[c] * inv_w
    img_ref[pl.ds(row, SUB), pl.ds(C * HW + cbase, CH)] = 1.0 - one_minus
    img_ref[pl.ds(row, SUB), pl.ds((C + 1) * HW + cbase, CH)] = depth_acc * inv_w

  def row_body(row):
    if n_chunk == 1:
      tile(row, 0)
    else:
      @pl.loop(0, n_chunk)
      def _(ci):
        tile(row, pl.multiple_of(ci * hw_chunk, 128))

  if n_sub == 1:
    row_body(0)
  else:
    @pl.loop(0, n_sub)
    def _(s):
      row_body(pl.multiple_of(s * SUB, SUB))


# ------------------------------- JAX glue ------------------------------------
def _get_cube_RT(scale):
  """Face poses of a unit-cuboid scaled by `scale`: (N,6,4,4).

  TODO(synk): original `get_cube_RT` source unavailable; faces are the 6 sides
  of an axis-aligned cuboid (translation = +/- scale/2 along the face normal,
  rotation aligning the local XY plane with the face plane, consistent with
  `cuboid_edge`).
  """
  N = scale.shape[0]
  eye = jnp.eye(3, dtype=jnp.float32)
  ex, ey, ez = eye[0], eye[1], eye[2]
  face_axes = [(ex, ey, ez), (ex, ey, ez),      # +/- z faces (span x,y)
               (ex, ez, ey), (ex, ez, ey),      # +/- y faces (span x,z)
               (ey, ez, ex), (ey, ez, ex)]      # +/- x faces (span y,z)
  signs = [1.0, -1.0, 1.0, -1.0, 1.0, -1.0]
  normal_dim = [2, 2, 1, 1, 0, 0]
  bot = jnp.tile(jnp.array([[[0., 0., 0., 1.]]], jnp.float32), (N, 1, 1))
  faces = []
  for q in range(6):
    ax_, ay_, nz_ = face_axes[q]
    Rq = jnp.stack([ax_, ay_, nz_], axis=1)                      # (3,3) columns
    tq = signs[q] * 0.5 * scale[:, normal_dim[q]]                # (N,)
    tcol = (tq[:, None] * nz_[None, :])[:, :, None]              # (N,3,1)
    top = jnp.concatenate([jnp.broadcast_to(Rq, (N, 3, 3)), tcol], axis=2)
    faces.append(jnp.concatenate([top, bot], axis=1))            # (N,4,4)
  return jnp.stack(faces, axis=1)                                # (N,6,4,4)


def _choose_tiling(N, img_size, texsize, n_channel):
  """block_n / padded batch / pixel-chunk selection (VMEM- and megacore-aware)."""
  HW = img_size * img_size
  c_out = n_channel + 2
  NP = 6 * GEOM_P + 6 * texsize * texsize * n_channel
  n8 = -(-N // SUB) * SUB
  block_n = min(TARGET_BLOCK_N, n8)
  # VMEM cap: double-buffered in+out blocks <= ~20 MiB (safe even on v7x 64 MiB)
  row_bytes = 4 * (c_out * HW + NP)
  max_rows = max(SUB, (20 * 1024 * 1024 // (2 * row_bytes)) // SUB * SUB)
  block_n = min(block_n, max_rows)
  # v7x megacore: keep the parallel grid axis >= 2 steps when the batch allows
  if n8 >= 2 * SUB and n8 // block_n < 2:
    block_n = max(SUB, (n8 // 2) // SUB * SUB)
  n_pad = -(-n8 // block_n) * block_n
  # pixel chunk: largest 128-multiple divisor of HW that is <= TARGET_HW_CHUNK
  hw_chunk = HW
  if HW > TARGET_HW_CHUNK:
    for cand in range(TARGET_HW_CHUNK, 127, -128):
      if HW % cand == 0:
        hw_chunk = cand
        break
  return block_n, n_pad, hw_chunk, NP, c_out


def renderer_quad_mesh_forward(x_3d, RT, *, img_size=IMG_SIZE, texsize=TEXSIZE,
                               n_channel=QUAD_CHANNEL, near=NEAR_PLANE,
                               far=FAR_PLANE, sigma=SIGMA, gamma=GAMMA):
  R = x_3d['R'].reshape(-1, 3, 3).astype(jnp.float32)
  t = x_3d['t'].reshape(-1, 3).astype(jnp.float32)
  scale = x_3d['scale'].reshape(-1, 3).astype(jnp.float32)
  feat = x_3d['feature'].reshape(-1, 6, texsize ** 2,
                                 n_channel).astype(jnp.float32)
  N = R.shape[0]
  assert RT.shape[0] == N

  const_row = jnp.tile(jnp.array([[[0., 0., 0., 1.]]], jnp.float32), (N, 1, 1))
  cuboid_RT = jnp.concatenate(
      [jnp.concatenate([R, t[:, :, None]], axis=2), const_row], axis=1)  # N,4,4
  RT4 = jnp.concatenate([RT.astype(jnp.float32), const_row], axis=1)     # N,4,4
  face_RT = _get_cube_RT(scale)                                          # N,6,4,4

  # pose composition in plain JAX (tiny matrices; keep it off the kernel)
  m_cub = jnp.einsum('nij,njk->nik', RT4, cuboid_RT)          # cuboid in camera
  cuboid_RTs_cam = m_cub[:, :3, :]                            # RT @ cuboid_RT
  center_depth = m_cub[:, 2, 3]                               # cuboid center z
  mq = jnp.einsum('nij,nqjk->nqik', m_cub, face_RT)           # (N,6,4,4)

  quad_scale = scale[:, CUBOID_EDGE]                          # (N,6,2)
  sx, sy = quad_scale[..., 0], quad_scale[..., 1]
  a0, a1, a2 = mq[:, :, 0, 2], mq[:, :, 1, 2], mq[:, :, 2, 2]
  tx, ty, tz = mq[:, :, 0, 3], mq[:, :, 1, 3], mq[:, :, 2, 3]
  numer = a0 * tx + a1 * ty + a2 * tz
  geom = jnp.stack(
      [a0, a1, a2, numer, tx, ty, tz,
       mq[:, :, 0, 0], mq[:, :, 1, 0], mq[:, :, 2, 0],
       mq[:, :, 0, 1], mq[:, :, 1, 1], mq[:, :, 2, 1],
       0.5 * sx, 0.5 * sy, 1.0 / sx, 1.0 / sy], axis=-1)      # (N,6,17)
  geom = geom.reshape(N, 6 * GEOM_P)

  # quad_feat = ones(6, T^2, C) * feature  (from the module __init__ buffer)
  quad_feat = jnp.ones((6, texsize ** 2, n_channel), jnp.float32) * feat
  feat_flat = quad_feat.reshape(N, 6 * texsize * texsize * n_channel)

  params = jnp.concatenate([geom, feat_flat], axis=1)         # (N, NP)

  block_n, n_pad, hw_chunk, NP, c_out = _choose_tiling(
      N, img_size, texsize, n_channel)
  assert params.shape[1] == NP

  # pad batch to the padded size (padded rows are all-zero -> inert)
  if n_pad != N:
    params = jnp.pad(params, ((0, n_pad - N), (0, 0)))

  HW = img_size * img_size
  kernel = functools.partial(
      _render_kernel, img_size=img_size, texsize=texsize, n_channel=n_channel,
      near=near, far=far, sigma=sigma, gamma=gamma, block_n=block_n,
      hw_chunk=hw_chunk)

  img_flat = pl.pallas_call(
      kernel,
      out_shape=jax.ShapeDtypeStruct((n_pad, c_out * HW), jnp.float32),
      grid=(n_pad // block_n,),
      in_specs=[pl.BlockSpec((block_n, NP), lambda i: (i, 0))],   # per-n params
      out_specs=pl.BlockSpec((block_n, c_out * HW), lambda i: (i, 0)),
      compiler_params=pltpu.CompilerParams(
          dimension_semantics=("parallel",),
          vmem_limit_bytes=48 * 1024 * 1024),
  )(params)

  images = img_flat[:N].reshape(N, c_out, img_size, img_size)
  # TODO(synk): exact "mean projected area" semantics of ProjectQaudMesh2Image
  # are unavailable; here area = soft pixel count of the cuboid silhouette.
  area = jnp.sum(images[:, n_channel], axis=(1, 2))
  return images, area, center_depth, cuboid_RTs_cam


# --------------------------------- demo --------------------------------------
if __name__ == "__main__":
  key = jax.random.PRNGKey(0)
  k1, k2, k3, k4 = jax.random.split(key, 4)
  N = 2

  # rotation about z (deterministic, proper rotations)
  theta = jax.random.uniform(k1, (N,), minval=-0.5, maxval=0.5)
  c, s = jnp.cos(theta), jnp.sin(theta)
  z = jnp.zeros_like(c)
  o = jnp.ones_like(c)
  R = jnp.stack([jnp.stack([c, -s, z], -1),
                 jnp.stack([s, c, z], -1),
                 jnp.stack([z, z, o], -1)], axis=1)              # (N,3,3)
  t = jax.random.uniform(k2, (N, 3), minval=-0.3, maxval=0.3)
  scale = 1.0 + 0.5 * jax.random.uniform(k3, (N, 3))
  feature = jax.random.uniform(k4, (N, 6, TEXSIZE ** 2, QUAD_CHANNEL))

  x_3d = {'R': R, 't': t, 'scale': scale, 'feature': feature}
  # camera: identity rotation, objects pushed 3 units in front (RT[2,3]=3)
  RT = jnp.tile(jnp.array([[1., 0., 0., 0.],
                           [0., 1., 0., 0.],
                           [0., 0., 1., 3.]], jnp.float32)[None], (N, 1, 1))

  images, area, center_depth, cuboid_RTs = renderer_quad_mesh_forward(x_3d, RT)
  jax.block_until_ready((images, area, center_depth, cuboid_RTs))

  assert images.shape == (N, QUAD_CHANNEL + 2, IMG_SIZE, IMG_SIZE)
  assert area.shape == (N,)
  assert center_depth.shape == (N,)
  assert cuboid_RTs.shape == (N, 3, 4)
  assert bool(jnp.all(jnp.isfinite(images)))
  print("KERNEL_OK")
</pallas_src>

<mosaic_0001>
module attributes {stable_mosaic.version = 11 : i64} {
  func.func @_render_kernel(%arg0: i32, %arg1: memref<8x174xf32, #tpu.memory_space<vmem>>, %arg2: memref<8x1280xf32, #tpu.memory_space<vmem>>) attributes {dimension_semantics = [#tpu.dimension_semantics<parallel>], iteration_bounds = array<i64: 1>, scalar_prefetch = 0 : i64, scratch_operands = 0 : i64, tpu.core_type = #tpu.core_type<tc>, window_params = [{transform_indices = @transform_0, window_bounds = array<i64: 8, 174>}, {transform_indices = @transform_1, window_bounds = array<i64: 8, 1280>}]} {
    %0 = tpu.iota {dimensions = array<i32: 1>} : vector<8x256xi32>
    %c0_i32 = arith.constant 0 : i32
    %1 = vector.broadcast %c0_i32 : i32 to vector<8x256xi32>
    %2 = arith.addi %0, %1 : vector<8x256xi32>
    %c4_i32 = arith.constant 4 : i32
    %3 = vector.broadcast %c4_i32 : i32 to vector<8x256xi32>
    %4 = arith.shrsi %2, %3 : vector<8x256xi32>
    %5 = arith.sitofp %4 : vector<8x256xi32> to vector<8x256xf32>
    %c15_i32 = arith.constant 15 : i32
    %6 = vector.broadcast %c15_i32 : i32 to vector<8x256xi32>
    %7 = arith.andi %2, %6 : vector<8x256xi32>
    %8 = arith.sitofp %7 : vector<8x256xi32> to vector<8x256xf32>
    %cst = arith.constant -7.500000e+00 : f32
    %9 = vector.broadcast %cst : f32 to vector<8x256xf32>
    %10 = arith.addf %8, %9 : vector<8x256xf32>
    %cst_0 = arith.constant 6.250000e-02 : f32
    %11 = vector.broadcast %cst_0 : f32 to vector<8x256xf32>
    %12 = arith.mulf %10, %11 : vector<8x256xf32>
    %cst_1 = arith.constant -7.500000e+00 : f32
    %13 = vector.broadcast %cst_1 : f32 to vector<8x256xf32>
    %14 = arith.addf %5, %13 : vector<8x256xf32>
    %cst_2 = arith.constant 6.250000e-02 : f32
    %15 = vector.broadcast %cst_2 : f32 to vector<8x256xf32>
    %16 = arith.mulf %14, %15 : vector<8x256xf32>
    %cst_3 = arith.constant 1.000000e+00 : f32
    %17 = vector.broadcast %cst_3 : f32 to vector<8x256xf32>
    %cst_4 = arith.constant 1.000000e+00 : f32
    %18 = vector.broadcast %cst_4 : f32 to vector<8x256xf32>
    %cst_5 = arith.constant 1.000000e+02 : f32
    %19 = vector.broadcast %cst_5 : f32 to vector<8x256xf32>
    %cst_6 = arith.constant 0.000000e+00 : f32
    %20 = vector.broadcast %cst_6 : f32 to vector<8x256xf32>
    %cst_7 = arith.constant 0.000000e+00 : f32
    %21 = vector.broadcast %cst_7 : f32 to vector<8x256xf32>
    %cst_8 = arith.constant 0.000000e+00 : f32
    %22 = vector.broadcast %cst_8 : f32 to vector<8x256xf32>
    %c0 = arith.constant 0 : index
    %c0_9 = arith.constant 0 : index
    %23 = vector.load %arg1[%c0, %c0_9] : memref<8x174xf32, #tpu.memory_space<vmem>>, vector<8x1xf32>
    %c0_10 = arith.constant 0 : index
    %c1 = arith.constant 1 : index
    %24 = vector.load %arg1[%c0_10, %c1] : memref<8x174xf32, #tpu.memory_space<vmem>>, vector<8x1xf32>
    %c0_11 = arith.constant 0 : index
    %c2 = arith.constant 2 : index
    %25 = vector.load %arg1[%c0_11, %c2] : memref<8x174xf32, #tpu.memory_space<vmem>>, vector<8x1xf32>
    %c0_12 = arith.constant 0 : index
    %c3 = arith.constant 3 : index
    %26 = vector.load %arg1[%c0_12, %c3] : memref<8x174xf32, #tpu.memory_space<vmem>>, vector<8x1xf32>
    %c0_13 = arith.constant 0 : index
    %c4 = arith.constant 4 : index
    %27 = vector.load %arg1[%c0_13, %c4] : memref<8x174xf32, #tpu.memory_space<vmem>>, vector<8x1xf32>
    %c0_14 = arith.constant 0 : index
    %c5 = arith.constant 5 : index
    %28 = vector.load %arg1[%c0_14, %c5] : memref<8x174xf32, #tpu.memory_space<vmem>>, vector<8x1xf32>
    %c0_15 = arith.constant 0 : index
    %c6 = arith.constant 6 : index
    %29 = vector.load %arg1[%c0_15, %c6] : memref<8x174xf32, #tpu.memory_space<vmem>>, vector<8x1xf32>
    %c0_16 = arith.constant 0 : index
    %c7 = arith.constant 7 : index
    %30 = vector.load %arg1[%c0_16, %c7] : memref<8x174xf32, #tpu.memory_space<vmem>>, vector<8x1xf32>
    %c0_17 = arith.constant 0 : index
    %c8 = arith.constant 8 : index
    %31 = vector.load %arg1[%c0_17, %c8] : memref<8x174xf32, #tpu.memory_space<vmem>>, vector<8x1xf32>
    %c0_18 = arith.constant 0 : index
    %c9 = arith.constant 9 : index
    %32 = vector.load %arg1[%c0_18, %c9] : memref<8x174xf32, #tpu.memory_space<vmem>>, vector<8x1xf32>
    %c0_19 = arith.constant 0 : index
    %c10 = arith.constant 10 : index
    %33 = vector.load %arg1[%c0_19, %c10] : memref<8x174xf32, #tpu.memory_space<vmem>>, vector<8x1xf32>
    %c0_20 = arith.constant 0 : index
    %c11 = arith.constant 11 : index
    %34 = vector.load %arg1[%c0_20, %c11] : memref<8x174xf32, #tpu.memory_space<vmem>>, vector<8x1xf32>
    %c0_21 = arith.constant 0 : index
    %c12 = arith.constant 12 : index
    %35 = vector.load %arg1[%c0_21, %c12] : memref<8x174xf32, #tpu.memory_space<vmem>>, vector<8x1xf32>
    %c0_22 = arith.constant 0 : index
    %c13 = arith.constant 13 : index
    %36 = vector.load %arg1[%c0_22, %c13] : memref<8x174xf32, #tpu.memory_space<vmem>>, vector<8x1xf32>
    %c0_23 = arith.constant 0 : index
    %c14 = arith.constant 14 : index
    %37 = vector.load %arg1[%c0_23, %c14] : memref<8x174xf32, #tpu.memory_space<vmem>>, vector<8x1xf32>
    %c0_24 = arith.constant 0 : index
    %c15 = arith.constant 15 : index
    %38 = vector.load %arg1[%c0_24, %c15] : memref<8x174xf32, #tpu.memory_space<vmem>>, vector<8x1xf32>
    %c0_25 = arith.constant 0 : index
    %c16 = arith.constant 16 : index
    %39 = vector.load %arg1[%c0_25, %c16] : memref<8x174xf32, #tpu.memory_space<vmem>>, vector<8x1xf32>
    %40 = vector.broadcast %23 : vector<8x1xf32> to vector<8x256xf32>
    %41 = arith.mulf %40, %12 : vector<8x256xf32>
    %42 = vector.broadcast %24 : vector<8x1xf32> to vector<8x256xf32>
    %43 = arith.mulf %42, %16 : vector<8x256xf32>
    %44 = arith.addf %41, %43 : vector<8x256xf32>
    %45 = vector.broadcast %25 : vector<8x1xf32> to vector<8x256xf32>
    %46 = arith.addf %44, %45 : vector<8x256xf32>
    %47 = math.absf %46 : vector<8x256xf32>
    %cst_26 = arith.constant 9.99999993E-9 : f32
    %48 = vector.broadcast %cst_26 : f32 to vector<8x256xf32>
    %49 = arith.cmpf ogt, %47, %48 : vector<8x256xf32>
    %cst_27 = arith.constant 1.000000e+00 : f32
    %50 = vector.broadcast %cst_27 : f32 to vector<8x256xf32>
    %51 = arith.select %49, %46, %50 : vector<8x256xi1>, vector<8x256xf32>
    %52 = vector.broadcast %26 : vector<8x1xf32> to vector<8x256xf32>
    %53 = arith.divf %52, %51 : vector<8x256xf32>
    %cst_28 = arith.constant 9.99999997E-7 : f32
    %54 = vector.broadcast %cst_28 : f32 to vector<8x256xf32>
    %55 = arith.cmpf ogt, %53, %54 : vector<8x256xf32>
    %56 = arith.andi %49, %55 : vector<8x256xi1>
    %cst_29 = arith.constant 1.000000e+02 : f32
    %57 = vector.broadcast %cst_29 : f32 to vector<8x256xf32>
    %58 = arith.cmpf olt, %53, %57 : vector<8x256xf32>
    %59 = arith.andi %56, %58 : vector<8x256xi1>
    %60 = arith.mulf %53, %12 : vector<8x256xf32>
    %61 = vector.broadcast %27 : vector<8x1xf32> to vector<8x256xf32>
    %62 = arith.subf %60, %61 : vector<8x256xf32>
    %63 = arith.mulf %53, %16 : vector<8x256xf32>
    %64 = vector.broadcast %28 : vector<8x1xf32> to vector<8x256xf32>
    %65 = arith.subf %63, %64 : vector<8x256xf32>
    %66 = vector.broadcast %29 : vector<8x1xf32> to vector<8x256xf32>
    %67 = arith.subf %53, %66 : vector<8x256xf32>
    %68 = vector.broadcast %30 : vector<8x1xf32> to vector<8x256xf32>
    %69 = arith.mulf %68, %62 : vector<8x256xf32>
    %70 = vector.broadcast %31 : vector<8x1xf32> to vector<8x256xf32>
    %71 = arith.mulf %70, %65 : vector<8x256xf32>
    %72 = arith.addf %69, %71 : vector<8x256xf32>
    %73 = vector.broadcast %32 : vector<8x1xf32> to vector<8x256xf32>
    %74 = arith.mulf %73, %67 : vector<8x256xf32>
    %75 = arith.addf %72, %74 : vector<8x256xf32>
    %76 = vector.broadcast %33 : vector<8x1xf32> to vector<8x256xf32>
    %77 = arith.mulf %76, %62 : vector<8x256xf32>
    %78 = vector.broadcast %34 : vector<8x1xf32> to vector<8x256xf32>
    %79 = arith.mulf %78, %65 : vector<8x256xf32>
    %80 = arith.addf %77, %79 : vector<8x256xf32>
    %81 = vector.broadcast %35 : vector<8x1xf32> to vector<8x256xf32>
    %82 = arith.mulf %81, %67 : vector<8x256xf32>
    %83 = arith.addf %80, %82 : vector<8x256xf32>
    %84 = math.absf %75 : vector<8x256xf32>
    %85 = vector.broadcast %36 : vector<8x1xf32> to vector<8x256xf32>
    %86 = arith.subf %85, %84 : vector<8x256xf32>
    %87 = math.absf %83 : vector<8x256xf32>
    %88 = vector.broadcast %37 : vector<8x1xf32> to vector<8x256xf32>
    %89 = arith.subf %88, %87 : vector<8x256xf32>
    %90 = arith.minimumf %86, %89 : vector<8x256xf32>
    %cst_30 = arith.constant 1.000000e+02 : f32
    %91 = vector.broadcast %cst_30 : f32 to vector<8x256xf32>
    %92 = arith.mulf %90, %91 : vector<8x256xf32>
    %93 = arith.negf %92 : vector<8x256xf32>
    %94 = math.exp %93 : vector<8x256xf32>
    %cst_31 = arith.constant 1.000000e+00 : f32
    %95 = vector.broadcast %cst_31 : f32 to vector<8x256xf32>
    %96 = arith.addf %95, %94 : vector<8x256xf32>
    %97 = arith.divf %95, %96 : vector<8x256xf32>
    %cst_32 = arith.constant 0.000000e+00 : f32
    %98 = vector.broadcast %cst_32 : f32 to vector<8x256xf32>
    %99 = arith.select %59, %97, %98 : vector<8x256xi1>, vector<8x256xf32>
    %cst_33 = arith.constant 1.000000e+00 : f32
    %100 = vector.broadcast %cst_33 : f32 to vector<8x256xf32>
    %101 = arith.subf %100, %99 : vector<8x256xf32>
    %102 = arith.mulf %17, %101 : vector<8x256xf32>
    %cst_34 = arith.constant 1.000000e+02 : f32
    %103 = vector.broadcast %cst_34 : f32 to vector<8x256xf32>
    %104 = arith.subf %103, %53 : vector<8x256xf32>
    %cst_35 = arith.constant 0.00999999977 : f32
    %105 = vector.broadcast %cst_35 : f32 to vector<8x256xf32>
    %106 = arith.mulf %104, %105 : vector<8x256xf32>
    %cst_36 = arith.constant 0.000000e+00 : f32
    %cst_37 = arith.constant 1.000000e+00 : f32
    %107 = vector.broadcast %cst_36 : f32 to vector<8x256xf32>
    %108 = arith.maximumf %107, %106 : vector<8x256xf32>
    %109 = vector.broadcast %cst_37 : f32 to vector<8x256xf32>
    %110 = arith.minimumf %109, %108 : vector<8x256xf32>
    %cst_38 = arith.constant 1.000000e+01 : f32
    %111 = vector.broadcast %cst_38 : f32 to vector<8x256xf32>
    %112 = arith.mulf %110, %111 : vector<8x256xf32>
    %113 = math.exp %112 : vector<8x256xf32>
    %114 = arith.mulf %99, %113 : vector<8x256xf32>
    %115 = arith.addf %18, %114 : vector<8x256xf32>
    %116 = arith.mulf %114, %53 : vector<8x256xf32>
    %117 = arith.addf %19, %116 : vector<8x256xf32>
    %118 = vector.broadcast %38 : vector<8x1xf32> to vector<8x256xf32>
    %119 = arith.mulf %75, %118 : vector<8x256xf32>
    %cst_39 = arith.constant 5.000000e-01 : f32
    %120 = vector.broadcast %cst_39 : f32 to vector<8x256xf32>
    %121 = arith.addf %119, %120 : vector<8x256xf32>
    %cst_40 = arith.constant 2.000000e+00 : f32
    %122 = vector.broadcast %cst_40 : f32 to vector<8x256xf32>
    %123 = arith.mulf %121, %122 : vector<8x256xf32>
    %124 = math.floor %123 : vector<8x256xf32>
    %cst_41 = arith.constant 0.000000e+00 : f32
    %cst_42 = arith.constant 1.000000e+00 : f32
    %125 = vector.broadcast %cst_41 : f32 to vector<8x256xf32>
    %126 = arith.maximumf %125, %124 : vector<8x256xf32>
    %127 = vector.broadcast %cst_42 : f32 to vector<8x256xf32>
    %128 = arith.minimumf %127, %126 : vector<8x256xf32>
    %129 = vector.broadcast %39 : vector<8x1xf32> to vector<8x256xf32>
    %130 = arith.mulf %83, %129 : vector<8x256xf32>
    %cst_43 = arith.constant 5.000000e-01 : f32
    %131 = vector.broadcast %cst_43 : f32 to vector<8x256xf32>
    %132 = arith.addf %130, %131 : vector<8x256xf32>
    %cst_44 = arith.constant 2.000000e+00 : f32
    %133 = vector.broadcast %cst_44 : f32 to vector<8x256xf32>
    %134 = arith.mulf %132, %133 : vector<8x256xf32>
    %135 = math.floor %134 : vector<8x256xf32>
    %cst_45 = arith.constant 0.000000e+00 : f32
    %cst_46 = arith.constant 1.000000e+00 : f32
    %136 = vector.broadcast %cst_45 : f32 to vector<8x256xf32>
    %137 = arith.maximumf %136, %135 : vector<8x256xf32>
    %138 = vector.broadcast %cst_46 : f32 to vector<8x256xf32>
    %139 = arith.minimumf %138, %137 : vector<8x256xf32>
    %140 = arith.mulf %128, %139 : vector<8x256xf32>
    %c0_47 = arith.constant 0 : index
    %c102 = arith.constant 102 : index
    %141 = vector.load %arg1[%c0_47, %c102] : memref<8x174xf32, #tpu.memory_space<vmem>>, vector<8x1xf32>
    %c0_48 = arith.constant 0 : index
    %c105 = arith.constant 105 : index
    %142 = vector.load %arg1[%c0_48, %c105] : memref<8x174xf32, #tpu.memory_space<vmem>>, vector<8x1xf32>
    %c0_49 = arith.constant 0 : index
    %c108 = arith.constant 108 : index
    %143 = vector.load %arg1[%c0_49, %c108] : memref<8x174xf32, #tpu.memory_space<vmem>>, vector<8x1xf32>
    %c0_50 = arith.constant 0 : index
    %c111 = arith.constant 111 : index
    %144 = vector.load %arg1[%c0_50, %c111] : memref<8x174xf32, #tpu.memory_space<vmem>>, vector<8x1xf32>
    %145 = arith.subf %142, %141 : vector<8x1xf32>
    %146 = arith.subf %143, %141 : vector<8x1xf32>
    %147 = arith.subf %144, %142 : vector<8x1xf32>
    %148 = arith.subf %147, %143 : vector<8x1xf32>
    %149 = arith.addf %148, %141 : vector<8x1xf32>
    %150 = vector.broadcast %145 : vector<8x1xf32> to vector<8x256xf32>
    %151 = arith.mulf %128, %150 : vector<8x256xf32>
    %152 = vector.broadcast %141 : vector<8x1xf32> to vector<8x256xf32>
    %153 = arith.addf %152, %151 : vector<8x256xf32>
    %154 = vector.broadcast %146 : vector<8x1xf32> to vector<8x256xf32>
    %155 = arith.mulf %139, %154 : vector<8x256xf32>
    %156 = arith.addf %153, %155 : vector<8x256xf32>
    %157 = vector.broadcast %149 : vector<8x1xf32> to vector<8x256xf32>
    %158 = arith.mulf %140, %157 : vector<8x256xf32>
    %159 = arith.addf %156, %158 : vector<8x256xf32>
    %160 = arith.mulf %114, %159 : vector<8x256xf32>
    %161 = arith.addf %20, %160 : vector<8x256xf32>
    %c0_51 = arith.constant 0 : index
    %c103 = arith.constant 103 : index
    %162 = vector.load %arg1[%c0_51, %c103] : memref<8x174xf32, #tpu.memory_space<vmem>>, vector<8x1xf32>
    %c0_52 = arith.constant 0 : index
    %c106 = arith.constant 106 : index
    %163 = vector.load %arg1[%c0_52, %c106] : memref<8x174xf32, #tpu.memory_space<vmem>>, vector<8x1xf32>
    %c0_53 = arith.constant 0 : index
    %c109 = arith.constant 109 : index
    %164 = vector.load %arg1[%c0_53, %c109] : memref<8x174xf32, #tpu.memory_space<vmem>>, vector<8x1xf32>
    %c0_54 = arith.constant 0 : index
    %c112 = arith.constant 112 : index
    %165 = vector.load %arg1[%c0_54, %c112] : memref<8x174xf32, #tpu.memory_space<vmem>>, vector<8x1xf32>
    %166 = arith.subf %163, %162 : vector<8x1xf32>
    %167 = arith.subf %164, %162 : vector<8x1xf32>
    %168 = arith.subf %165, %163 : vector<8x1xf32>
    %169 = arith.subf %168, %164 : vector<8x1xf32>
    %170 = arith.addf %169, %162 : vector<8x1xf32>
    %171 = vector.broadcast %166 : vector<8x1xf32> to vector<8x256xf32>
    %172 = arith.mulf %128, %171 : vector<8x256xf32>
    %173 = vector.broadcast %162 : vector<8x1xf32> to vector<8x256xf32>
    %174 = arith.addf %173, %172 : vector<8x256xf32>
    %175 = vector.broadcast %167 : vector<8x1xf32> to vector<8x256xf32>
    %176 = arith.mulf %139, %175 : vector<8x256xf32>
    %177 = arith.addf %174, %176 : vector<8x256xf32>
    %178 = vector.broadcast %170 : vector<8x1xf32> to vector<8x256xf32>
    %179 = arith.mulf %140, %178 : vector<8x256xf32>
    %180 = arith.addf %177, %179 : vector<8x256xf32>
    %181 = arith.mulf %114, %180 : vector<8x256xf32>
    %182 = arith.addf %21, %181 : vector<8x256xf32>
    %c0_55 = arith.constant 0 : index
    %c104 = arith.constant 104 : index
    %183 = vector.load %arg1[%c0_55, %c104] : memref<8x174xf32, #tpu.memory_space<vmem>>, vector<8x1xf32>
    %c0_56 = arith.constant 0 : index
    %c107 = arith.constant 107 : index
    %184 = vector.load %arg1[%c0_56, %c107] : memref<8x174xf32, #tpu.memory_space<vmem>>, vector<8x1xf32>
    %c0_57 = arith.constant 0 : index
    %c110 = arith.constant 110 : index
    %185 = vector.load %arg1[%c0_57, %c110] : memref<8x174xf32, #tpu.memory_space<vmem>>, vector<8x1xf32>
    %c0_58 = arith.constant 0 : index
    %c113 = arith.constant 113 : index
    %186 = vector.load %arg1[%c0_58, %c113] : memref<8x174xf32, #tpu.memory_space<vmem>>, vector<8x1xf32>
    %187 = arith.subf %184, %183 : vector<8x1xf32>
    %188 = arith.subf %185, %183 : vector<8x1xf32>
    %189 = arith.subf %186, %184 : vector<8x1xf32>
    %190 = arith.subf %189, %185 : vector<8x1xf32>
    %191 = arith.addf %190, %183 : vector<8x1xf32>
    %192 = vector.broadcast %187 : vector<8x1xf32> to vector<8x256xf32>
    %193 = arith.mulf %128, %192 : vector<8x256xf32>
    %194 = vector.broadcast %183 : vector<8x1xf32> to vector<8x256xf32>
    %195 = arith.addf %194, %193 : vector<8x256xf32>
    %196 = vector.broadcast %188 : vector<8x1xf32> to vector<8x256xf32>
    %197 = arith.mulf %139, %196 : vector<8x256xf32>
    %198 = arith.addf %195, %197 : vector<8x256xf32>
    %199 = vector.broadcast %191 : vector<8x1xf32> to vector<8x256xf32>
    %200 = arith.mulf %140, %199 : vector<8x256xf32>
    %201 = arith.addf %198, %200 : vector<8x256xf32>
    %202 = arith.mulf %114, %201 : vector<8x256xf32>
    %203 = arith.addf %22, %202 : vector<8x256xf32>
    %c0_59 = arith.constant 0 : index
    %c17 = arith.constant 17 : index
    %204 = vector.load %arg1[%c0_59, %c17] : memref<8x174xf32, #tpu.memory_space<vmem>>, vector<8x1xf32>
    %c0_60 = arith.constant 0 : index
    %c18 = arith.constant 18 : index
    %205 = vector.load %arg1[%c0_60, %c18] : memref<8x174xf32, #tpu.memory_space<vmem>>, vector<8x1xf32>
    %c0_61 = arith.constant 0 : index
    %c19 = arith.constant 19 : index
    %206 = vector.load %arg1[%c0_61, %c19] : memref<8x174xf32, #tpu.memory_space<vmem>>, vector<8x1xf32>
    %c0_62 = arith.constant 0 : index
    %c20 = arith.constant 20 : index
    %207 = vector.load %arg1[%c0_62, %c20] : memref<8x174xf32, #tpu.memory_space<vmem>>, vector<8x1xf32>
    %c0_63 = arith.constant 0 : index
    %c21 = arith.constant 21 : index
    %208 = vector.load %arg1[%c0_63, %c21] : memref<8x174xf32, #tpu.memory_space<vmem>>, vector<8x1xf32>
    %c0_64 = arith.constant 0 : index
    %c22 = arith.constant 22 : index
    %209 = vector.load %arg1[%c0_64, %c22] : memref<8x174xf32, #tpu.memory_space<vmem>>, vector<8x1xf32>
    %c0_65 = arith.constant 0 : index
    %c23 = arith.constant 23 : index
    %210 = vector.load %arg1[%c0_65, %c23] : memref<8x174xf32, #tpu.memory_space<vmem>>, vector<8x1xf32>
    %c0_66 = arith.constant 0 : index
    %c24 = arith.constant 24 : index
    %211 = vector.load %arg1[%c0_66, %c24] : memref<8x174xf32, #tpu.memory_space<vmem>>, vector<8x1xf32>
    %c0_67 = arith.constant 0 : index
    %c25 = arith.constant 25 : index
    %212 = vector.load %arg1[%c0_67, %c25] : memref<8x174xf32, #tpu.memory_space<vmem>>, vector<8x1xf32>
    %c0_68 = arith.constant 0 : index
    %c26 = arith.constant 26 : index
    %213 = vector.load %arg1[%c0_68, %c26] : memref<8x174xf32, #tpu.memory_space<vmem>>, vector<8x1xf32>
    %c0_69 = arith.constant 0 : index
    %c27 = arith.constant 27 : index
    %214 = vector.load %arg1[%c0_69, %c27] : memref<8x174xf32, #tpu.memory_space<vmem>>, vector<8x1xf32>
    %c0_70 = arith.constant 0 : index
    %c28 = arith.constant 28 : index
    %215 = vector.load %arg1[%c0_70, %c28] : memref<8x174xf32, #tpu.memory_space<vmem>>, vector<8x1xf32>
    %c0_71 = arith.constant 0 : index
    %c29 = arith.constant 29 : index
    %216 = vector.load %arg1[%c0_71, %c29] : memref<8x174xf32, #tpu.memory_space<vmem>>, vector<8x1xf32>
    %c0_72 = arith.constant 0 : index
    %c30 = arith.constant 30 : index
    %217 = vector.load %arg1[%c0_72, %c30] : memref<8x174xf32, #tpu.memory_space<vmem>>, vector<8x1xf32>
    %c0_73 = arith.constant 0 : index
    %c31 = arith.constant 31 : index
    %218 = vector.load %arg1[%c0_73, %c31] : memref<8x174xf32, #tpu.memory_space<vmem>>, vector<8x1xf32>
    %c0_74 = arith.constant 0 : index
    %c32 = arith.constant 32 : index
    %219 = vector.load %arg1[%c0_74, %c32] : memref<8x174xf32, #tpu.memory_space<vmem>>, vector<8x1xf32>
    %c0_75 = arith.constant 0 : index
    %c33 = arith.constant 33 : index
    %220 = vector.load %arg1[%c0_75, %c33] : memref<8x174xf32, #tpu.memory_space<vmem>>, vector<8x1xf32>
    %221 = vector.broadcast %204 : vector<8x1xf32> to vector<8x256xf32>
    %222 = arith.mulf %221, %12 : vector<8x256xf32>
    %223 = vector.broadcast %205 : vector<8x1xf32> to vector<8x256xf32>
    %224 = arith.mulf %223, %16 : vector<8x256xf32>
    %225 = arith.addf %222, %224 : vector<8x256xf32>
    %226 = vector.broadcast %206 : vector<8x1xf32> to vector<8x256xf32>
    %227 = arith.addf %225, %226 : vector<8x256xf32>
    %228 = math.absf %227 : vector<8x256xf32>
    %cst_76 = arith.constant 9.99999993E-9 : f32
    %229 = vector.broadcast %cst_76 : f32 to vector<8x256xf32>
    %230 = arith.cmpf ogt, %228, %229 : vector<8x256xf32>
    %cst_77 = arith.constant 1.000000e+00 : f32
    %231 = vector.broadcast %cst_77 : f32 to vector<8x256xf32>
    %232 = arith.select %230, %227, %231 : vector<8x256xi1>, vector<8x256xf32>
    %233 = vector.broadcast %207 : vector<8x1xf32> to vector<8x256xf32>
    %234 = arith.divf %233, %232 : vector<8x256xf32>
    %cst_78 = arith.constant 9.99999997E-7 : f32
    %235 = vector.broadcast %cst_78 : f32 to vector<8x256xf32>
    %236 = arith.cmpf ogt, %234, %235 : vector<8x256xf32>
    %237 = arith.andi %230, %236 : vector<8x256xi1>
    %cst_79 = arith.constant 1.000000e+02 : f32
    %238 = vector.broadcast %cst_79 : f32 to vector<8x256xf32>
    %239 = arith.cmpf olt, %234, %238 : vector<8x256xf32>
    %240 = arith.andi %237, %239 : vector<8x256xi1>
    %241 = arith.mulf %234, %12 : vector<8x256xf32>
    %242 = vector.broadcast %208 : vector<8x1xf32> to vector<8x256xf32>
    %243 = arith.subf %241, %242 : vector<8x256xf32>
    %244 = arith.mulf %234, %16 : vector<8x256xf32>
    %245 = vector.broadcast %209 : vector<8x1xf32> to vector<8x256xf32>
    %246 = arith.subf %244, %245 : vector<8x256xf32>
    %247 = vector.broadcast %210 : vector<8x1xf32> to vector<8x256xf32>
    %248 = arith.subf %234, %247 : vector<8x256xf32>
    %249 = vector.broadcast %211 : vector<8x1xf32> to vector<8x256xf32>
    %250 = arith.mulf %249, %243 : vector<8x256xf32>
    %251 = vector.broadcast %212 : vector<8x1xf32> to vector<8x256xf32>
    %252 = arith.mulf %251, %246 : vector<8x256xf32>
    %253 = arith.addf %250, %252 : vector<8x256xf32>
    %254 = vector.broadcast %213 : vector<8x1xf32> to vector<8x256xf32>
    %255 = arith.mulf %254, %248 : vector<8x256xf32>
    %256 = arith.addf %253, %255 : vector<8x256xf32>
    %257 = vector.broadcast %214 : vector<8x1xf32> to vector<8x256xf32>
    %258 = arith.mulf %257, %243 : vector<8x256xf32>
    %259 = vector.broadcast %215 : vector<8x1xf32> to vector<8x256xf32>
    %260 = arith.mulf %259, %246 : vector<8x256xf32>
    %261 = arith.addf %258, %260 : vector<8x256xf32>
    %262 = vector.broadcast %216 : vector<8x1xf32> to vector<8x256xf32>
    %263 = arith.mulf %262, %248 : vector<8x256xf32>
    %264 = arith.addf %261, %263 : vector<8x256xf32>
    %265 = math.absf %256 : vector<8x256xf32>
    %266 = vector.broadcast %217 : vector<8x1xf32> to vector<8x256xf32>
    %267 = arith.subf %266, %265 : vector<8x256xf32>
    %268 = math.absf %264 : vector<8x256xf32>
    %269 = vector.broadcast %218 : vector<8x1xf32> to vector<8x256xf32>
    %270 = arith.subf %269, %268 : vector<8x256xf32>
    %271 = arith.minimumf %267, %270 : vector<8x256xf32>
    %cst_80 = arith.constant 1.000000e+02 : f32
    %272 = vector.broadcast %cst_80 : f32 to vector<8x256xf32>
    %273 = arith.mulf %271, %272 : vector<8x256xf32>
    %274 = arith.negf %273 : vector<8x256xf32>
    %275 = math.exp %274 : vector<8x256xf32>
    %cst_81 = arith.constant 1.000000e+00 : f32
    %276 = vector.broadcast %cst_81 : f32 to vector<8x256xf32>
    %277 = arith.addf %276, %275 : vector<8x256xf32>
    %278 = arith.divf %276, %277 : vector<8x256xf32>
    %cst_82 = arith.constant 0.000000e+00 : f32
    %279 = vector.broadcast %cst_82 : f32 to vector<8x256xf32>
    %280 = arith.select %240, %278, %279 : vector<8x256xi1>, vector<8x256xf32>
    %cst_83 = arith.constant 1.000000e+00 : f32
    %281 = vector.broadcast %cst_83 : f32 to vector<8x256xf32>
    %282 = arith.subf %281, %280 : vector<8x256xf32>
    %283 = arith.mulf %102, %282 : vector<8x256xf32>
    %cst_84 = arith.constant 1.000000e+02 : f32
    %284 = vector.broadcast %cst_84 : f32 to vector<8x256xf32>
    %285 = arith.subf %284, %234 : vector<8x256xf32>
    %cst_85 = arith.constant 0.00999999977 : f32
    %286 = vector.broadcast %cst_85 : f32 to vector<8x256xf32>
    %287 = arith.mulf %285, %286 : vector<8x256xf32>
    %cst_86 = arith.constant 0.000000e+00 : f32
    %cst_87 = arith.constant 1.000000e+00 : f32
    %288 = vector.broadcast %cst_86 : f32 to vector<8x256xf32>
    %289 = arith.maximumf %288, %287 : vector<8x256xf32>
    %290 = vector.broadcast %cst_87 : f32 to vector<8x256xf32>
    %291 = arith.minimumf %290, %289 : vector<8x256xf32>
    %cst_88 = arith.constant 1.000000e+01 : f32
    %292 = vector.broadcast %cst_88 : f32 to vector<8x256xf32>
    %293 = arith.mulf %291, %292 : vector<8x256xf32>
    %294 = math.exp %293 : vector<8x256xf32>
    %295 = arith.mulf %280, %294 : vector<8x256xf32>
    %296 = arith.addf %115, %295 : vector<8x256xf32>
    %297 = arith.mulf %295, %234 : vector<8x256xf32>
    %298 = arith.addf %117, %297 : vector<8x256xf32>
    %299 = vector.broadcast %219 : vector<8x1xf32> to vector<8x256xf32>
    %300 = arith.mulf %256, %299 : vector<8x256xf32>
    %cst_89 = arith.constant 5.000000e-01 : f32
    %301 = vector.broadcast %cst_89 : f32 to vector<8x256xf32>
    %302 = arith.addf %300, %301 : vector<8x256xf32>
    %cst_90 = arith.constant 2.000000e+00 : f32
    %303 = vector.broadcast %cst_90 : f32 to vector<8x256xf32>
    %304 = arith.mulf %302, %303 : vector<8x256xf32>
    %305 = math.floor %304 : vector<8x256xf32>
    %cst_91 = arith.constant 0.000000e+00 : f32
    %cst_92 = arith.constant 1.000000e+00 : f32
    %306 = vector.broadcast %cst_91 : f32 to vector<8x256xf32>
    %307 = arith.maximumf %306, %305 : vector<8x256xf32>
    %308 = vector.broadcast %cst_92 : f32 to vector<8x256xf32>
    %309 = arith.minimumf %308, %307 : vector<8x256xf32>
    %310 = vector.broadcast %220 : vector<8x1xf32> to vector<8x256xf32>
    %311 = arith.mulf %264, %310 : vector<8x256xf32>
    %cst_93 = arith.constant 5.000000e-01 : f32
    %312 = vector.broadcast %cst_93 : f32 to vector<8x256xf32>
    %313 = arith.addf %311, %312 : vector<8x256xf32>
    %cst_94 = arith.constant 2.000000e+00 : f32
    %314 = vector.broadcast %cst_94 : f32 to vector<8x256xf32>
    %315 = arith.mulf %313, %314 : vector<8x256xf32>
    %316 = math.floor %315 : vector<8x256xf32>
    %cst_95 = arith.constant 0.000000e+00 : f32
    %cst_96 = arith.constant 1.000000e+00 : f32
    %317 = vector.broadcast %cst_95 : f32 to vector<8x256xf32>
    %318 = arith.maximumf %317, %316 : vector<8x256xf32>
    %319 = vector.broadcast %cst_96 : f32 to vector<8x256xf32>
    %320 = arith.minimumf %319, %318 : vector<8x256xf32>
    %321 = arith.mulf %309, %320 : vector<8x256xf32>
    %c0_97 = arith.constant 0 : index
    %c114 = arith.constant 114 : index
    %322 = vector.load %arg1[%c0_97, %c114] : memref<8x174xf32, #tpu.memory_space<vmem>>, vector<8x1xf32>
    %c0_98 = arith.constant 0 : index
    %c117 = arith.constant 117 : index
    %323 = vector.load %arg1[%c0_98, %c117] : memref<8x174xf32, #tpu.memory_space<vmem>>, vector<8x1xf32>
    %c0_99 = arith.constant 0 : index
    %c120 = arith.constant 120 : index
    %324 = vector.load %arg1[%c0_99, %c120] : memref<8x174xf32, #tpu.memory_space<vmem>>, vector<8x1xf32>
    %c0_100 = arith.constant 0 : index
    %c123 = arith.constant 123 : index
    %325 = vector.load %arg1[%c0_100, %c123] : memref<8x174xf32, #tpu.memory_space<vmem>>, vector<8x1xf32>
    %326 = arith.subf %323, %322 : vector<8x1xf32>
    %327 = arith.subf %324, %322 : vector<8x1xf32>
    %328 = arith.subf %325, %323 : vector<8x1xf32>
    %329 = arith.subf %328, %324 : vector<8x1xf32>
    %330 = arith.addf %329, %322 : vector<8x1xf32>
    %331 = vector.broadcast %326 : vector<8x1xf32> to vector<8x256xf32>
    %332 = arith.mulf %309, %331 : vector<8x256xf32>
    %333 = vector.broadcast %322 : vector<8x1xf32> to vector<8x256xf32>
    %334 = arith.addf %333, %332 : vector<8x256xf32>
    %335 = vector.broadcast %327 : vector<8x1xf32> to vector<8x256xf32>
    %336 = arith.mulf %320, %335 : vector<8x256xf32>
    %337 = arith.addf %334, %336 : vector<8x256xf32>
    %338 = vector.broadcast %330 : vector<8x1xf32> to vector<8x256xf32>
    %339 = arith.mulf %321, %338 : vector<8x256xf32>
    %340 = arith.addf %337, %339 : vector<8x256xf32>
    %341 = arith.mulf %295, %340 : vector<8x256xf32>
    %342 = arith.addf %161, %341 : vector<8x256xf32>
    %c0_101 = arith.constant 0 : index
    %c115 = arith.constant 115 : index
    %343 = vector.load %arg1[%c0_101, %c115] : memref<8x174xf32, #tpu.memory_space<vmem>>, vector<8x1xf32>
    %c0_102 = arith.constant 0 : index
    %c118 = arith.constant 118 : index
    %344 = vector.load %arg1[%c0_102, %c118] : memref<8x174xf32, #tpu.memory_space<vmem>>, vector<8x1xf32>
    %c0_103 = arith.constant 0 : index
    %c121 = arith.constant 121 : index
    %345 = vector.load %arg1[%c0_103, %c121] : memref<8x174xf32, #tpu.memory_space<vmem>>, vector<8x1xf32>
    %c0_104 = arith.constant 0 : index
    %c124 = arith.constant 124 : index
    %346 = vector.load %arg1[%c0_104, %c124] : memref<8x174xf32, #tpu.memory_space<vmem>>, vector<8x1xf32>
    %347 = arith.subf %344, %343 : vector<8x1xf32>
    %348 = arith.subf %345, %343 : vector<8x1xf32>
    %349 = arith.subf %346, %344 : vector<8x1xf32>
    %350 = arith.subf %349, %345 : vector<8x1xf32>
    %351 = arith.addf %350, %343 : vector<8x1xf32>
    %352 = vector.broadcast %347 : vector<8x1xf32> to vector<8x256xf32>
    %353 = arith.mulf %309, %352 : vector<8x256xf32>
    %354 = vector.broadcast %343 : vector<8x1xf32> to vector<8x256xf32>
    %355 = arith.addf %354, %353 : vector<8x256xf32>
    %356 = vector.broadcast %348 : vector<8x1xf32> to vector<8x256xf32>
    %357 = arith.mulf %320, %356 : vector<8x256xf32>
    %358 = arith.addf %355, %357 : vector<8x256xf32>
    %359 = vector.broadcast %351 : vector<8x1xf32> to vector<8x256xf32>
    %360 = arith.mulf %321, %359 : vector<8x256xf32>
    %361 = arith.addf %358, %360 : vector<8x256xf32>
    %362 = arith.mulf %295, %361 : vector<8x256xf32>
    %363 = arith.addf %182, %362 : vector<8x256xf32>
    %c0_105 = arith.constant 0 : index
    %c116 = arith.constant 116 : index
    %364 = vector.load %arg1[%c0_105, %c116] : memref<8x174xf32, #tpu.memory_space<vmem>>, vector<8x1xf32>
    %c0_106 = arith.constant 0 : index
    %c119 = arith.constant 119 : index
    %365 = vector.load %arg1[%c0_106, %c119] : memref<8x174xf32, #tpu.memory_space<vmem>>, vector<8x1xf32>
    %c0_107 = arith.constant 0 : index
    %c122 = arith.constant 122 : index
    %366 = vector.load %arg1[%c0_107, %c122] : memref<8x174xf32, #tpu.memory_space<vmem>>, vector<8x1xf32>
    %c0_108 = arith.constant 0 : index
    %c125 = arith.constant 125 : index
    %367 = vector.load %arg1[%c0_108, %c125] : memref<8x174xf32, #tpu.memory_space<vmem>>, vector<8x1xf32>
    %368 = arith.subf %365, %364 : vector<8x1xf32>
    %369 = arith.subf %366, %364 : vector<8x1xf32>
    %370 = arith.subf %367, %365 : vector<8x1xf32>
    %371 = arith.subf %370, %366 : vector<8x1xf32>
    %372 = arith.addf %371, %364 : vector<8x1xf32>
    %373 = vector.broadcast %368 : vector<8x1xf32> to vector<8x256xf32>
    %374 = arith.mulf %309, %373 : vector<8x256xf32>
    %375 = vector.broadcast %364 : vector<8x1xf32> to vector<8x256xf32>
    %376 = arith.addf %375, %374 : vector<8x256xf32>
    %377 = vector.broadcast %369 : vector<8x1xf32> to vector<8x256xf32>
    %378 = arith.mulf %320, %377 : vector<8x256xf32>
    %379 = arith.addf %376, %378 : vector<8x256xf32>
    %380 = vector.broadcast %372 : vector<8x1xf32> to vector<8x256xf32>
    %381 = arith.mulf %321, %380 : vector<8x256xf32>
    %382 = arith.addf %379, %381 : vector<8x256xf32>
    %383 = arith.mulf %295, %382 : vector<8x256xf32>
    %384 = arith.addf %203, %383 : vector<8x256xf32>
    %c0_109 = arith.constant 0 : index
    %c34 = arith.constant 34 : index
    %385 = vector.load %arg1[%c0_109, %c34] : memref<8x174xf32, #tpu.memory_space<vmem>>, vector<8x1xf32>
    %c0_110 = arith.constant 0 : index
    %c35 = arith.constant 35 : index
    %386 = vector.load %arg1[%c0_110, %c35] : memref<8x174xf32, #tpu.memory_space<vmem>>, vector<8x1xf32>
    %c0_111 = arith.constant 0 : index
    %c36 = arith.constant 36 : index
    %387 = vector.load %arg1[%c0_111, %c36] : memref<8x174xf32, #tpu.memory_space<vmem>>, vector<8x1xf32>
    %c0_112 = arith.constant 0 : index
    %c37 = arith.constant 37 : index
    %388 = vector.load %arg1[%c0_112, %c37] : memref<8x174xf32, #tpu.memory_space<vmem>>, vector<8x1xf32>
    %c0_113 = arith.constant 0 : index
    %c38 = arith.constant 38 : index
    %389 = vector.load %arg1[%c0_113, %c38] : memref<8x174xf32, #tpu.memory_space<vmem>>, vector<8x1xf32>
    %c0_114 = arith.constant 0 : index
    %c39 = arith.constant 39 : index
    %390 = vector.load %arg1[%c0_114, %c39] : memref<8x174xf32, #tpu.memory_space<vmem>>, vector<8x1xf32>
    %c0_115 = arith.constant 0 : index
    %c40 = arith.constant 40 : index
    %391 = vector.load %arg1[%c0_115, %c40] : memref<8x174xf32, #tpu.memory_space<vmem>>, vector<8x1xf32>
    %c0_116 = arith.constant 0 : index
    %c41 = arith.constant 41 : index
    %392 = vector.load %arg1[%c0_116, %c41] : memref<8x174xf32, #tpu.memory_space<vmem>>, vector<8x1xf32>
    %c0_117 = arith.constant 0 : index
    %c42 = arith.constant 42 : index
    %393 = vector.load %arg1[%c0_117, %c42] : memref<8x174xf32, #tpu.memory_space<vmem>>, vector<8x1xf32>
    %c0_118 = arith.constant 0 : index
    %c43 = arith.constant 43 : index
    %394 = vector.load %arg1[%c0_118, %c43] : memref<8x174xf32, #tpu.memory_space<vmem>>, vector<8x1xf32>
    %c0_119 = arith.constant 0 : index
    %c44 = arith.constant 44 : index
    %395 = vector.load %arg1[%c0_119, %c44] : memref<8x174xf32, #tpu.memory_space<vmem>>, vector<8x1xf32>
    %c0_120 = arith.constant 0 : index
    %c45 = arith.constant 45 : index
    %396 = vector.load %arg1[%c0_120, %c45] : memref<8x174xf32, #tpu.memory_space<vmem>>, vector<8x1xf32>
    %c0_121 = arith.constant 0 : index
    %c46 = arith.constant 46 : index
    %397 = vector.load %arg1[%c0_121, %c46] : memref<8x174xf32, #tpu.memory_space<vmem>>, vector<8x1xf32>
    %c0_122 = arith.constant 0 : index
    %c47 = arith.constant 47 : index
    %398 = vector.load %arg1[%c0_122, %c47] : memref<8x174xf32, #tpu.memory_space<vmem>>, vector<8x1xf32>
    %c0_123 = arith.constant 0 : index
    %c48 = arith.constant 48 : index
    %399 = vector.load %arg1[%c0_123, %c48] : memref<8x174xf32, #tpu.memory_space<vmem>>, vector<8x1xf32>
    %c0_124 = arith.constant 0 : index
    %c49 = arith.constant 49 : index
    %400 = vector.load %arg1[%c0_124, %c49] : memref<8x174xf32, #tpu.memory_space<vmem>>, vector<8x1xf32>
    %c0_125 = arith.constant 0 : index
    %c50 = arith.constant 50 : index
    %401 = vector.load %arg1[%c0_125, %c50] : memref<8x174xf32, #tpu.memory_space<vmem>>, vector<8x1xf32>
    %402 = vector.broadcast %385 : vector<8x1xf32> to vector<8x256xf32>
    %403 = arith.mulf %402, %12 : vector<8x256xf32>
    %404 = vector.broadcast %386 : vector<8x1xf32> to vector<8x256xf32>
    %405 = arith.mulf %404, %16 : vector<8x256xf32>
    %406 = arith.addf %403, %405 : vector<8x256xf32>
    %407 = vector.broadcast %387 : vector<8x1xf32> to vector<8x256xf32>
    %408 = arith.addf %406, %407 : vector<8x256xf32>
    %409 = math.absf %408 : vector<8x256xf32>
    %cst_126 = arith.constant 9.99999993E-9 : f32
    %410 = vector.broadcast %cst_126 : f32 to vector<8x256xf32>
    %411 = arith.cmpf ogt, %409, %410 : vector<8x256xf32>
    %cst_127 = arith.constant 1.000000e+00 : f32
    %412 = vector.broadcast %cst_127 : f32 to vector<8x256xf32>
    %413 = arith.select %411, %408, %412 : vector<8x256xi1>, vector<8x256xf32>
    %414 = vector.broadcast %388 : vector<8x1xf32> to vector<8x256xf32>
    %415 = arith.divf %414, %413 : vector<8x256xf32>
    %cst_128 = arith.constant 9.99999997E-7 : f32
    %416 = vector.broadcast %cst_128 : f32 to vector<8x256xf32>
    %417 = arith.cmpf ogt, %415, %416 : vector<8x256xf32>
    %418 = arith.andi %411, %417 : vector<8x256xi1>
    %cst_129 = arith.constant 1.000000e+02 : f32
    %419 = vector.broadcast %cst_129 : f32 to vector<8x256xf32>
    %420 = arith.cmpf olt, %415, %419 : vector<8x256xf32>
    %421 = arith.andi %418, %420 : vector<8x256xi1>
    %422 = arith.mulf %415, %12 : vector<8x256xf32>
    %423 = vector.broadcast %389 : vector<8x1xf32> to vector<8x256xf32>
    %424 = arith.subf %422, %423 : vector<8x256xf32>
    %425 = arith.mulf %415, %16 : vector<8x256xf32>
    %426 = vector.broadcast %390 : vector<8x1xf32> to vector<8x256xf32>
    %427 = arith.subf %425, %426 : vector<8x256xf32>
    %428 = vector.broadcast %391 : vector<8x1xf32> to vector<8x256xf32>
    %429 = arith.subf %415, %428 : vector<8x256xf32>
    %430 = vector.broadcast %392 : vector<8x1xf32> to vector<8x256xf32>
    %431 = arith.mulf %430, %424 : vector<8x256xf32>
    %432 = vector.broadcast %393 : vector<8x1xf32> to vector<8x256xf32>
    %433 = arith.mulf %432, %427 : vector<8x256xf32>
    %434 = arith.addf %431, %433 : vector<8x256xf32>
    %435 = vector.broadcast %394 : vector<8x1xf32> to vector<8x256xf32>
    %436 = arith.mulf %435, %429 : vector<8x256xf32>
    %437 = arith.addf %434, %436 : vector<8x256xf32>
    %438 = vector.broadcast %395 : vector<8x1xf32> to vector<8x256xf32>
    %439 = arith.mulf %438, %424 : vector<8x256xf32>
    %440 = vector.broadcast %396 : vector<8x1xf32> to vector<8x256xf32>
    %441 = arith.mulf %440, %427 : vector<8x256xf32>
    %442 = arith.addf %439, %441 : vector<8x256xf32>
    %443 = vector.broadcast %397 : vector<8x1xf32> to vector<8x256xf32>
    %444 = arith.mulf %443, %429 : vector<8x256xf32>
    %445 = arith.addf %442, %444 : vector<8x256xf32>
    %446 = math.absf %437 : vector<8x256xf32>
    %447 = vector.broadcast %398 : vector<8x1xf32> to vector<8x256xf32>
    %448 = arith.subf %447, %446 : vector<8x256xf32>
    %449 = math.absf %445 : vector<8x256xf32>
    %450 = vector.broadcast %399 : vector<8x1xf32> to vector<8x256xf32>
    %451 = arith.subf %450, %449 : vector<8x256xf32>
    %452 = arith.minimumf %448, %451 : vector<8x256xf32>
    %cst_130 = arith.constant 1.000000e+02 : f32
    %453 = vector.broadcast %cst_130 : f32 to vector<8x256xf32>
    %454 = arith.mulf %452, %453 : vector<8x256xf32>
    %455 = arith.negf %454 : vector<8x256xf32>
    %456 = math.exp %455 : vector<8x256xf32>
    %cst_131 = arith.constant 1.000000e+00 : f32
    %457 = vector.broadcast %cst_131 : f32 to vector<8x256xf32>
    %458 = arith.addf %457, %456 : vector<8x256xf32>
    %459 = arith.divf %457, %458 : vector<8x256xf32>
    %cst_132 = arith.constant 0.000000e+00 : f32
    %460 = vector.broadcast %cst_132 : f32 to vector<8x256xf32>
    %461 = arith.select %421, %459, %460 : vector<8x256xi1>, vector<8x256xf32>
    %cst_133 = arith.constant 1.000000e+00 : f32
    %462 = vector.broadcast %cst_133 : f32 to vector<8x256xf32>
    %463 = arith.subf %462, %461 : vector<8x256xf32>
    %464 = arith.mulf %283, %463 : vector<8x256xf32>
    %cst_134 = arith.constant 1.000000e+02 : f32
    %465 = vector.broadcast %cst_134 : f32 to vector<8x256xf32>
    %466 = arith.subf %465, %415 : vector<8x256xf32>
    %cst_135 = arith.constant 0.00999999977 : f32
    %467 = vector.broadcast %cst_135 : f32 to vector<8x256xf32>
    %468 = arith.mulf %466, %467 : vector<8x256xf32>
    %cst_136 = arith.constant 0.000000e+00 : f32
    %cst_137 = arith.constant 1.000000e+00 : f32
    %469 = vector.broadcast %cst_136 : f32 to vector<8x256xf32>
    %470 = arith.maximumf %469, %468 : vector<8x256xf32>
    %471 = vector.broadcast %cst_137 : f32 to vector<8x256xf32>
    %472 = arith.minimumf %471, %470 : vector<8x256xf32>
    %cst_138 = arith.constant 1.000000e+01 : f32
    %473 = vector.broadcast %cst_138 : f32 to vector<8x256xf32>
    %474 = arith.mulf %472, %473 : vector<8x256xf32>
    %475 = math.exp %474 : vector<8x256xf32>
    %476 = arith.mulf %461, %475 : vector<8x256xf32>
    %477 = arith.addf %296, %476 : vector<8x256xf32>
    %478 = arith.mulf %476, %415 : vector<8x256xf32>
    %479 = arith.addf %298, %478 : vector<8x256xf32>
    %480 = vector.broadcast %400 : vector<8x1xf32> to vector<8x256xf32>
    %481 = arith.mulf %437, %480 : vector<8x256xf32>
    %cst_139 = arith.constant 5.000000e-01 : f32
    %482 = vector.broadcast %cst_139 : f32 to vector<8x256xf32>
    %483 = arith.addf %481, %482 : vector<8x256xf32>
    %cst_140 = arith.constant 2.000000e+00 : f32
    %484 = vector.broadcast %cst_140 : f32 to vector<8x256xf32>
    %485 = arith.mulf %483, %484 : vector<8x256xf32>
    %486 = math.floor %485 : vector<8x256xf32>
    %cst_141 = arith.constant 0.000000e+00 : f32
    %cst_142 = arith.constant 1.000000e+00 : f32
    %487 = vector.broadcast %cst_141 : f32 to vector<8x256xf32>
    %488 = arith.maximumf %487, %486 : vector<8x256xf32>
    %489 = vector.broadcast %cst_142 : f32 to vector<8x256xf32>
    %490 = arith.minimumf %489, %488 : vector<8x256xf32>
    %491 = vector.broadcast %401 : vector<8x1xf32> to vector<8x256xf32>
    %492 = arith.mulf %445, %491 : vector<8x256xf32>
    %cst_143 = arith.constant 5.000000e-01 : f32
    %493 = vector.broadcast %cst_143 : f32 to vector<8x256xf32>
    %494 = arith.addf %492, %493 : vector<8x256xf32>
    %cst_144 = arith.constant 2.000000e+00 : f32
    %495 = vector.broadcast %cst_144 : f32 to vector<8x256xf32>
    %496 = arith.mulf %494, %495 : vector<8x256xf32>
    %497 = math.floor %496 : vector<8x256xf32>
    %cst_145 = arith.constant 0.000000e+00 : f32
    %cst_146 = arith.constant 1.000000e+00 : f32
    %498 = vector.broadcast %cst_145 : f32 to vector<8x256xf32>
    %499 = arith.maximumf %498, %497 : vector<8x256xf32>
    %500 = vector.broadcast %cst_146 : f32 to vector<8x256xf32>
    %501 = arith.minimumf %500, %499 : vector<8x256xf32>
    %502 = arith.mulf %490, %501 : vector<8x256xf32>
    %c0_147 = arith.constant 0 : index
    %c126 = arith.constant 126 : index
    %503 = vector.load %arg1[%c0_147, %c126] : memref<8x174xf32, #tpu.memory_space<vmem>>, vector<8x1xf32>
    %c0_148 = arith.constant 0 : index
    %c129 = arith.constant 129 : index
    %504 = vector.load %arg1[%c0_148, %c129] : memref<8x174xf32, #tpu.memory_space<vmem>>, vector<8x1xf32>
    %c0_149 = arith.constant 0 : index
    %c132 = arith.constant 132 : index
    %505 = vector.load %arg1[%c0_149, %c132] : memref<8x174xf32, #tpu.memory_space<vmem>>, vector<8x1xf32>
    %c0_150 = arith.constant 0 : index
    %c135 = arith.constant 135 : index
    %506 = vector.load %arg1[%c0_150, %c135] : memref<8x174xf32, #tpu.memory_space<vmem>>, vector<8x1xf32>
    %507 = arith.subf %504, %503 : vector<8x1xf32>
    %508 = arith.subf %505, %503 : vector<8x1xf32>
    %509 = arith.subf %506, %504 : vector<8x1xf32>
    %510 = arith.subf %509, %505 : vector<8x1xf32>
    %511 = arith.addf %510, %503 : vector<8x1xf32>
    %512 = vector.broadcast %507 : vector<8x1xf32> to vector<8x256xf32>
    %513 = arith.mulf %490, %512 : vector<8x256xf32>
    %514 = vector.broadcast %503 : vector<8x1xf32> to vector<8x256xf32>
    %515 = arith.addf %514, %513 : vector<8x256xf32>
    %516 = vector.broadcast %508 : vector<8x1xf32> to vector<8x256xf32>
    %517 = arith.mulf %501, %516 : vector<8x256xf32>
    %518 = arith.addf %515, %517 : vector<8x256xf32>
    %519 = vector.broadcast %511 : vector<8x1xf32> to vector<8x256xf32>
    %520 = arith.mulf %502, %519 : vector<8x256xf32>
    %521 = arith.addf %518, %520 : vector<8x256xf32>
    %522 = arith.mulf %476, %521 : vector<8x256xf32>
    %523 = arith.addf %342, %522 : vector<8x256xf32>
    %c0_151 = arith.constant 0 : index
    %c127 = arith.constant 127 : index
    %524 = vector.load %arg1[%c0_151, %c127] : memref<8x174xf32, #tpu.memory_space<vmem>>, vector<8x1xf32>
    %c0_152 = arith.constant 0 : index
    %c130 = arith.constant 130 : index
    %525 = vector.load %arg1[%c0_152, %c130] : memref<8x174xf32, #tpu.memory_space<vmem>>, vector<8x1xf32>
    %c0_153 = arith.constant 0 : index
    %c133 = arith.constant 133 : index
    %526 = vector.load %arg1[%c0_153, %c133] : memref<8x174xf32, #tpu.memory_space<vmem>>, vector<8x1xf32>
    %c0_154 = arith.constant 0 : index
    %c136 = arith.constant 136 : index
    %527 = vector.load %arg1[%c0_154, %c136] : memref<8x174xf32, #tpu.memory_space<vmem>>, vector<8x1xf32>
    %528 = arith.subf %525, %524 : vector<8x1xf32>
    %529 = arith.subf %526, %524 : vector<8x1xf32>
    %530 = arith.subf %527, %525 : vector<8x1xf32>
    %531 = arith.subf %530, %526 : vector<8x1xf32>
    %532 = arith.addf %531, %524 : vector<8x1xf32>
    %533 = vector.broadcast %528 : vector<8x1xf32> to vector<8x256xf32>
    %534 = arith.mulf %490, %533 : vector<8x256xf32>
    %535 = vector.broadcast %524 : vector<8x1xf32> to vector<8x256xf32>
    %536 = arith.addf %535, %534 : vector<8x256xf32>
    %537 = vector.broadcast %529 : vector<8x1xf32> to vector<8x256xf32>
    %538 = arith.mulf %501, %537 : vector<8x256xf32>
    %539 = arith.addf %536, %538 : vector<8x256xf32>
    %540 = vector.broadcast %532 : vector<8x1xf32> to vector<8x256xf32>
    %541 = arith.mulf %502, %540 : vector<8x256xf32>
    %542 = arith.addf %539, %541 : vector<8x256xf32>
    %543 = arith.mulf %476, %542 : vector<8x256xf32>
    %544 = arith.addf %363, %543 : vector<8x256xf32>
    %c0_155 = arith.constant 0 : index
    %c128 = arith.constant 128 : index
    %545 = vector.load %arg1[%c0_155, %c128] : memref<8x174xf32, #tpu.memory_space<vmem>>, vector<8x1xf32>
    %c0_156 = arith.constant 0 : index
    %c131 = arith.constant 131 : index
    %546 = vector.load %arg1[%c0_156, %c131] : memref<8x174xf32, #tpu.memory_space<vmem>>, vector<8x1xf32>
    %c0_157 = arith.constant 0 : index
    %c134 = arith.constant 134 : index
    %547 = vector.load %arg1[%c0_157, %c134] : memref<8x174xf32, #tpu.memory_space<vmem>>, vector<8x1xf32>
    %c0_158 = arith.constant 0 : index
    %c137 = arith.constant 137 : index
    %548 = vector.load %arg1[%c0_158, %c137] : memref<8x174xf32, #tpu.memory_space<vmem>>, vector<8x1xf32>
    %549 = arith.subf %546, %545 : vector<8x1xf32>
    %550 = arith.subf %547, %545 : vector<8x1xf32>
    %551 = arith.subf %548, %546 : vector<8x1xf32>
    %552 = arith.subf %551, %547 : vector<8x1xf32>
    %553 = arith.addf %552, %545 : vector<8x1xf32>
    %554 = vector.broadcast %549 : vector<8x1xf32> to vector<8x256xf32>
    %555 = arith.mulf %490, %554 : vector<8x256xf32>
    %556 = vector.broadcast %545 : vector<8x1xf32> to vector<8x256xf32>
    %557 = arith.addf %556, %555 : vector<8x256xf32>
    %558 = vector.broadcast %550 : vector<8x1xf32> to vector<8x256xf32>
    %559 = arith.mulf %501, %558 : vector<8x256xf32>
    %560 = arith.addf %557, %559 : vector<8x256xf32>
    %561 = vector.broadcast %553 : vector<8x1xf32> to vector<8x256xf32>
    %562 = arith.mulf %502, %561 : vector<8x256xf32>
    %563 = arith.addf %560, %562 : vector<8x256xf32>
    %564 = arith.mulf %476, %563 : vector<8x256xf32>
    %565 = arith.addf %384, %564 : vector<8x256xf32>
    %c0_159 = arith.constant 0 : index
    %c51 = arith.constant 51 : index
    %566 = vector.load %arg1[%c0_159, %c51] : memref<8x174xf32, #tpu.memory_space<vmem>>, vector<8x1xf32>
    %c0_160 = arith.constant 0 : index
    %c52 = arith.constant 52 : index
    %567 = vector.load %arg1[%c0_160, %c52] : memref<8x174xf32, #tpu.memory_space<vmem>>, vector<8x1xf32>
    %c0_161 = arith.constant 0 : index
    %c53 = arith.constant 53 : index
    %568 = vector.load %arg1[%c0_161, %c53] : memref<8x174xf32, #tpu.memory_space<vmem>>, vector<8x1xf32>
    %c0_162 = arith.constant 0 : index
    %c54 = arith.constant 54 : index
    %569 = vector.load %arg1[%c0_162, %c54] : memref<8x174xf32, #tpu.memory_space<vmem>>, vector<8x1xf32>
    %c0_163 = arith.constant 0 : index
    %c55 = arith.constant 55 : index
    %570 = vector.load %arg1[%c0_163, %c55] : memref<8x174xf32, #tpu.memory_space<vmem>>, vector<8x1xf32>
    %c0_164 = arith.constant 0 : index
    %c56 = arith.constant 56 : index
    %571 = vector.load %arg1[%c0_164, %c56] : memref<8x174xf32, #tpu.memory_space<vmem>>, vector<8x1xf32>
    %c0_165 = arith.constant 0 : index
    %c57 = arith.constant 57 : index
    %572 = vector.load %arg1[%c0_165, %c57] : memref<8x174xf32, #tpu.memory_space<vmem>>, vector<8x1xf32>
    %c0_166 = arith.constant 0 : index
    %c58 = arith.constant 58 : index
    %573 = vector.load %arg1[%c0_166, %c58] : memref<8x174xf32, #tpu.memory_space<vmem>>, vector<8x1xf32>
    %c0_167 = arith.constant 0 : index
    %c59 = arith.constant 59 : index
    %574 = vector.load %arg1[%c0_167, %c59] : memref<8x174xf32, #tpu.memory_space<vmem>>, vector<8x1xf32>
    %c0_168 = arith.constant 0 : index
    %c60 = arith.constant 60 : index
    %575 = vector.load %arg1[%c0_168, %c60] : memref<8x174xf32, #tpu.memory_space<vmem>>, vector<8x1xf32>
    %c0_169 = arith.constant 0 : index
    %c61 = arith.constant 61 : index
    %576 = vector.load %arg1[%c0_169, %c61] : memref<8x174xf32, #tpu.memory_space<vmem>>, vector<8x1xf32>
    %c0_170 = arith.constant 0 : index
    %c62 = arith.constant 62 : index
    %577 = vector.load %arg1[%c0_170, %c62] : memref<8x174xf32, #tpu.memory_space<vmem>>, vector<8x1xf32>
    %c0_171 = arith.constant 0 : index
    %c63 = arith.constant 63 : index
    %578 = vector.load %arg1[%c0_171, %c63] : memref<8x174xf32, #tpu.memory_space<vmem>>, vector<8x1xf32>
    %c0_172 = arith.constant 0 : index
    %c64 = arith.constant 64 : index
    %579 = vector.load %arg1[%c0_172, %c64] : memref<8x174xf32, #tpu.memory_space<vmem>>, vector<8x1xf32>
    %c0_173 = arith.constant 0 : index
    %c65 = arith.constant 65 : index
    %580 = vector.load %arg1[%c0_173, %c65] : memref<8x174xf32, #tpu.memory_space<vmem>>, vector<8x1xf32>
    %c0_174 = arith.constant 0 : index
    %c66 = arith.constant 66 : index
    %581 = vector.load %arg1[%c0_174, %c66] : memref<8x174xf32, #tpu.memory_space<vmem>>, vector<8x1xf32>
    %c0_175 = arith.constant 0 : index
    %c67 = arith.constant 67 : index
    %582 = vector.load %arg1[%c0_175, %c67] : memref<8x174xf32, #tpu.memory_space<vmem>>, vector<8x1xf32>
    %583 = vector.broadcast %566 : vector<8x1xf32> to vector<8x256xf32>
    %584 = arith.mulf %583, %12 : vector<8x256xf32>
    %585 = vector.broadcast %567 : vector<8x1xf32> to vector<8x256xf32>
    %586 = arith.mulf %585, %16 : vector<8x256xf32>
    %587 = arith.addf %584, %586 : vector<8x256xf32>
    %588 = vector.broadcast %568 : vector<8x1xf32> to vector<8x256xf32>
    %589 = arith.addf %587, %588 : vector<8x256xf32>
    %590 = math.absf %589 : vector<8x256xf32>
    %cst_176 = arith.constant 9.99999993E-9 : f32
    %591 = vector.broadcast %cst_176 : f32 to vector<8x256xf32>
    %592 = arith.cmpf ogt, %590, %591 : vector<8x256xf32>
    %cst_177 = arith.constant 1.000000e+00 : f32
    %593 = vector.broadcast %cst_177 : f32 to vector<8x256xf32>
    %594 = arith.select %592, %589, %593 : vector<8x256xi1>, vector<8x256xf32>
    %595 = vector.broadcast %569 : vector<8x1xf32> to vector<8x256xf32>
    %596 = arith.divf %595, %594 : vector<8x256xf32>
    %cst_178 = arith.constant 9.99999997E-7 : f32
    %597 = vector.broadcast %cst_178 : f32 to vector<8x256xf32>
    %598 = arith.cmpf ogt, %596, %597 : vector<8x256xf32>
    %599 = arith.andi %592, %598 : vector<8x256xi1>
    %cst_179 = arith.constant 1.000000e+02 : f32
    %600 = vector.broadcast %cst_179 : f32 to vector<8x256xf32>
    %601 = arith.cmpf olt, %596, %600 : vector<8x256xf32>
    %602 = arith.andi %599, %601 : vector<8x256xi1>
    %603 = arith.mulf %596, %12 : vector<8x256xf32>
    %604 = vector.broadcast %570 : vector<8x1xf32> to vector<8x256xf32>
    %605 = arith.subf %603, %604 : vector<8x256xf32>
    %606 = arith.mulf %596, %16 : vector<8x256xf32>
    %607 = vector.broadcast %571 : vector<8x1xf32> to vector<8x256xf32>
    %608 = arith.subf %606, %607 : vector<8x256xf32>
    %609 = vector.broadcast %572 : vector<8x1xf32> to vector<8x256xf32>
    %610 = arith.subf %596, %609 : vector<8x256xf32>
    %611 = vector.broadcast %573 : vector<8x1xf32> to vector<8x256xf32>
    %612 = arith.mulf %611, %605 : vector<8x256xf32>
    %613 = vector.broadcast %574 : vector<8x1xf32> to vector<8x256xf32>
    %614 = arith.mulf %613, %608 : vector<8x256xf32>
    %615 = arith.addf %612, %614 : vector<8x256xf32>
    %616 = vector.broadcast %575 : vector<8x1xf32> to vector<8x256xf32>
    %617 = arith.mulf %616, %610 : vector<8x256xf32>
    %618 = arith.addf %615, %617 : vector<8x256xf32>
    %619 = vector.broadcast %576 : vector<8x1xf32> to vector<8x256xf32>
    %620 = arith.mulf %619, %605 : vector<8x256xf32>
    %621 = vector.broadcast %577 : vector<8x1xf32> to vector<8x256xf32>
    %622 = arith.mulf %621, %608 : vector<8x256xf32>
    %623 = arith.addf %620, %622 : vector<8x256xf32>
    %624 = vector.broadcast %578 : vector<8x1xf32> to vector<8x256xf32>
    %625 = arith.mulf %624, %610 : vector<8x256xf32>
    %626 = arith.addf %623, %625 : vector<8x256xf32>
    %627 = math.absf %618 : vector<8x256xf32>
    %628 = vector.broadcast %579 : vector<8x1xf32> to vector<8x256xf32>
    %629 = arith.subf %628, %627 : vector<8x256xf32>
    %630 = math.absf %626 : vector<8x256xf32>
    %631 = vector.broadcast %580 : vector<8x1xf32> to vector<8x256xf32>
    %632 = arith.subf %631, %630 : vector<8x256xf32>
    %633 = arith.minimumf %629, %632 : vector<8x256xf32>
    %cst_180 = arith.constant 1.000000e+02 : f32
    %634 = vector.broadcast %cst_180 : f32 to vector<8x256xf32>
    %635 = arith.mulf %633, %634 : vector<8x256xf32>
    %636 = arith.negf %635 : vector<8x256xf32>
    %637 = math.exp %636 : vector<8x256xf32>
    %cst_181 = arith.constant 1.000000e+00 : f32
    %638 = vector.broadcast %cst_181 : f32 to vector<8x256xf32>
    %639 = arith.addf %638, %637 : vector<8x256xf32>
    %640 = arith.divf %638, %639 : vector<8x256xf32>
    %cst_182 = arith.constant 0.000000e+00 : f32
    %641 = vector.broadcast %cst_182 : f32 to vector<8x256xf32>
    %642 = arith.select %602, %640, %641 : vector<8x256xi1>, vector<8x256xf32>
    %cst_183 = arith.constant 1.000000e+00 : f32
    %643 = vector.broadcast %cst_183 : f32 to vector<8x256xf32>
    %644 = arith.subf %643, %642 : vector<8x256xf32>
    %645 = arith.mulf %464, %644 : vector<8x256xf32>
    %cst_184 = arith.constant 1.000000e+02 : f32
    %646 = vector.broadcast %cst_184 : f32 to vector<8x256xf32>
    %647 = arith.subf %646, %596 : vector<8x256xf32>
    %cst_185 = arith.constant 0.00999999977 : f32
    %648 = vector.broadcast %cst_185 : f32 to vector<8x256xf32>
    %649 = arith.mulf %647, %648 : vector<8x256xf32>
    %cst_186 = arith.constant 0.000000e+00 : f32
    %cst_187 = arith.constant 1.000000e+00 : f32
    %650 = vector.broadcast %cst_186 : f32 to vector<8x256xf32>
    %651 = arith.maximumf %650, %649 : vector<8x256xf32>
    %652 = vector.broadcast %cst_187 : f32 to vector<8x256xf32>
    %653 = arith.minimumf %652, %651 : vector<8x256xf32>
    %cst_188 = arith.constant 1.000000e+01 : f32
    %654 = vector.broadcast %cst_188 : f32 to vector<8x256xf32>
    %655 = arith.mulf %653, %654 : vector<8x256xf32>
    %656 = math.exp %655 : vector<8x256xf32>
    %657 = arith.mulf %642, %656 : vector<8x256xf32>
    %658 = arith.addf %477, %657 : vector<8x256xf32>
    %659 = arith.mulf %657, %596 : vector<8x256xf32>
    %660 = arith.addf %479, %659 : vector<8x256xf32>
    %661 = vector.broadcast %581 : vector<8x1xf32> to vector<8x256xf32>
    %662 = arith.mulf %618, %661 : vector<8x256xf32>
    %cst_189 = arith.constant 5.000000e-01 : f32
    %663 = vector.broadcast %cst_189 : f32 to vector<8x256xf32>
    %664 = arith.addf %662, %663 : vector<8x256xf32>
    %cst_190 = arith.constant 2.000000e+00 : f32
    %665 = vector.broadcast %cst_190 : f32 to vector<8x256xf32>
    %666 = arith.mulf %664, %665 : vector<8x256xf32>
    %667 = math.floor %666 : vector<8x256xf32>
    %cst_191 = arith.constant 0.000000e+00 : f32
    %cst_192 = arith.constant 1.000000e+00 : f32
    %668 = vector.broadcast %cst_191 : f32 to vector<8x256xf32>
    %669 = arith.maximumf %668, %667 : vector<8x256xf32>
    %670 = vector.broadcast %cst_192 : f32 to vector<8x256xf32>
    %671 = arith.minimumf %670, %669 : vector<8x256xf32>
    %672 = vector.broadcast %582 : vector<8x1xf32> to vector<8x256xf32>
    %673 = arith.mulf %626, %672 : vector<8x256xf32>
    %cst_193 = arith.constant 5.000000e-01 : f32
    %674 = vector.broadcast %cst_193 : f32 to vector<8x256xf32>
    %675 = arith.addf %673, %674 : vector<8x256xf32>
    %cst_194 = arith.constant 2.000000e+00 : f32
    %676 = vector.broadcast %cst_194 : f32 to vector<8x256xf32>
    %677 = arith.mulf %675, %676 : vector<8x256xf32>
    %678 = math.floor %677 : vector<8x256xf32>
    %cst_195 = arith.constant 0.000000e+00 : f32
    %cst_196 = arith.constant 1.000000e+00 : f32
    %679 = vector.broadcast %cst_195 : f32 to vector<8x256xf32>
    %680 = arith.maximumf %679, %678 : vector<8x256xf32>
    %681 = vector.broadcast %cst_196 : f32 to vector<8x256xf32>
    %682 = arith.minimumf %681, %680 : vector<8x256xf32>
    %683 = arith.mulf %671, %682 : vector<8x256xf32>
    %c0_197 = arith.constant 0 : index
    %c138 = arith.constant 138 : index
    %684 = vector.load %arg1[%c0_197, %c138] : memref<8x174xf32, #tpu.memory_space<vmem>>, vector<8x1xf32>
    %c0_198 = arith.constant 0 : index
    %c141 = arith.constant 141 : index
    %685 = vector.load %arg1[%c0_198, %c141] : memref<8x174xf32, #tpu.memory_space<vmem>>, vector<8x1xf32>
    %c0_199 = arith.constant 0 : index
    %c144 = arith.constant 144 : index
    %686 = vector.load %arg1[%c0_199, %c144] : memref<8x174xf32, #tpu.memory_space<vmem>>, vector<8x1xf32>
    %c0_200 = arith.constant 0 : index
    %c147 = arith.constant 147 : index
    %687 = vector.load %arg1[%c0_200, %c147] : memref<8x174xf32, #tpu.memory_space<vmem>>, vector<8x1xf32>
    %688 = arith.subf %685, %684 : vector<8x1xf32>
    %689 = arith.subf %686, %684 : vector<8x1xf32>
    %690 = arith.subf %687, %685 : vector<8x1xf32>
    %691 = arith.subf %690, %686 : vector<8x1xf32>
    %692 = arith.addf %691, %684 : vector<8x1xf32>
    %693 = vector.broadcast %688 : vector<8x1xf32> to vector<8x256xf32>
    %694 = arith.mulf %671, %693 : vector<8x256xf32>
    %695 = vector.broadcast %684 : vector<8x1xf32> to vector<8x256xf32>
    %696 = arith.addf %695, %694 : vector<8x256xf32>
    %697 = vector.broadcast %689 : vector<8x1xf32> to vector<8x256xf32>
    %698 = arith.mulf %682, %697 : vector<8x256xf32>
    %699 = arith.addf %696, %698 : vector<8x256xf32>
    %700 = vector.broadcast %692 : vector<8x1xf32> to vector<8x256xf32>
    %701 = arith.mulf %683, %700 : vector<8x256xf32>
    %702 = arith.addf %699, %701 : vector<8x256xf32>
    %703 = arith.mulf %657, %702 : vector<8x256xf32>
    %704 = arith.addf %523, %703 : vector<8x256xf32>
    %c0_201 = arith.constant 0 : index
    %c139 = arith.constant 139 : index
    %705 = vector.load %arg1[%c0_201, %c139] : memref<8x174xf32, #tpu.memory_space<vmem>>, vector<8x1xf32>
    %c0_202 = arith.constant 0 : index
    %c142 = arith.constant 142 : index
    %706 = vector.load %arg1[%c0_202, %c142] : memref<8x174xf32, #tpu.memory_space<vmem>>, vector<8x1xf32>
    %c0_203 = arith.constant 0 : index
    %c145 = arith.constant 145 : index
    %707 = vector.load %arg1[%c0_203, %c145] : memref<8x174xf32, #tpu.memory_space<vmem>>, vector<8x1xf32>
    %c0_204 = arith.constant 0 : index
    %c148 = arith.constant 148 : index
    %708 = vector.load %arg1[%c0_204, %c148] : memref<8x174xf32, #tpu.memory_space<vmem>>, vector<8x1xf32>
    %709 = arith.subf %706, %705 : vector<8x1xf32>
    %710 = arith.subf %707, %705 : vector<8x1xf32>
    %711 = arith.subf %708, %706 : vector<8x1xf32>
    %712 = arith.subf %711, %707 : vector<8x1xf32>
    %713 = arith.addf %712, %705 : vector<8x1xf32>
    %714 = vector.broadcast %709 : vector<8x1xf32> to vector<8x256xf32>
    %715 = arith.mulf %671, %714 : vector<8x256xf32>
    %716 = vector.broadcast %705 : vector<8x1xf32> to vector<8x256xf32>
    %717 = arith.addf %716, %715 : vector<8x256xf32>
    %718 = vector.broadcast %710 : vector<8x1xf32> to vector<8x256xf32>
    %719 = arith.mulf %682, %718 : vector<8x256xf32>
    %720 = arith.addf %717, %719 : vector<8x256xf32>
    %721 = vector.broadcast %713 : vector<8x1xf32> to vector<8x256xf32>
    %722 = arith.mulf %683, %721 : vector<8x256xf32>
    %723 = arith.addf %720, %722 : vector<8x256xf32>
    %724 = arith.mulf %657, %723 : vector<8x256xf32>
    %725 = arith.addf %544, %724 : vector<8x256xf32>
    %c0_205 = arith.constant 0 : index
    %c140 = arith.constant 140 : index
    %726 = vector.load %arg1[%c0_205, %c140] : memref<8x174xf32, #tpu.memory_space<vmem>>, vector<8x1xf32>
    %c0_206 = arith.constant 0 : index
    %c143 = arith.constant 143 : index
    %727 = vector.load %arg1[%c0_206, %c143] : memref<8x174xf32, #tpu.memory_space<vmem>>, vector<8x1xf32>
    %c0_207 = arith.constant 0 : index
    %c146 = arith.constant 146 : index
    %728 = vector.load %arg1[%c0_207, %c146] : memref<8x174xf32, #tpu.memory_space<vmem>>, vector<8x1xf32>
    %c0_208 = arith.constant 0 : index
    %c149 = arith.constant 149 : index
    %729 = vector.load %arg1[%c0_208, %c149] : memref<8x174xf32, #tpu.memory_space<vmem>>, vector<8x1xf32>
    %730 = arith.subf %727, %726 : vector<8x1xf32>
    %731 = arith.subf %728, %726 : vector<8x1xf32>
    %732 = arith.subf %729, %727 : vector<8x1xf32>
    %733 = arith.subf %732, %728 : vector<8x1xf32>
    %734 = arith.addf %733, %726 : vector<8x1xf32>
    %735 = vector.broadcast %730 : vector<8x1xf32> to vector<8x256xf32>
    %736 = arith.mulf %671, %735 : vector<8x256xf32>
    %737 = vector.broadcast %726 : vector<8x1xf32> to vector<8x256xf32>
    %738 = arith.addf %737, %736 : vector<8x256xf32>
    %739 = vector.broadcast %731 : vector<8x1xf32> to vector<8x256xf32>
    %740 = arith.mulf %682, %739 : vector<8x256xf32>
    %741 = arith.addf %738, %740 : vector<8x256xf32>
    %742 = vector.broadcast %734 : vector<8x1xf32> to vector<8x256xf32>
    %743 = arith.mulf %683, %742 : vector<8x256xf32>
    %744 = arith.addf %741, %743 : vector<8x256xf32>
    %745 = arith.mulf %657, %744 : vector<8x256xf32>
    %746 = arith.addf %565, %745 : vector<8x256xf32>
    %c0_209 = arith.constant 0 : index
    %c68 = arith.constant 68 : index
    %747 = vector.load %arg1[%c0_209, %c68] : memref<8x174xf32, #tpu.memory_space<vmem>>, vector<8x1xf32>
    %c0_210 = arith.constant 0 : index
    %c69 = arith.constant 69 : index
    %748 = vector.load %arg1[%c0_210, %c69] : memref<8x174xf32, #tpu.memory_space<vmem>>, vector<8x1xf32>
    %c0_211 = arith.constant 0 : index
    %c70 = arith.constant 70 : index
    %749 = vector.load %arg1[%c0_211, %c70] : memref<8x174xf32, #tpu.memory_space<vmem>>, vector<8x1xf32>
    %c0_212 = arith.constant 0 : index
    %c71 = arith.constant 71 : index
    %750 = vector.load %arg1[%c0_212, %c71] : memref<8x174xf32, #tpu.memory_space<vmem>>, vector<8x1xf32>
    %c0_213 = arith.constant 0 : index
    %c72 = arith.constant 72 : index
    %751 = vector.load %arg1[%c0_213, %c72] : memref<8x174xf32, #tpu.memory_space<vmem>>, vector<8x1xf32>
    %c0_214 = arith.constant 0 : index
    %c73 = arith.constant 73 : index
    %752 = vector.load %arg1[%c0_214, %c73] : memref<8x174xf32, #tpu.memory_space<vmem>>, vector<8x1xf32>
    %c0_215 = arith.constant 0 : index
    %c74 = arith.constant 74 : index
    %753 = vector.load %arg1[%c0_215, %c74] : memref<8x174xf32, #tpu.memory_space<vmem>>, vector<8x1xf32>
    %c0_216 = arith.constant 0 : index
    %c75 = arith.constant 75 : index
    %754 = vector.load %arg1[%c0_216, %c75] : memref<8x174xf32, #tpu.memory_space<vmem>>, vector<8x1xf32>
    %c0_217 = arith.constant 0 : index
    %c76 = arith.constant 76 : index
    %755 = vector.load %arg1[%c0_217, %c76] : memref<8x174xf32, #tpu.memory_space<vmem>>, vector<8x1xf32>
    %c0_218 = arith.constant 0 : index
    %c77 = arith.constant 77 : index
    %756 = vector.load %arg1[%c0_218, %c77] : memref<8x174xf32, #tpu.memory_space<vmem>>, vector<8x1xf32>
    %c0_219 = arith.constant 0 : index
    %c78 = arith.constant 78 : index
    %757 = vector.load %arg1[%c0_219, %c78] : memref<8x174xf32, #tpu.memory_space<vmem>>, vector<8x1xf32>
    %c0_220 = arith.constant 0 : index
    %c79 = arith.constant 79 : index
    %758 = vector.load %arg1[%c0_220, %c79] : memref<8x174xf32, #tpu.memory_space<vmem>>, vector<8x1xf32>
    %c0_221 = arith.constant 0 : index
    %c80 = arith.constant 80 : index
    %759 = vector.load %arg1[%c0_221, %c80] : memref<8x174xf32, #tpu.memory_space<vmem>>, vector<8x1xf32>
    %c0_222 = arith.constant 0 : index
    %c81 = arith.constant 81 : index
    %760 = vector.load %arg1[%c0_222, %c81] : memref<8x174xf32, #tpu.memory_space<vmem>>, vector<8x1xf32>
    %c0_223 = arith.constant 0 : index
    %c82 = arith.constant 82 : index
    %761 = vector.load %arg1[%c0_223, %c82] : memref<8x174xf32, #tpu.memory_space<vmem>>, vector<8x1xf32>
    %c0_224 = arith.constant 0 : index
    %c83 = arith.constant 83 : index
    %762 = vector.load %arg1[%c0_224, %c83] : memref<8x174xf32, #tpu.memory_space<vmem>>, vector<8x1xf32>
    %c0_225 = arith.constant 0 : index
    %c84 = arith.constant 84 : index
    %763 = vector.load %arg1[%c0_225, %c84] : memref<8x174xf32, #tpu.memory_space<vmem>>, vector<8x1xf32>
    %764 = vector.broadcast %747 : vector<8x1xf32> to vector<8x256xf32>
    %765 = arith.mulf %764, %12 : vector<8x256xf32>
    %766 = vector.broadcast %748 : vector<8x1xf32> to vector<8x256xf32>
    %767 = arith.mulf %766, %16 : vector<8x256xf32>
    %768 = arith.addf %765, %767 : vector<8x256xf32>
    %769 = vector.broadcast %749 : vector<8x1xf32> to vector<8x256xf32>
    %770 = arith.addf %768, %769 : vector<8x256xf32>
    %771 = math.absf %770 : vector<8x256xf32>
    %cst_226 = arith.constant 9.99999993E-9 : f32
    %772 = vector.broadcast %cst_226 : f32 to vector<8x256xf32>
    %773 = arith.cmpf ogt, %771, %772 : vector<8x256xf32>
    %cst_227 = arith.constant 1.000000e+00 : f32
    %774 = vector.broadcast %cst_227 : f32 to vector<8x256xf32>
    %775 = arith.select %773, %770, %774 : vector<8x256xi1>, vector<8x256xf32>
    %776 = vector.broadcast %750 : vector<8x1xf32> to vector<8x256xf32>
    %777 = arith.divf %776, %775 : vector<8x256xf32>
    %cst_228 = arith.constant 9.99999997E-7 : f32
    %778 = vector.broadcast %cst_228 : f32 to vector<8x256xf32>
    %779 = arith.cmpf ogt, %777, %778 : vector<8x256xf32>
    %780 = arith.andi %773, %779 : vector<8x256xi1>
    %cst_229 = arith.constant 1.000000e+02 : f32
    %781 = vector.broadcast %cst_229 : f32 to vector<8x256xf32>
    %782 = arith.cmpf olt, %777, %781 : vector<8x256xf32>
    %783 = arith.andi %780, %782 : vector<8x256xi1>
    %784 = arith.mulf %777, %12 : vector<8x256xf32>
    %785 = vector.broadcast %751 : vector<8x1xf32> to vector<8x256xf32>
    %786 = arith.subf %784, %785 : vector<8x256xf32>
    %787 = arith.mulf %777, %16 : vector<8x256xf32>
    %788 = vector.broadcast %752 : vector<8x1xf32> to vector<8x256xf32>
    %789 = arith.subf %787, %788 : vector<8x256xf32>
    %790 = vector.broadcast %753 : vector<8x1xf32> to vector<8x256xf32>
    %791 = arith.subf %777, %790 : vector<8x256xf32>
    %792 = vector.broadcast %754 : vector<8x1xf32> to vector<8x256xf32>
    %793 = arith.mulf %792, %786 : vector<8x256xf32>
    %794 = vector.broadcast %755 : vector<8x1xf32> to vector<8x256xf32>
    %795 = arith.mulf %794, %789 : vector<8x256xf32>
    %796 = arith.addf %793, %795 : vector<8x256xf32>
    %797 = vector.broadcast %756 : vector<8x1xf32> to vector<8x256xf32>
    %798 = arith.mulf %797, %791 : vector<8x256xf32>
    %799 = arith.addf %796, %798 : vector<8x256xf32>
    %800 = vector.broadcast %757 : vector<8x1xf32> to vector<8x256xf32>
    %801 = arith.mulf %800, %786 : vector<8x256xf32>
    %802 = vector.broadcast %758 : vector<8x1xf32> to vector<8x256xf32>
    %803 = arith.mulf %802, %789 : vector<8x256xf32>
    %804 = arith.addf %801, %803 : vector<8x256xf32>
    %805 = vector.broadcast %759 : vector<8x1xf32> to vector<8x256xf32>
    %806 = arith.mulf %805, %791 : vector<8x256xf32>
    %807 = arith.addf %804, %806 : vector<8x256xf32>
    %808 = math.absf %799 : vector<8x256xf32>
    %809 = vector.broadcast %760 : vector<8x1xf32> to vector<8x256xf32>
    %810 = arith.subf %809, %808 : vector<8x256xf32>
    %811 = math.absf %807 : vector<8x256xf32>
    %812 = vector.broadcast %761 : vector<8x1xf32> to vector<8x256xf32>
    %813 = arith.subf %812, %811 : vector<8x256xf32>
    %814 = arith.minimumf %810, %813 : vector<8x256xf32>
    %cst_230 = arith.constant 1.000000e+02 : f32
    %815 = vector.broadcast %cst_230 : f32 to vector<8x256xf32>
    %816 = arith.mulf %814, %815 : vector<8x256xf32>
    %817 = arith.negf %816 : vector<8x256xf32>
    %818 = math.exp %817 : vector<8x256xf32>
    %cst_231 = arith.constant 1.000000e+00 : f32
    %819 = vector.broadcast %cst_231 : f32 to vector<8x256xf32>
    %820 = arith.addf %819, %818 : vector<8x256xf32>
    %821 = arith.divf %819, %820 : vector<8x256xf32>
    %cst_232 = arith.constant 0.000000e+00 : f32
    %822 = vector.broadcast %cst_232 : f32 to vector<8x256xf32>
    %823 = arith.select %783, %821, %822 : vector<8x256xi1>, vector<8x256xf32>
    %cst_233 = arith.constant 1.000000e+00 : f32
    %824 = vector.broadcast %cst_233 : f32 to vector<8x256xf32>
    %825 = arith.subf %824, %823 : vector<8x256xf32>
    %826 = arith.mulf %645, %825 : vector<8x256xf32>
    %cst_234 = arith.constant 1.000000e+02 : f32
    %827 = vector.broadcast %cst_234 : f32 to vector<8x256xf32>
    %828 = arith.subf %827, %777 : vector<8x256xf32>
    %cst_235 = arith.constant 0.00999999977 : f32
    %829 = vector.broadcast %cst_235 : f32 to vector<8x256xf32>
    %830 = arith.mulf %828, %829 : vector<8x256xf32>
    %cst_236 = arith.constant 0.000000e+00 : f32
    %cst_237 = arith.constant 1.000000e+00 : f32
    %831 = vector.broadcast %cst_236 : f32 to vector<8x256xf32>
    %832 = arith.maximumf %831, %830 : vector<8x256xf32>
    %833 = vector.broadcast %cst_237 : f32 to vector<8x256xf32>
    %834 = arith.minimumf %833, %832 : vector<8x256xf32>
    %cst_238 = arith.constant 1.000000e+01 : f32
    %835 = vector.broadcast %cst_238 : f32 to vector<8x256xf32>
    %836 = arith.mulf %834, %835 : vector<8x256xf32>
    %837 = math.exp %836 : vector<8x256xf32>
    %838 = arith.mulf %823, %837 : vector<8x256xf32>
    %839 = arith.addf %658, %838 : vector<8x256xf32>
    %840 = arith.mulf %838, %777 : vector<8x256xf32>
    %841 = arith.addf %660, %840 : vector<8x256xf32>
    %842 = vector.broadcast %762 : vector<8x1xf32> to vector<8x256xf32>
    %843 = arith.mulf %799, %842 : vector<8x256xf32>
    %cst_239 = arith.constant 5.000000e-01 : f32
    %844 = vector.broadcast %cst_239 : f32 to vector<8x256xf32>
    %845 = arith.addf %843, %844 : vector<8x256xf32>
    %cst_240 = arith.constant 2.000000e+00 : f32
    %846 = vector.broadcast %cst_240 : f32 to vector<8x256xf32>
    %847 = arith.mulf %845, %846 : vector<8x256xf32>
    %848 = math.floor %847 : vector<8x256xf32>
    %cst_241 = arith.constant 0.000000e+00 : f32
    %cst_242 = arith.constant 1.000000e+00 : f32
    %849 = vector.broadcast %cst_241 : f32 to vector<8x256xf32>
    %850 = arith.maximumf %849, %848 : vector<8x256xf32>
    %851 = vector.broadcast %cst_242 : f32 to vector<8x256xf32>
    %852 = arith.minimumf %851, %850 : vector<8x256xf32>
    %853 = vector.broadcast %763 : vector<8x1xf32> to vector<8x256xf32>
    %854 = arith.mulf %807, %853 : vector<8x256xf32>
    %cst_243 = arith.constant 5.000000e-01 : f32
    %855 = vector.broadcast %cst_243 : f32 to vector<8x256xf32>
    %856 = arith.addf %854, %855 : vector<8x256xf32>
    %cst_244 = arith.constant 2.000000e+00 : f32
    %857 = vector.broadcast %cst_244 : f32 to vector<8x256xf32>
    %858 = arith.mulf %856, %857 : vector<8x256xf32>
    %859 = math.floor %858 : vector<8x256xf32>
    %cst_245 = arith.constant 0.000000e+00 : f32
    %cst_246 = arith.constant 1.000000e+00 : f32
    %860 = vector.broadcast %cst_245 : f32 to vector<8x256xf32>
    %861 = arith.maximumf %860, %859 : vector<8x256xf32>
    %862 = vector.broadcast %cst_246 : f32 to vector<8x256xf32>
    %863 = arith.minimumf %862, %861 : vector<8x256xf32>
    %864 = arith.mulf %852, %863 : vector<8x256xf32>
    %c0_247 = arith.constant 0 : index
    %c150 = arith.constant 150 : index
    %865 = vector.load %arg1[%c0_247, %c150] : memref<8x174xf32, #tpu.memory_space<vmem>>, vector<8x1xf32>
    %c0_248 = arith.constant 0 : index
    %c153 = arith.constant 153 : index
    %866 = vector.load %arg1[%c0_248, %c153] : memref<8x174xf32, #tpu.memory_space<vmem>>, vector<8x1xf32>
    %c0_249 = arith.constant 0 : index
    %c156 = arith.constant 156 : index
    %867 = vector.load %arg1[%c0_249, %c156] : memref<8x174xf32, #tpu.memory_space<vmem>>, vector<8x1xf32>
    %c0_250 = arith.constant 0 : index
    %c159 = arith.constant 159 : index
    %868 = vector.load %arg1[%c0_250, %c159] : memref<8x174xf32, #tpu.memory_space<vmem>>, vector<8x1xf32>
    %869 = arith.subf %866, %865 : vector<8x1xf32>
    %870 = arith.subf %867, %865 : vector<8x1xf32>
    %871 = arith.subf %868, %866 : vector<8x1xf32>
    %872 = arith.subf %871, %867 : vector<8x1xf32>
    %873 = arith.addf %872, %865 : vector<8x1xf32>
    %874 = vector.broadcast %869 : vector<8x1xf32> to vector<8x256xf32>
    %875 = arith.mulf %852, %874 : vector<8x256xf32>
    %876 = vector.broadcast %865 : vector<8x1xf32> to vector<8x256xf32>
    %877 = arith.addf %876, %875 : vector<8x256xf32>
    %878 = vector.broadcast %870 : vector<8x1xf32> to vector<8x256xf32>
    %879 = arith.mulf %863, %878 : vector<8x256xf32>
    %880 = arith.addf %877, %879 : vector<8x256xf32>
    %881 = vector.broadcast %873 : vector<8x1xf32> to vector<8x256xf32>
    %882 = arith.mulf %864, %881 : vector<8x256xf32>
    %883 = arith.addf %880, %882 : vector<8x256xf32>
    %884 = arith.mulf %838, %883 : vector<8x256xf32>
    %885 = arith.addf %704, %884 : vector<8x256xf32>
    %c0_251 = arith.constant 0 : index
    %c151 = arith.constant 151 : index
    %886 = vector.load %arg1[%c0_251, %c151] : memref<8x174xf32, #tpu.memory_space<vmem>>, vector<8x1xf32>
    %c0_252 = arith.constant 0 : index
    %c154 = arith.constant 154 : index
    %887 = vector.load %arg1[%c0_252, %c154] : memref<8x174xf32, #tpu.memory_space<vmem>>, vector<8x1xf32>
    %c0_253 = arith.constant 0 : index
    %c157 = arith.constant 157 : index
    %888 = vector.load %arg1[%c0_253, %c157] : memref<8x174xf32, #tpu.memory_space<vmem>>, vector<8x1xf32>
    %c0_254 = arith.constant 0 : index
    %c160 = arith.constant 160 : index
    %889 = vector.load %arg1[%c0_254, %c160] : memref<8x174xf32, #tpu.memory_space<vmem>>, vector<8x1xf32>
    %890 = arith.subf %887, %886 : vector<8x1xf32>
    %891 = arith.subf %888, %886 : vector<8x1xf32>
    %892 = arith.subf %889, %887 : vector<8x1xf32>
    %893 = arith.subf %892, %888 : vector<8x1xf32>
    %894 = arith.addf %893, %886 : vector<8x1xf32>
    %895 = vector.broadcast %890 : vector<8x1xf32> to vector<8x256xf32>
    %896 = arith.mulf %852, %895 : vector<8x256xf32>
    %897 = vector.broadcast %886 : vector<8x1xf32> to vector<8x256xf32>
    %898 = arith.addf %897, %896 : vector<8x256xf32>
    %899 = vector.broadcast %891 : vector<8x1xf32> to vector<8x256xf32>
    %900 = arith.mulf %863, %899 : vector<8x256xf32>
    %901 = arith.addf %898, %900 : vector<8x256xf32>
    %902 = vector.broadcast %894 : vector<8x1xf32> to vector<8x256xf32>
    %903 = arith.mulf %864, %902 : vector<8x256xf32>
    %904 = arith.addf %901, %903 : vector<8x256xf32>
    %905 = arith.mulf %838, %904 : vector<8x256xf32>
    %906 = arith.addf %725, %905 : vector<8x256xf32>
    %c0_255 = arith.constant 0 : index
    %c152 = arith.constant 152 : index
    %907 = vector.load %arg1[%c0_255, %c152] : memref<8x174xf32, #tpu.memory_space<vmem>>, vector<8x1xf32>
    %c0_256 = arith.constant 0 : index
    %c155 = arith.constant 155 : index
    %908 = vector.load %arg1[%c0_256, %c155] : memref<8x174xf32, #tpu.memory_space<vmem>>, vector<8x1xf32>
    %c0_257 = arith.constant 0 : index
    %c158 = arith.constant 158 : index
    %909 = vector.load %arg1[%c0_257, %c158] : memref<8x174xf32, #tpu.memory_space<vmem>>, vector<8x1xf32>
    %c0_258 = arith.constant 0 : index
    %c161 = arith.constant 161 : index
    %910 = vector.load %arg1[%c0_258, %c161] : memref<8x174xf32, #tpu.memory_space<vmem>>, vector<8x1xf32>
    %911 = arith.subf %908, %907 : vector<8x1xf32>
    %912 = arith.subf %909, %907 : vector<8x1xf32>
    %913 = arith.subf %910, %908 : vector<8x1xf32>
    %914 = arith.subf %913, %909 : vector<8x1xf32>
    %915 = arith.addf %914, %907 : vector<8x1xf32>
    %916 = vector.broadcast %911 : vector<8x1xf32> to vector<8x256xf32>
    %917 = arith.mulf %852, %916 : vector<8x256xf32>
    %918 = vector.broadcast %907 : vector<8x1xf32> to vector<8x256xf32>
    %919 = arith.addf %918, %917 : vector<8x256xf32>
    %920 = vector.broadcast %912 : vector<8x1xf32> to vector<8x256xf32>
    %921 = arith.mulf %863, %920 : vector<8x256xf32>
    %922 = arith.addf %919, %921 : vector<8x256xf32>
    %923 = vector.broadcast %915 : vector<8x1xf32> to vector<8x256xf32>
    %924 = arith.mulf %864, %923 : vector<8x256xf32>
    %925 = arith.addf %922, %924 : vector<8x256xf32>
    %926 = arith.mulf %838, %925 : vector<8x256xf32>
    %927 = arith.addf %746, %926 : vector<8x256xf32>
    %c0_259 = arith.constant 0 : index
    %c85 = arith.constant 85 : index
    %928 = vector.load %arg1[%c0_259, %c85] : memref<8x174xf32, #tpu.memory_space<vmem>>, vector<8x1xf32>
    %c0_260 = arith.constant 0 : index
    %c86 = arith.constant 86 : index
    %929 = vector.load %arg1[%c0_260, %c86] : memref<8x174xf32, #tpu.memory_space<vmem>>, vector<8x1xf32>
    %c0_261 = arith.constant 0 : index
    %c87 = arith.constant 87 : index
    %930 = vector.load %arg1[%c0_261, %c87] : memref<8x174xf32, #tpu.memory_space<vmem>>, vector<8x1xf32>
    %c0_262 = arith.constant 0 : index
    %c88 = arith.constant 88 : index
    %931 = vector.load %arg1[%c0_262, %c88] : memref<8x174xf32, #tpu.memory_space<vmem>>, vector<8x1xf32>
    %c0_263 = arith.constant 0 : index
    %c89 = arith.constant 89 : index
    %932 = vector.load %arg1[%c0_263, %c89] : memref<8x174xf32, #tpu.memory_space<vmem>>, vector<8x1xf32>
    %c0_264 = arith.constant 0 : index
    %c90 = arith.constant 90 : index
    %933 = vector.load %arg1[%c0_264, %c90] : memref<8x174xf32, #tpu.memory_space<vmem>>, vector<8x1xf32>
    %c0_265 = arith.constant 0 : index
    %c91 = arith.constant 91 : index
    %934 = vector.load %arg1[%c0_265, %c91] : memref<8x174xf32, #tpu.memory_space<vmem>>, vector<8x1xf32>
    %c0_266 = arith.constant 0 : index
    %c92 = arith.constant 92 : index
    %935 = vector.load %arg1[%c0_266, %c92] : memref<8x174xf32, #tpu.memory_space<vmem>>, vector<8x1xf32>
    %c0_267 = arith.constant 0 : index
    %c93 = arith.constant 93 : index
    %936 = vector.load %arg1[%c0_267, %c93] : memref<8x174xf32, #tpu.memory_space<vmem>>, vector<8x1xf32>
    %c0_268 = arith.constant 0 : index
    %c94 = arith.constant 94 : index
    %937 = vector.load %arg1[%c0_268, %c94] : memref<8x174xf32, #tpu.memory_space<vmem>>, vector<8x1xf32>
    %c0_269 = arith.constant 0 : index
    %c95 = arith.constant 95 : index
    %938 = vector.load %arg1[%c0_269, %c95] : memref<8x174xf32, #tpu.memory_space<vmem>>, vector<8x1xf32>
    %c0_270 = arith.constant 0 : index
    %c96 = arith.constant 96 : index
    %939 = vector.load %arg1[%c0_270, %c96] : memref<8x174xf32, #tpu.memory_space<vmem>>, vector<8x1xf32>
    %c0_271 = arith.constant 0 : index
    %c97 = arith.constant 97 : index
    %940 = vector.load %arg1[%c0_271, %c97] : memref<8x174xf32, #tpu.memory_space<vmem>>, vector<8x1xf32>
    %c0_272 = arith.constant 0 : index
    %c98 = arith.constant 98 : index
    %941 = vector.load %arg1[%c0_272, %c98] : memref<8x174xf32, #tpu.memory_space<vmem>>, vector<8x1xf32>
    %c0_273 = arith.constant 0 : index
    %c99 = arith.constant 99 : index
    %942 = vector.load %arg1[%c0_273, %c99] : memref<8x174xf32, #tpu.memory_space<vmem>>, vector<8x1xf32>
    %c0_274 = arith.constant 0 : index
    %c100 = arith.constant 100 : index
    %943 = vector.load %arg1[%c0_274, %c100] : memref<8x174xf32, #tpu.memory_space<vmem>>, vector<8x1xf32>
    %c0_275 = arith.constant 0 : index
    %c101 = arith.constant 101 : index
    %944 = vector.load %arg1[%c0_275, %c101] : memref<8x174xf32, #tpu.memory_space<vmem>>, vector<8x1xf32>
    %945 = vector.broadcast %928 : vector<8x1xf32> to vector<8x256xf32>
    %946 = arith.mulf %945, %12 : vector<8x256xf32>
    %947 = vector.broadcast %929 : vector<8x1xf32> to vector<8x256xf32>
    %948 = arith.mulf %947, %16 : vector<8x256xf32>
    %949 = arith.addf %946, %948 : vector<8x256xf32>
    %950 = vector.broadcast %930 : vector<8x1xf32> to vector<8x256xf32>
    %951 = arith.addf %949, %950 : vector<8x256xf32>
    %952 = math.absf %951 : vector<8x256xf32>
    %cst_276 = arith.constant 9.99999993E-9 : f32
    %953 = vector.broadcast %cst_276 : f32 to vector<8x256xf32>
    %954 = arith.cmpf ogt, %952, %953 : vector<8x256xf32>
    %cst_277 = arith.constant 1.000000e+00 : f32
    %955 = vector.broadcast %cst_277 : f32 to vector<8x256xf32>
    %956 = arith.select %954, %951, %955 : vector<8x256xi1>, vector<8x256xf32>
    %957 = vector.broadcast %931 : vector<8x1xf32> to vector<8x256xf32>
    %958 = arith.divf %957, %956 : vector<8x256xf32>
    %cst_278 = arith.constant 9.99999997E-7 : f32
    %959 = vector.broadcast %cst_278 : f32 to vector<8x256xf32>
    %960 = arith.cmpf ogt, %958, %959 : vector<8x256xf32>
    %961 = arith.andi %954, %960 : vector<8x256xi1>
    %cst_279 = arith.constant 1.000000e+02 : f32
    %962 = vector.broadcast %cst_279 : f32 to vector<8x256xf32>
    %963 = arith.cmpf olt, %958, %962 : vector<8x256xf32>
    %964 = arith.andi %961, %963 : vector<8x256xi1>
    %965 = arith.mulf %958, %12 : vector<8x256xf32>
    %966 = vector.broadcast %932 : vector<8x1xf32> to vector<8x256xf32>
    %967 = arith.subf %965, %966 : vector<8x256xf32>
    %968 = arith.mulf %958, %16 : vector<8x256xf32>
    %969 = vector.broadcast %933 : vector<8x1xf32> to vector<8x256xf32>
    %970 = arith.subf %968, %969 : vector<8x256xf32>
    %971 = vector.broadcast %934 : vector<8x1xf32> to vector<8x256xf32>
    %972 = arith.subf %958, %971 : vector<8x256xf32>
    %973 = vector.broadcast %935 : vector<8x1xf32> to vector<8x256xf32>
    %974 = arith.mulf %973, %967 : vector<8x256xf32>
    %975 = vector.broadcast %936 : vector<8x1xf32> to vector<8x256xf32>
    %976 = arith.mulf %975, %970 : vector<8x256xf32>
    %977 = arith.addf %974, %976 : vector<8x256xf32>
    %978 = vector.broadcast %937 : vector<8x1xf32> to vector<8x256xf32>
    %979 = arith.mulf %978, %972 : vector<8x256xf32>
    %980 = arith.addf %977, %979 : vector<8x256xf32>
    %981 = vector.broadcast %938 : vector<8x1xf32> to vector<8x256xf32>
    %982 = arith.mulf %981, %967 : vector<8x256xf32>
    %983 = vector.broadcast %939 : vector<8x1xf32> to vector<8x256xf32>
    %984 = arith.mulf %983, %970 : vector<8x256xf32>
    %985 = arith.addf %982, %984 : vector<8x256xf32>
    %986 = vector.broadcast %940 : vector<8x1xf32> to vector<8x256xf32>
    %987 = arith.mulf %986, %972 : vector<8x256xf32>
    %988 = arith.addf %985, %987 : vector<8x256xf32>
    %989 = math.absf %980 : vector<8x256xf32>
    %990 = vector.broadcast %941 : vector<8x1xf32> to vector<8x256xf32>
    %991 = arith.subf %990, %989 : vector<8x256xf32>
    %992 = math.absf %988 : vector<8x256xf32>
    %993 = vector.broadcast %942 : vector<8x1xf32> to vector<8x256xf32>
    %994 = arith.subf %993, %992 : vector<8x256xf32>
    %995 = arith.minimumf %991, %994 : vector<8x256xf32>
    %cst_280 = arith.constant 1.000000e+02 : f32
    %996 = vector.broadcast %cst_280 : f32 to vector<8x256xf32>
    %997 = arith.mulf %995, %996 : vector<8x256xf32>
    %998 = arith.negf %997 : vector<8x256xf32>
    %999 = math.exp %998 : vector<8x256xf32>
    %cst_281 = arith.constant 1.000000e+00 : f32
    %1000 = vector.broadcast %cst_281 : f32 to vector<8x256xf32>
    %1001 = arith.addf %1000, %999 : vector<8x256xf32>
    %1002 = arith.divf %1000, %1001 : vector<8x256xf32>
    %cst_282 = arith.constant 0.000000e+00 : f32
    %1003 = vector.broadcast %cst_282 : f32 to vector<8x256xf32>
    %1004 = arith.select %964, %1002, %1003 : vector<8x256xi1>, vector<8x256xf32>
    %cst_283 = arith.constant 1.000000e+00 : f32
    %1005 = vector.broadcast %cst_283 : f32 to vector<8x256xf32>
    %1006 = arith.subf %1005, %1004 : vector<8x256xf32>
    %1007 = arith.mulf %826, %1006 : vector<8x256xf32>
    %cst_284 = arith.constant 1.000000e+02 : f32
    %1008 = vector.broadcast %cst_284 : f32 to vector<8x256xf32>
    %1009 = arith.subf %1008, %958 : vector<8x256xf32>
    %cst_285 = arith.constant 0.00999999977 : f32
    %1010 = vector.broadcast %cst_285 : f32 to vector<8x256xf32>
    %1011 = arith.mulf %1009, %1010 : vector<8x256xf32>
    %cst_286 = arith.constant 0.000000e+00 : f32
    %cst_287 = arith.constant 1.000000e+00 : f32
    %1012 = vector.broadcast %cst_286 : f32 to vector<8x256xf32>
    %1013 = arith.maximumf %1012, %1011 : vector<8x256xf32>
    %1014 = vector.broadcast %cst_287 : f32 to vector<8x256xf32>
    %1015 = arith.minimumf %1014, %1013 : vector<8x256xf32>
    %cst_288 = arith.constant 1.000000e+01 : f32
    %1016 = vector.broadcast %cst_288 : f32 to vector<8x256xf32>
    %1017 = arith.mulf %1015, %1016 : vector<8x256xf32>
    %1018 = math.exp %1017 : vector<8x256xf32>
    %1019 = arith.mulf %1004, %1018 : vector<8x256xf32>
    %1020 = arith.addf %839, %1019 : vector<8x256xf32>
    %1021 = arith.mulf %1019, %958 : vector<8x256xf32>
    %1022 = arith.addf %841, %1021 : vector<8x256xf32>
    %1023 = vector.broadcast %943 : vector<8x1xf32> to vector<8x256xf32>
    %1024 = arith.mulf %980, %1023 : vector<8x256xf32>
    %cst_289 = arith.constant 5.000000e-01 : f32
    %1025 = vector.broadcast %cst_289 : f32 to vector<8x256xf32>
    %1026 = arith.addf %1024, %1025 : vector<8x256xf32>
    %cst_290 = arith.constant 2.000000e+00 : f32
    %1027 = vector.broadcast %cst_290 : f32 to vector<8x256xf32>
    %1028 = arith.mulf %1026, %1027 : vector<8x256xf32>
    %1029 = math.floor %1028 : vector<8x256xf32>
    %cst_291 = arith.constant 0.000000e+00 : f32
    %cst_292 = arith.constant 1.000000e+00 : f32
    %1030 = vector.broadcast %cst_291 : f32 to vector<8x256xf32>
    %1031 = arith.maximumf %1030, %1029 : vector<8x256xf32>
    %1032 = vector.broadcast %cst_292 : f32 to vector<8x256xf32>
    %1033 = arith.minimumf %1032, %1031 : vector<8x256xf32>
    %1034 = vector.broadcast %944 : vector<8x1xf32> to vector<8x256xf32>
    %1035 = arith.mulf %988, %1034 : vector<8x256xf32>
    %cst_293 = arith.constant 5.000000e-01 : f32
    %1036 = vector.broadcast %cst_293 : f32 to vector<8x256xf32>
    %1037 = arith.addf %1035, %1036 : vector<8x256xf32>
    %cst_294 = arith.constant 2.000000e+00 : f32
    %1038 = vector.broadcast %cst_294 : f32 to vector<8x256xf32>
    %1039 = arith.mulf %1037, %1038 : vector<8x256xf32>
    %1040 = math.floor %1039 : vector<8x256xf32>
    %cst_295 = arith.constant 0.000000e+00 : f32
    %cst_296 = arith.constant 1.000000e+00 : f32
    %1041 = vector.broadcast %cst_295 : f32 to vector<8x256xf32>
    %1042 = arith.maximumf %1041, %1040 : vector<8x256xf32>
    %1043 = vector.broadcast %cst_296 : f32 to vector<8x256xf32>
    %1044 = arith.minimumf %1043, %1042 : vector<8x256xf32>
    %1045 = arith.mulf %1033, %1044 : vector<8x256xf32>
    %c0_297 = arith.constant 0 : index
    %c162 = arith.constant 162 : index
    %1046 = vector.load %arg1[%c0_297, %c162] : memref<8x174xf32, #tpu.memory_space<vmem>>, vector<8x1xf32>
    %c0_298 = arith.constant 0 : index
    %c165 = arith.constant 165 : index
    %1047 = vector.load %arg1[%c0_298, %c165] : memref<8x174xf32, #tpu.memory_space<vmem>>, vector<8x1xf32>
    %c0_299 = arith.constant 0 : index
    %c168 = arith.constant 168 : index
    %1048 = vector.load %arg1[%c0_299, %c168] : memref<8x174xf32, #tpu.memory_space<vmem>>, vector<8x1xf32>
    %c0_300 = arith.constant 0 : index
    %c171 = arith.constant 171 : index
    %1049 = vector.load %arg1[%c0_300, %c171] : memref<8x174xf32, #tpu.memory_space<vmem>>, vector<8x1xf32>
    %1050 = arith.subf %1047, %1046 : vector<8x1xf32>
    %1051 = arith.subf %1048, %1046 : vector<8x1xf32>
    %1052 = arith.subf %1049, %1047 : vector<8x1xf32>
    %1053 = arith.subf %1052, %1048 : vector<8x1xf32>
    %1054 = arith.addf %1053, %1046 : vector<8x1xf32>
    %1055 = vector.broadcast %1050 : vector<8x1xf32> to vector<8x256xf32>
    %1056 = arith.mulf %1033, %1055 : vector<8x256xf32>
    %1057 = vector.broadcast %1046 : vector<8x1xf32> to vector<8x256xf32>
    %1058 = arith.addf %1057, %1056 : vector<8x256xf32>
    %1059 = vector.broadcast %1051 : vector<8x1xf32> to vector<8x256xf32>
    %1060 = arith.mulf %1044, %1059 : vector<8x256xf32>
    %1061 = arith.addf %1058, %1060 : vector<8x256xf32>
    %1062 = vector.broadcast %1054 : vector<8x1xf32> to vector<8x256xf32>
    %1063 = arith.mulf %1045, %1062 : vector<8x256xf32>
    %1064 = arith.addf %1061, %1063 : vector<8x256xf32>
    %1065 = arith.mulf %1019, %1064 : vector<8x256xf32>
    %1066 = arith.addf %885, %1065 : vector<8x256xf32>
    %c0_301 = arith.constant 0 : index
    %c163 = arith.constant 163 : index
    %1067 = vector.load %arg1[%c0_301, %c163] : memref<8x174xf32, #tpu.memory_space<vmem>>, vector<8x1xf32>
    %c0_302 = arith.constant 0 : index
    %c166 = arith.constant 166 : index
    %1068 = vector.load %arg1[%c0_302, %c166] : memref<8x174xf32, #tpu.memory_space<vmem>>, vector<8x1xf32>
    %c0_303 = arith.constant 0 : index
    %c169 = arith.constant 169 : index
    %1069 = vector.load %arg1[%c0_303, %c169] : memref<8x174xf32, #tpu.memory_space<vmem>>, vector<8x1xf32>
    %c0_304 = arith.constant 0 : index
    %c172 = arith.constant 172 : index
    %1070 = vector.load %arg1[%c0_304, %c172] : memref<8x174xf32, #tpu.memory_space<vmem>>, vector<8x1xf32>
    %1071 = arith.subf %1068, %1067 : vector<8x1xf32>
    %1072 = arith.subf %1069, %1067 : vector<8x1xf32>
    %1073 = arith.subf %1070, %1068 : vector<8x1xf32>
    %1074 = arith.subf %1073, %1069 : vector<8x1xf32>
    %1075 = arith.addf %1074, %1067 : vector<8x1xf32>
    %1076 = vector.broadcast %1071 : vector<8x1xf32> to vector<8x256xf32>
    %1077 = arith.mulf %1033, %1076 : vector<8x256xf32>
    %1078 = vector.broadcast %1067 : vector<8x1xf32> to vector<8x256xf32>
    %1079 = arith.addf %1078, %1077 : vector<8x256xf32>
    %1080 = vector.broadcast %1072 : vector<8x1xf32> to vector<8x256xf32>
    %1081 = arith.mulf %1044, %1080 : vector<8x256xf32>
    %1082 = arith.addf %1079, %1081 : vector<8x256xf32>
    %1083 = vector.broadcast %1075 : vector<8x1xf32> to vector<8x256xf32>
    %1084 = arith.mulf %1045, %1083 : vector<8x256xf32>
    %1085 = arith.addf %1082, %1084 : vector<8x256xf32>
    %1086 = arith.mulf %1019, %1085 : vector<8x256xf32>
    %1087 = arith.addf %906, %1086 : vector<8x256xf32>
    %c0_305 = arith.constant 0 : index
    %c164 = arith.constant 164 : index
    %1088 = vector.load %arg1[%c0_305, %c164] : memref<8x174xf32, #tpu.memory_space<vmem>>, vector<8x1xf32>
    %c0_306 = arith.constant 0 : index
    %c167 = arith.constant 167 : index
    %1089 = vector.load %arg1[%c0_306, %c167] : memref<8x174xf32, #tpu.memory_space<vmem>>, vector<8x1xf32>
    %c0_307 = arith.constant 0 : index
    %c170 = arith.constant 170 : index
    %1090 = vector.load %arg1[%c0_307, %c170] : memref<8x174xf32, #tpu.memory_space<vmem>>, vector<8x1xf32>
    %c0_308 = arith.constant 0 : index
    %c173 = arith.constant 173 : index
    %1091 = vector.load %arg1[%c0_308, %c173] : memref<8x174xf32, #tpu.memory_space<vmem>>, vector<8x1xf32>
    %1092 = arith.subf %1089, %1088 : vector<8x1xf32>
    %1093 = arith.subf %1090, %1088 : vector<8x1xf32>
    %1094 = arith.subf %1091, %1089 : vector<8x1xf32>
    %1095 = arith.subf %1094, %1090 : vector<8x1xf32>
    %1096 = arith.addf %1095, %1088 : vector<8x1xf32>
    %1097 = vector.broadcast %1092 : vector<8x1xf32> to vector<8x256xf32>
    %1098 = arith.mulf %1033, %1097 : vector<8x256xf32>
    %1099 = vector.broadcast %1088 : vector<8x1xf32> to vector<8x256xf32>
    %1100 = arith.addf %1099, %1098 : vector<8x256xf32>
    %1101 = vector.broadcast %1093 : vector<8x1xf32> to vector<8x256xf32>
    %1102 = arith.mulf %1044, %1101 : vector<8x256xf32>
    %1103 = arith.addf %1100, %1102 : vector<8x256xf32>
    %1104 = vector.broadcast %1096 : vector<8x1xf32> to vector<8x256xf32>
    %1105 = arith.mulf %1045, %1104 : vector<8x256xf32>
    %1106 = arith.addf %1103, %1105 : vector<8x256xf32>
    %1107 = arith.mulf %1019, %1106 : vector<8x256xf32>
    %1108 = arith.addf %927, %1107 : vector<8x256xf32>
    %1109 = tpu.reciprocal %1020 {approx = true} : vector<8x256xf32> -> vector<8x256xf32>
    %1110 = arith.mulf %1066, %1109 : vector<8x256xf32>
    %c0_309 = arith.constant 0 : index
    %c0_310 = arith.constant 0 : index
    %1111 = vector.load %arg2[%c0_309, %c0_310] : memref<8x1280xf32, #tpu.memory_space<vmem>>, vector<8x256xf32>
    tpu.vector_store %arg2[%c0_309, %c0_310], %1110 {strides = array<i32>} : memref<8x1280xf32, #tpu.memory_space<vmem>>, vector<8x256xf32>,
    %1112 = arith.mulf %1087, %1109 : vector<8x256xf32>
    %c0_311 = arith.constant 0 : index
    %c256 = arith.constant 256 : index
    %1113 = vector.load %arg2[%c0_311, %c256] : memref<8x1280xf32, #tpu.memory_space<vmem>>, vector<8x256xf32>
    tpu.vector_store %arg2[%c0_311, %c256], %1112 {strides = array<i32>} : memref<8x1280xf32, #tpu.memory_space<vmem>>, vector<8x256xf32>,
    %1114 = arith.mulf %1108, %1109 : vector<8x256xf32>
    %c0_312 = arith.constant 0 : index
    %c512 = arith.constant 512 : index
    %1115 = vector.load %arg2[%c0_312, %c512] : memref<8x1280xf32, #tpu.memory_space<vmem>>, vector<8x256xf32>
    tpu.vector_store %arg2[%c0_312, %c512], %1114 {strides = array<i32>} : memref<8x1280xf32, #tpu.memory_space<vmem>>, vector<8x256xf32>,
    %cst_313 = arith.constant 1.000000e+00 : f32
    %1116 = vector.broadcast %cst_313 : f32 to vector<8x256xf32>
    %1117 = arith.subf %1116, %1007 : vector<8x256xf32>
    %c0_314 = arith.constant 0 : index
    %c768 = arith.constant 768 : index
    %1118 = vector.load %arg2[%c0_314, %c768] : memref<8x1280xf32, #tpu.memory_space<vmem>>, vector<8x256xf32>
    tpu.vector_store %arg2[%c0_314, %c768], %1117 {strides = array<i32>} : memref<8x1280xf32, #tpu.memory_space<vmem>>, vector<8x256xf32>,
    %1119 = arith.mulf %1022, %1109 : vector<8x256xf32>
    %c0_315 = arith.constant 0 : index
    %c1024 = arith.constant 1024 : index
    %1120 = vector.load %arg2[%c0_315, %c1024] : memref<8x1280xf32, #tpu.memory_space<vmem>>, vector<8x256xf32>
    tpu.vector_store %arg2[%c0_315, %c1024], %1119 {strides = array<i32>} : memref<8x1280xf32, #tpu.memory_space<vmem>>, vector<8x256xf32>,
    return
  }
  func.func @transform_0(%arg0: i32) -> (i32, i32) {
    %c0_i32 = arith.constant 0 : i32
    %c0_i32_0 = arith.constant 0 : i32
    return %arg0, %c0_i32 : i32, i32
  }
  func.func @transform_1(%arg0: i32) -> (i32, i32) {
    %c0_i32 = arith.constant 0 : i32
    %c0_i32_0 = arith.constant 0 : i32
    return %arg0, %c0_i32 : i32, i32
  }
}

</mosaic_0001>

<llo_original>
// kernel: tpu_custom_call.1
$region0: #{tpu_custom_call.1}
  #allocation0 [shape = 'u32[]', space=smem, size = 0x4, offset = 0x4, fixed_abs, tag = 'smem constant byte address 0x4 - core index']
  #allocation1 [shape = 'u32[144,128]{1,0:T(1,128)}', space=vmem, size = 0x12000, scoped, tag = 'internal scratch']
  %s0 = inlined_call_operand.hbm [shape: f32[8,174], index: 0, kind: input, shape index: {}]
  %s1 = inlined_call_operand.hbm [shape: f32[8,1280], index: 1, kind: output, shape index: {}]
  %s2 = sld [smem:[#allocation0]]
  $region18: #{tpu_custom_call.1} parent=0
    _
  %s4 = ssub.s32 1, %s2
  %s5 = scalar_select 0, %s4, %s2
  $region1: #{tpu_custom_call.1} parent=0
    #allocation2 [shape = 'u8[8192]{0}', space=vmem, size = 0x2000, scoped, tag = 'input window, operand 0, single buffered']
    #allocation3 [shape = 's32[1]{0}', space=sflag, size = 0x4, scoped, tag = 'scoped memory for tpu_custom_call.1']
    #allocation4 [shape = 's32[1]{0}', space=sflag, size = 0x4, scoped, tag = 'scoped memory for tpu_custom_call.1']
    #allocation5 [shape = 'u8[40960]{0}', space=vmem, size = 0xa000, scoped, tag = 'output window, operand 0, single buffered']
    %6 = vsyncpa [#allocation3], 0
    %7 = vsyncpa [#allocation4], 0
    // Predicated region
    $region2: #{tpu_custom_call.1} parent=1 // pred_check
      _
    $region3: #{tpu_custom_call.1} parent=1 // pred_check_branch
      %9 = sbr.rel (0) target = $region5
    $region4: #{tpu_custom_call.1} parent=1 // pred_region
      %s11 = ssub.s32 256, 256
      %12 = vsyncadd [#allocation3], %s11
      %s14 = sshll.u32 [#allocation2], 4
      %s15 = int_to_ptr.vmem [resolvable:$true] %s14
      %17 = dma.hbm_to_vmem [thread:$0]  %s0, 256, %s15, [#allocation3]
    $region5: #{tpu_custom_call.1} parent=1 // pred_fallthru
      _
    // Predicated region
    $region6: #{tpu_custom_call.1} parent=1 // pred_check
      _
    $region7: #{tpu_custom_call.1} parent=1 // pred_check_branch
      %19 = sbr.rel (0) target = $region9
    $region8: #{tpu_custom_call.1} parent=1 // pred_region
      %20 = dma.done [#allocation3], 256
    $region9: #{tpu_custom_call.1} parent=1 // pred_fallthru
      _
    %v21 = vlaneseq
    %v22 = vand.u32 %v21, 127
    %v23 = vadd.s32 %v22, 128
    %v24 = vshra.s32 %v22, 4
    %v25 = vshra.s32 %v23, 4
    %v26 = vcvt.s32.f32 %v24
    %v27 = vcvt.s32.f32 %v25
    %v28 = vand.u32 %v22, 15
    %v29 = vand.u32 %v23, 15
    %v30 = vcvt.s32.f32 %v28
    %v31 = vcvt.s32.f32 %v29
    %v32 = vadd.f32 %v30, -7.5
    %v33 = vadd.f32 %v31, -7.5
    %v34 = vmul.f32 %v32, 0.0625
    %v35 = vmul.f32 %v33, 0.0625
    %v36 = vadd.f32 %v26, -7.5
    %v37 = vadd.f32 %v27, -7.5
    %v38 = vmul.f32 %v36, 0.0625
    %v39 = vmul.f32 %v37, 0.0625
    %v40 = vld [vmem:[#allocation2] sm:$0xff]
    %42 = vset.pattern.permute.xlu0 0
    %43 = vperm.xlu0 %42, %v40
    %v44 = vpop.permute.xlu0 %43
    %v46 = vmul.f32 %v44, %v34
    %v47 = vmul.f32 %v44, %v35
    %48 = vset.pattern.permute.xlu0 1
    %49 = vperm.xlu0 %48, %v40
    %v50 = vpop.permute.xlu0 %49
    %v52 = vmul.f32 %v50, %v38
    %v53 = vmul.f32 %v50, %v39
    %v54 = vadd.f32 %v46, %v52
    %v55 = vadd.f32 %v47, %v53
    %56 = vset.pattern.permute.xlu0 2
    %57 = vperm.xlu0 %56, %v40
    %v58 = vpop.permute.xlu0 %57
    %v60 = vadd.f32 %v54, %v58
    %v61 = vadd.f32 %v55, %v58
    %v62 = vand.u32 2147483647, %v60
    %v63 = vand.u32 2147483647, %v61
    %vm64 = vcmp.gt.f32.partialorder %v62, 1e-08
    %vm65 = vcmp.gt.f32.partialorder %v63, 1e-08
    %v66 = vsel %vm64, %v60, 1.0
    %v67 = vsel %vm65, %v61, 1.0
    %68 = vset.pattern.permute.xlu0 3
    %69 = vperm.xlu0 %68, %v40
    %v70 = vpop.permute.xlu0 %69
    %v72 = vrcp.pop %v66
    %v73 = vmul.f32 %v70, %v72
    %v74 = vrcp.pop %v67
    %v75 = vmul.f32 %v70, %v74
    %vm76 = vcmp.gt.f32.partialorder %v73, 1e-06
    %vm77 = vcmp.gt.f32.partialorder %v75, 1e-06
    %vm78 = vmand %vm64, %vm76
    %vm79 = vmand %vm65, %vm77
    %vm80 = vcmp.lt.f32.partialorder %v73, 100.0
    %vm81 = vcmp.lt.f32.partialorder %v75, 100.0
    %vm82 = vmand %vm78, %vm80
    %vm83 = vmand %vm79, %vm81
    %v84 = vmul.f32 %v73, %v34
    %v85 = vmul.f32 %v75, %v35
    %86 = vset.pattern.permute.xlu0 4
    %87 = vperm.xlu0 %86, %v40
    %v88 = vpop.permute.xlu0 %87
    %v90 = vsub.f32 %v84, %v88
    %v91 = vsub.f32 %v85, %v88
    %v92 = vmul.f32 %v73, %v38
    %v93 = vmul.f32 %v75, %v39
    %94 = vset.pattern.permute.xlu0 5
    %95 = vperm.xlu0 %94, %v40
    %v96 = vpop.permute.xlu0 %95
    %v98 = vsub.f32 %v92, %v96
    %v99 = vsub.f32 %v93, %v96
    %100 = vset.pattern.permute.xlu0 6
    %101 = vperm.xlu0 %100, %v40
    %v102 = vpop.permute.xlu0 %101
    %v104 = vsub.f32 %v73, %v102
    %v105 = vsub.f32 %v75, %v102
    %106 = vset.pattern.permute.xlu0 7
    %107 = vperm.xlu0 %106, %v40
    %v108 = vpop.permute.xlu0 %107
    %v110 = vmul.f32 %v108, %v90
    %v111 = vmul.f32 %v108, %v91
    %112 = vset.pattern.permute.xlu0 8
    %113 = vperm.xlu0 %112, %v40
    %v114 = vpop.permute.xlu0 %113
    %v116 = vmul.f32 %v114, %v98
    %v117 = vmul.f32 %v114, %v99
    %v118 = vadd.f32 %v110, %v116
    %v119 = vadd.f32 %v111, %v117
    %120 = vset.pattern.permute.xlu0 9
    %121 = vperm.xlu0 %120, %v40
    %v122 = vpop.permute.xlu0 %121
    %v124 = vmul.f32 %v122, %v104
    %v125 = vmul.f32 %v122, %v105
    %v126 = vadd.f32 %v118, %v124
    %v127 = vadd.f32 %v119, %v125
    %128 = vset.pattern.permute.xlu0 10
    %129 = vperm.xlu0 %128, %v40
    %v130 = vpop.permute.xlu0 %129
    %v132 = vmul.f32 %v130, %v90
    %v133 = vmul.f32 %v130, %v91
    %134 = vset.pattern.permute.xlu0 11
    %135 = vperm.xlu0 %134, %v40
    %v136 = vpop.permute.xlu0 %135
    %v138 = vmul.f32 %v136, %v98
    %v139 = vmul.f32 %v136, %v99
    %v140 = vadd.f32 %v132, %v138
    %v141 = vadd.f32 %v133, %v139
    %142 = vset.pattern.permute.xlu0 12
    %143 = vperm.xlu0 %142, %v40
    %v144 = vpop.permute.xlu0 %143
    %v146 = vmul.f32 %v144, %v104
    %v147 = vmul.f32 %v144, %v105
    %v148 = vadd.f32 %v140, %v146
    %v149 = vadd.f32 %v141, %v147
    %v150 = vand.u32 2147483647, %v126
    %v151 = vand.u32 2147483647, %v127
    %152 = vset.pattern.permute.xlu0 13
    %153 = vperm.xlu0 %152, %v40
    %v154 = vpop.permute.xlu0 %153
    %v156 = vsub.f32 %v154, %v150
    %v157 = vsub.f32 %v154, %v151
    %v158 = vand.u32 2147483647, %v148
    %v159 = vand.u32 2147483647, %v149
    %160 = vset.pattern.permute.xlu0 14
    %161 = vperm.xlu0 %160, %v40
    %v162 = vpop.permute.xlu0 %161
    %v164 = vsub.f32 %v162, %v158
    %v165 = vsub.f32 %v162, %v159
    %v166 = vmin.f32 %v156, %v164
    %v167 = vmin.f32 %v157, %v165
    %v168 = vmul.f32 %v166, 100.0
    %v169 = vmul.f32 %v167, 100.0
    %v170 = vxor.u32 %v168, 2147483648
    %v171 = vxor.u32 %v169, 2147483648
    %v172 = vmul.f32 %v170, 1.442695
    %v173 = vpow.pop %v172
    %v174 = vmul.f32 %v171, 1.442695
    %v175 = vpow.pop %v174
    %v176 = vadd.f32 %v173, 1.0
    %v177 = vadd.f32 %v175, 1.0
    %v178 = vrcp.pop %v176
    %v179 = vmul.f32 1.0, %v178
    %v180 = vrcp.pop %v177
    %v181 = vmul.f32 1.0, %v180
    %v182 = vsel %vm82, %v179, 0.0
    %v183 = vsel %vm83, %v181, 0.0
    %v184 = vsub.f32 1.0, %v182
    %v185 = vsub.f32 1.0, %v183
    %v186 = vsub.f32 100.0, %v73
    %v187 = vsub.f32 100.0, %v75
    %v188 = vmul.f32 %v186, 0.01
    %v189 = vmul.f32 %v187, 0.01
    %v190 = vmax.f32 %v188, 0.0
    %v191 = vmax.f32 %v189, 0.0
    %v192 = vmin.f32 %v190, 1.0
    %v193 = vmin.f32 %v191, 1.0
    %v194 = vmul.f32 %v192, 10.0
    %v195 = vmul.f32 %v193, 10.0
    %v196 = vmul.f32 %v194, 1.442695
    %v197 = vpow.pop %v196
    %v198 = vmul.f32 %v195, 1.442695
    %v199 = vpow.pop %v198
    %v200 = vmul.f32 %v182, %v197
    %v201 = vmul.f32 %v183, %v199
    %v202 = vadd.f32 %v200, 1.0
    %v203 = vadd.f32 %v201, 1.0
    %v204 = vmul.f32 %v200, %v73
    %v205 = vmul.f32 %v201, %v75
    %v206 = vadd.f32 %v204, 100.0
    %v207 = vadd.f32 %v205, 100.0
    %208 = vset.pattern.permute.xlu0 15
    %209 = vperm.xlu0 %208, %v40
    %v210 = vpop.permute.xlu0 %209
    %v212 = vmul.f32 %v126, %v210
    %v213 = vmul.f32 %v127, %v210
    %v214 = vadd.f32 %v212, 0.5
    %v215 = vadd.f32 %v213, 0.5
    %v216 = vmul.f32 %v214, 2.0
    %v217 = vmul.f32 %v215, 2.0
    %v218 = vfloor.f32 %v216
    %v219 = vfloor.f32 %v217
    %v220 = vmax.f32 %v218, 0.0
    %v221 = vmax.f32 %v219, 0.0
    %v222 = vmin.f32 %v220, 1.0
    %v223 = vmin.f32 %v221, 1.0
    %224 = vset.pattern.permute.xlu0 16
    %225 = vperm.xlu0 %224, %v40
    %v226 = vpop.permute.xlu0 %225
    %v228 = vmul.f32 %v148, %v226
    %v229 = vmul.f32 %v149, %v226
    %v230 = vadd.f32 %v228, 0.5
    %v231 = vadd.f32 %v229, 0.5
    %v232 = vmul.f32 %v230, 2.0
    %v233 = vmul.f32 %v231, 2.0
    %v234 = vfloor.f32 %v232
    %v235 = vfloor.f32 %v233
    %v236 = vmax.f32 %v234, 0.0
    %v237 = vmax.f32 %v235, 0.0
    %v238 = vmin.f32 %v236, 1.0
    %v239 = vmin.f32 %v237, 1.0
    %v240 = vmul.f32 %v222, %v238
    %v241 = vmul.f32 %v223, %v239
    %242 = vrot.lane.b32.xlu0 %v40, 3
    %v243 = vpop.permute.xlu0 %242
    %v245 = vsub.f32 %v40, %v243
    %246 = vrot.lane.b32.xlu0 %v40, 6
    %v247 = vpop.permute.xlu0 %246
    %v249 = vsub.f32 %v40, %v247
    %v250 = vsub.f32 %v249, %v243
    %251 = vrot.lane.b32.xlu0 %v40, 9
    %v252 = vpop.permute.xlu0 %251
    %v254 = vadd.f32 %v250, %v252
    %256 = vset.pattern.permute.xlu0 105
    %257 = vperm.xlu0 %256, %v245
    %v258 = vpop.permute.xlu0 %257
    %v260 = vmul.f32 %v222, %v258
    %v261 = vmul.f32 %v223, %v258
    %262 = vset.pattern.permute.xlu0 102
    %263 = vperm.xlu0 %262, %v40
    %v264 = vpop.permute.xlu0 %263
    %v266 = vadd.f32 %v264, %v260
    %v267 = vadd.f32 %v264, %v261
    %269 = vset.pattern.permute.xlu0 108
    %270 = vperm.xlu0 %269, %v249
    %v271 = vpop.permute.xlu0 %270
    %v273 = vmul.f32 %v238, %v271
    %v274 = vmul.f32 %v239, %v271
    %v275 = vadd.f32 %v266, %v273
    %v276 = vadd.f32 %v267, %v274
    %278 = vset.pattern.permute.xlu0 111
    %279 = vperm.xlu0 %278, %v254
    %v280 = vpop.permute.xlu0 %279
    %v282 = vmul.f32 %v240, %v280
    %v283 = vmul.f32 %v241, %v280
    %v284 = vadd.f32 %v275, %v282
    %v285 = vadd.f32 %v276, %v283
    %v286 = vmul.f32 %v200, %v284
    %v287 = vmul.f32 %v201, %v285
    %v288 = vadd.f32 %v286, 0.0
    %v289 = vadd.f32 %v287, 0.0
    %290 = vset.pattern.permute.xlu0 106
    %291 = vperm.xlu0 %290, %v245
    %v292 = vpop.permute.xlu0 %291
    %v294 = vmul.f32 %v222, %v292
    %v295 = vmul.f32 %v223, %v292
    %296 = vset.pattern.permute.xlu0 103
    %297 = vperm.xlu0 %296, %v40
    %v298 = vpop.permute.xlu0 %297
    %v300 = vadd.f32 %v298, %v294
    %v301 = vadd.f32 %v298, %v295
    %302 = vset.pattern.permute.xlu0 109
    %303 = vperm.xlu0 %302, %v249
    %v304 = vpop.permute.xlu0 %303
    %v306 = vmul.f32 %v238, %v304
    %v307 = vmul.f32 %v239, %v304
    %v308 = vadd.f32 %v300, %v306
    %v309 = vadd.f32 %v301, %v307
    %310 = vset.pattern.permute.xlu0 112
    %311 = vperm.xlu0 %310, %v254
    %v312 = vpop.permute.xlu0 %311
    %v314 = vmul.f32 %v240, %v312
    %v315 = vmul.f32 %v241, %v312
    %v316 = vadd.f32 %v308, %v314
    %v317 = vadd.f32 %v309, %v315
    %v318 = vmul.f32 %v200, %v316
    %v319 = vmul.f32 %v201, %v317
    %v320 = vadd.f32 %v318, 0.0
    %v321 = vadd.f32 %v319, 0.0
    %322 = vset.pattern.permute.xlu0 107
    %323 = vperm.xlu0 %322, %v245
    %v324 = vpop.permute.xlu0 %323
    %v326 = vmul.f32 %v222, %v324
    %v327 = vmul.f32 %v223, %v324
    %328 = vset.pattern.permute.xlu0 104
    %329 = vperm.xlu0 %328, %v40
    %v330 = vpop.permute.xlu0 %329
    %v332 = vadd.f32 %v330, %v326
    %v333 = vadd.f32 %v330, %v327
    %334 = vset.pattern.permute.xlu0 110
    %335 = vperm.xlu0 %334, %v249
    %v336 = vpop.permute.xlu0 %335
    %v338 = vmul.f32 %v238, %v336
    %v339 = vmul.f32 %v239, %v336
    %v340 = vadd.f32 %v332, %v338
    %v341 = vadd.f32 %v333, %v339
    %342 = vset.pattern.permute.xlu0 113
    %343 = vperm.xlu0 %342, %v254
    %v344 = vpop.permute.xlu0 %343
    %v346 = vmul.f32 %v240, %v344
    %v347 = vmul.f32 %v241, %v344
    %v348 = vadd.f32 %v340, %v346
    %v349 = vadd.f32 %v341, %v347
    %v350 = vmul.f32 %v200, %v348
    %v351 = vmul.f32 %v201, %v349
    %v352 = vadd.f32 %v350, 0.0
    %v353 = vadd.f32 %v351, 0.0
    %354 = vset.pattern.permute.xlu0 17
    %355 = vperm.xlu0 %354, %v40
    %v356 = vpop.permute.xlu0 %355
    %v358 = vmul.f32 %v356, %v34
    %v359 = vmul.f32 %v356, %v35
    %360 = vset.pattern.permute.xlu0 18
    %361 = vperm.xlu0 %360, %v40
    %v362 = vpop.permute.xlu0 %361
    %v364 = vmul.f32 %v362, %v38
    %v365 = vmul.f32 %v362, %v39
    %v366 = vadd.f32 %v358, %v364
    %v367 = vadd.f32 %v359, %v365
    %368 = vset.pattern.permute.xlu0 19
    %369 = vperm.xlu0 %368, %v40
    %v370 = vpop.permute.xlu0 %369
    %v372 = vadd.f32 %v366, %v370
    %v373 = vadd.f32 %v367, %v370
    %v374 = vand.u32 2147483647, %v372
    %v375 = vand.u32 2147483647, %v373
    %vm376 = vcmp.gt.f32.partialorder %v374, 1e-08
    %vm377 = vcmp.gt.f32.partialorder %v375, 1e-08
    %v378 = vsel %vm376, %v372, 1.0
    %v379 = vsel %vm377, %v373, 1.0
    %380 = vset.pattern.permute.xlu0 20
    %381 = vperm.xlu0 %380, %v40
    %v382 = vpop.permute.xlu0 %381
    %v384 = vrcp.pop %v378
    %v385 = vmul.f32 %v382, %v384
    %v386 = vrcp.pop %v379
    %v387 = vmul.f32 %v382, %v386
    %vm388 = vcmp.gt.f32.partialorder %v385, 1e-06
    %vm389 = vcmp.gt.f32.partialorder %v387, 1e-06
    %vm390 = vmand %vm376, %vm388
    %vm391 = vmand %vm377, %vm389
    %vm392 = vcmp.lt.f32.partialorder %v385, 100.0
    %vm393 = vcmp.lt.f32.partialorder %v387, 100.0
    %vm394 = vmand %vm390, %vm392
    %vm395 = vmand %vm391, %vm393
    %v396 = vmul.f32 %v385, %v34
    %v397 = vmul.f32 %v387, %v35
    %398 = vset.pattern.permute.xlu0 21
    %399 = vperm.xlu0 %398, %v40
    %v400 = vpop.permute.xlu0 %399
    %v402 = vsub.f32 %v396, %v400
    %v403 = vsub.f32 %v397, %v400
    %v404 = vmul.f32 %v385, %v38
    %v405 = vmul.f32 %v387, %v39
    %406 = vset.pattern.permute.xlu0 22
    %407 = vperm.xlu0 %406, %v40
    %v408 = vpop.permute.xlu0 %407
    %v410 = vsub.f32 %v404, %v408
    %v411 = vsub.f32 %v405, %v408
    %412 = vset.pattern.permute.xlu0 23
    %413 = vperm.xlu0 %412, %v40
    %v414 = vpop.permute.xlu0 %413
    %v416 = vsub.f32 %v385, %v414
    %v417 = vsub.f32 %v387, %v414
    %418 = vset.pattern.permute.xlu0 24
    %419 = vperm.xlu0 %418, %v40
    %v420 = vpop.permute.xlu0 %419
    %v422 = vmul.f32 %v420, %v402
    %v423 = vmul.f32 %v420, %v403
    %424 = vset.pattern.permute.xlu0 25
    %425 = vperm.xlu0 %424, %v40
    %v426 = vpop.permute.xlu0 %425
    %v428 = vmul.f32 %v426, %v410
    %v429 = vmul.f32 %v426, %v411
    %v430 = vadd.f32 %v422, %v428
    %v431 = vadd.f32 %v423, %v429
    %432 = vset.pattern.permute.xlu0 26
    %433 = vperm.xlu0 %432, %v40
    %v434 = vpop.permute.xlu0 %433
    %v436 = vmul.f32 %v434, %v416
    %v437 = vmul.f32 %v434, %v417
    %v438 = vadd.f32 %v430, %v436
    %v439 = vadd.f32 %v431, %v437
    %440 = vset.pattern.permute.xlu0 27
    %441 = vperm.xlu0 %440, %v40
    %v442 = vpop.permute.xlu0 %441
    %v444 = vmul.f32 %v442, %v402
    %v445 = vmul.f32 %v442, %v403
    %446 = vset.pattern.permute.xlu0 28
    %447 = vperm.xlu0 %446, %v40
    %v448 = vpop.permute.xlu0 %447
    %v450 = vmul.f32 %v448, %v410
    %v451 = vmul.f32 %v448, %v411
    %v452 = vadd.f32 %v444, %v450
    %v453 = vadd.f32 %v445, %v451
    %454 = vset.pattern.permute.xlu0 29
    %455 = vperm.xlu0 %454, %v40
    %v456 = vpop.permute.xlu0 %455
    %v458 = vmul.f32 %v456, %v416
    %v459 = vmul.f32 %v456, %v417
    %v460 = vadd.f32 %v452, %v458
    %v461 = vadd.f32 %v453, %v459
    %v462 = vand.u32 2147483647, %v438
    %v463 = vand.u32 2147483647, %v439
    %464 = vset.pattern.permute.xlu0 30
    %465 = vperm.xlu0 %464, %v40
    %v466 = vpop.permute.xlu0 %465
    %v468 = vsub.f32 %v466, %v462
    %v469 = vsub.f32 %v466, %v463
    %v470 = vand.u32 2147483647, %v460
    %v471 = vand.u32 2147483647, %v461
    %472 = vset.pattern.permute.xlu0 31
    %473 = vperm.xlu0 %472, %v40
    %v474 = vpop.permute.xlu0 %473
    %v476 = vsub.f32 %v474, %v470
    %v477 = vsub.f32 %v474, %v471
    %v478 = vmin.f32 %v468, %v476
    %v479 = vmin.f32 %v469, %v477
    %v480 = vmul.f32 %v478, 100.0
    %v481 = vmul.f32 %v479, 100.0
    %v482 = vxor.u32 %v480, 2147483648
    %v483 = vxor.u32 %v481, 2147483648
    %v484 = vmul.f32 %v482, 1.442695
    %v485 = vpow.pop %v484
    %v486 = vmul.f32 %v483, 1.442695
    %v487 = vpow.pop %v486
    %v488 = vadd.f32 %v485, 1.0
    %v489 = vadd.f32 %v487, 1.0
    %v490 = vrcp.pop %v488
    %v491 = vmul.f32 1.0, %v490
    %v492 = vrcp.pop %v489
    %v493 = vmul.f32 1.0, %v492
    %v494 = vsel %vm394, %v491, 0.0
    %v495 = vsel %vm395, %v493, 0.0
    %v496 = vsub.f32 1.0, %v494
    %v497 = vsub.f32 1.0, %v495
    %v498 = vmul.f32 %v184, %v496
    %v499 = vmul.f32 %v185, %v497
    %v500 = vsub.f32 100.0, %v385
    %v501 = vsub.f32 100.0, %v387
    %v502 = vmul.f32 %v500, 0.01
    %v503 = vmul.f32 %v501, 0.01
    %v504 = vmax.f32 %v502, 0.0
    %v505 = vmax.f32 %v503, 0.0
    %v506 = vmin.f32 %v504, 1.0
    %v507 = vmin.f32 %v505, 1.0
    %v508 = vmul.f32 %v506, 10.0
    %v509 = vmul.f32 %v507, 10.0
    %v510 = vmul.f32 %v508, 1.442695
    %v511 = vpow.pop %v510
    %v512 = vmul.f32 %v509, 1.442695
    %v513 = vpow.pop %v512
    %v514 = vmul.f32 %v494, %v511
    %v515 = vmul.f32 %v495, %v513
    %v516 = vadd.f32 %v202, %v514
    %v517 = vadd.f32 %v203, %v515
    %v518 = vmul.f32 %v514, %v385
    %v519 = vmul.f32 %v515, %v387
    %v520 = vadd.f32 %v206, %v518
    %v521 = vadd.f32 %v207, %v519
    %522 = vset.pattern.permute.xlu0 32
    %523 = vperm.xlu0 %522, %v40
    %v524 = vpop.permute.xlu0 %523
    %v526 = vmul.f32 %v438, %v524
    %v527 = vmul.f32 %v439, %v524
    %v528 = vadd.f32 %v526, 0.5
    %v529 = vadd.f32 %v527, 0.5
    %v530 = vmul.f32 %v528, 2.0
    %v531 = vmul.f32 %v529, 2.0
    %v532 = vfloor.f32 %v530
    %v533 = vfloor.f32 %v531
    %v534 = vmax.f32 %v532, 0.0
    %v535 = vmax.f32 %v533, 0.0
    %v536 = vmin.f32 %v534, 1.0
    %v537 = vmin.f32 %v535, 1.0
    %538 = vset.pattern.permute.xlu0 33
    %539 = vperm.xlu0 %538, %v40
    %v540 = vpop.permute.xlu0 %539
    %v542 = vmul.f32 %v460, %v540
    %v543 = vmul.f32 %v461, %v540
    %v544 = vadd.f32 %v542, 0.5
    %v545 = vadd.f32 %v543, 0.5
    %v546 = vmul.f32 %v544, 2.0
    %v547 = vmul.f32 %v545, 2.0
    %v548 = vfloor.f32 %v546
    %v549 = vfloor.f32 %v547
    %v550 = vmax.f32 %v548, 0.0
    %v551 = vmax.f32 %v549, 0.0
    %v552 = vmin.f32 %v550, 1.0
    %v553 = vmin.f32 %v551, 1.0
    %v554 = vmul.f32 %v536, %v552
    %v555 = vmul.f32 %v537, %v553
    %556 = vset.pattern.permute.xlu0 117
    %557 = vperm.xlu0 %556, %v245
    %v558 = vpop.permute.xlu0 %557
    %v560 = vmul.f32 %v536, %v558
    %v561 = vmul.f32 %v537, %v558
    %562 = vset.pattern.permute.xlu0 114
    %563 = vperm.xlu0 %562, %v40
    %v564 = vpop.permute.xlu0 %563
    %v566 = vadd.f32 %v564, %v560
    %v567 = vadd.f32 %v564, %v561
    %568 = vset.pattern.permute.xlu0 120
    %569 = vperm.xlu0 %568, %v249
    %v570 = vpop.permute.xlu0 %569
    %v572 = vmul.f32 %v552, %v570
    %v573 = vmul.f32 %v553, %v570
    %v574 = vadd.f32 %v566, %v572
    %v575 = vadd.f32 %v567, %v573
    %576 = vset.pattern.permute.xlu0 123
    %577 = vperm.xlu0 %576, %v254
    %v578 = vpop.permute.xlu0 %577
    %v580 = vmul.f32 %v554, %v578
    %v581 = vmul.f32 %v555, %v578
    %v582 = vadd.f32 %v574, %v580
    %v583 = vadd.f32 %v575, %v581
    %v584 = vmul.f32 %v514, %v582
    %v585 = vmul.f32 %v515, %v583
    %v586 = vadd.f32 %v288, %v584
    %v587 = vadd.f32 %v289, %v585
    %588 = vset.pattern.permute.xlu0 118
    %589 = vperm.xlu0 %588, %v245
    %v590 = vpop.permute.xlu0 %589
    %v592 = vmul.f32 %v536, %v590
    %v593 = vmul.f32 %v537, %v590
    %594 = vset.pattern.permute.xlu0 115
    %595 = vperm.xlu0 %594, %v40
    %v596 = vpop.permute.xlu0 %595
    %v598 = vadd.f32 %v596, %v592
    %v599 = vadd.f32 %v596, %v593
    %600 = vset.pattern.permute.xlu0 121
    %601 = vperm.xlu0 %600, %v249
    %v602 = vpop.permute.xlu0 %601
    %v604 = vmul.f32 %v552, %v602
    %v605 = vmul.f32 %v553, %v602
    %v606 = vadd.f32 %v598, %v604
    %v607 = vadd.f32 %v599, %v605
    %608 = vset.pattern.permute.xlu0 124
    %609 = vperm.xlu0 %608, %v254
    %v610 = vpop.permute.xlu0 %609
    %v612 = vmul.f32 %v554, %v610
    %v613 = vmul.f32 %v555, %v610
    %v614 = vadd.f32 %v606, %v612
    %v615 = vadd.f32 %v607, %v613
    %v616 = vmul.f32 %v514, %v614
    %v617 = vmul.f32 %v515, %v615
    %v618 = vadd.f32 %v320, %v616
    %v619 = vadd.f32 %v321, %v617
    %620 = vset.pattern.permute.xlu0 119
    %621 = vperm.xlu0 %620, %v245
    %v622 = vpop.permute.xlu0 %621
    %v624 = vmul.f32 %v536, %v622
    %v625 = vmul.f32 %v537, %v622
    %626 = vset.pattern.permute.xlu0 116
    %627 = vperm.xlu0 %626, %v40
    %v628 = vpop.permute.xlu0 %627
    %v630 = vadd.f32 %v628, %v624
    %v631 = vadd.f32 %v628, %v625
    %632 = vset.pattern.permute.xlu0 122
    %633 = vperm.xlu0 %632, %v249
    %v634 = vpop.permute.xlu0 %633
    %v636 = vmul.f32 %v552, %v634
    %v637 = vmul.f32 %v553, %v634
    %v638 = vadd.f32 %v630, %v636
    %v639 = vadd.f32 %v631, %v637
    %640 = vset.pattern.permute.xlu0 125
    %641 = vperm.xlu0 %640, %v254
    %v642 = vpop.permute.xlu0 %641
    %v644 = vmul.f32 %v554, %v642
    %v645 = vmul.f32 %v555, %v642
    %v646 = vadd.f32 %v638, %v644
    %v647 = vadd.f32 %v639, %v645
    %v648 = vmul.f32 %v514, %v646
    %v649 = vmul.f32 %v515, %v647
    %v650 = vadd.f32 %v352, %v648
    %v651 = vadd.f32 %v353, %v649
    %652 = vset.pattern.permute.xlu0 34
    %653 = vperm.xlu0 %652, %v40
    %v654 = vpop.permute.xlu0 %653
    %v656 = vmul.f32 %v654, %v34
    %v657 = vmul.f32 %v654, %v35
    %658 = vset.pattern.permute.xlu0 35
    %659 = vperm.xlu0 %658, %v40
    %v660 = vpop.permute.xlu0 %659
    %v662 = vmul.f32 %v660, %v38
    %v663 = vmul.f32 %v660, %v39
    %v664 = vadd.f32 %v656, %v662
    %v665 = vadd.f32 %v657, %v663
    %666 = vset.pattern.permute.xlu0 36
    %667 = vperm.xlu0 %666, %v40
    %v668 = vpop.permute.xlu0 %667
    %v670 = vadd.f32 %v664, %v668
    %v671 = vadd.f32 %v665, %v668
    %v672 = vand.u32 2147483647, %v670
    %v673 = vand.u32 2147483647, %v671
    %vm674 = vcmp.gt.f32.partialorder %v672, 1e-08
    %vm675 = vcmp.gt.f32.partialorder %v673, 1e-08
    %v676 = vsel %vm674, %v670, 1.0
    %v677 = vsel %vm675, %v671, 1.0
    %678 = vset.pattern.permute.xlu0 37
    %679 = vperm.xlu0 %678, %v40
    %v680 = vpop.permute.xlu0 %679
    %v682 = vrcp.pop %v676
    %v683 = vmul.f32 %v680, %v682
    %v684 = vrcp.pop %v677
    %v685 = vmul.f32 %v680, %v684
    %vm686 = vcmp.gt.f32.partialorder %v683, 1e-06
    %vm687 = vcmp.gt.f32.partialorder %v685, 1e-06
    %vm688 = vmand %vm674, %vm686
    %vm689 = vmand %vm675, %vm687
    %vm690 = vcmp.lt.f32.partialorder %v683, 100.0
    %vm691 = vcmp.lt.f32.partialorder %v685, 100.0
    %vm692 = vmand %vm688, %vm690
    %vm693 = vmand %vm689, %vm691
    %v694 = vmul.f32 %v683, %v34
    %v695 = vmul.f32 %v685, %v35
    %696 = vset.pattern.permute.xlu0 38
    %697 = vperm.xlu0 %696, %v40
    %v698 = vpop.permute.xlu0 %697
    %v700 = vsub.f32 %v694, %v698
    %v701 = vsub.f32 %v695, %v698
    %v702 = vmul.f32 %v683, %v38
    %v703 = vmul.f32 %v685, %v39
    %704 = vset.pattern.permute.xlu0 39
    %705 = vperm.xlu0 %704, %v40
    %v706 = vpop.permute.xlu0 %705
    %v708 = vsub.f32 %v702, %v706
    %v709 = vsub.f32 %v703, %v706
    %710 = vset.pattern.permute.xlu0 40
    %711 = vperm.xlu0 %710, %v40
    %v712 = vpop.permute.xlu0 %711
    %v714 = vsub.f32 %v683, %v712
    %v715 = vsub.f32 %v685, %v712
    %716 = vset.pattern.permute.xlu0 41
    %717 = vperm.xlu0 %716, %v40
    %v718 = vpop.permute.xlu0 %717
    %v720 = vmul.f32 %v718, %v700
    %v721 = vmul.f32 %v718, %v701
    %722 = vset.pattern.permute.xlu0 42
    %723 = vperm.xlu0 %722, %v40
    %v724 = vpop.permute.xlu0 %723
    %v726 = vmul.f32 %v724, %v708
    %v727 = vmul.f32 %v724, %v709
    %v728 = vadd.f32 %v720, %v726
    %v729 = vadd.f32 %v721, %v727
    %730 = vset.pattern.permute.xlu0 43
    %731 = vperm.xlu0 %730, %v40
    %v732 = vpop.permute.xlu0 %731
    %v734 = vmul.f32 %v732, %v714
    %v735 = vmul.f32 %v732, %v715
    %v736 = vadd.f32 %v728, %v734
    %v737 = vadd.f32 %v729, %v735
    %738 = vset.pattern.permute.xlu0 44
    %739 = vperm.xlu0 %738, %v40
    %v740 = vpop.permute.xlu0 %739
    %v742 = vmul.f32 %v740, %v700
    %v743 = vmul.f32 %v740, %v701
    %744 = vset.pattern.permute.xlu0 45
    %745 = vperm.xlu0 %744, %v40
    %v746 = vpop.permute.xlu0 %745
    %v748 = vmul.f32 %v746, %v708
    %v749 = vmul.f32 %v746, %v709
    %v750 = vadd.f32 %v742, %v748
    %v751 = vadd.f32 %v743, %v749
    %752 = vset.pattern.permute.xlu0 46
    %753 = vperm.xlu0 %752, %v40
    %v754 = vpop.permute.xlu0 %753
    %v756 = vmul.f32 %v754, %v714
    %v757 = vmul.f32 %v754, %v715
    %v758 = vadd.f32 %v750, %v756
    %v759 = vadd.f32 %v751, %v757
    %v760 = vand.u32 2147483647, %v736
    %v761 = vand.u32 2147483647, %v737
    %762 = vset.pattern.permute.xlu0 47
    %763 = vperm.xlu0 %762, %v40
    %v764 = vpop.permute.xlu0 %763
    %v766 = vsub.f32 %v764, %v760
    %v767 = vsub.f32 %v764, %v761
    %v768 = vand.u32 2147483647, %v758
    %v769 = vand.u32 2147483647, %v759
    %770 = vset.pattern.permute.xlu0 48
    %771 = vperm.xlu0 %770, %v40
    %v772 = vpop.permute.xlu0 %771
    %v774 = vsub.f32 %v772, %v768
    %v775 = vsub.f32 %v772, %v769
    %v776 = vmin.f32 %v766, %v774
    %v777 = vmin.f32 %v767, %v775
    %v778 = vmul.f32 %v776, 100.0
    %v779 = vmul.f32 %v777, 100.0
    %v780 = vxor.u32 %v778, 2147483648
    %v781 = vxor.u32 %v779, 2147483648
    %v782 = vmul.f32 %v780, 1.442695
    %v783 = vpow.pop %v782
    %v784 = vmul.f32 %v781, 1.442695
    %v785 = vpow.pop %v784
    %v786 = vadd.f32 %v783, 1.0
    %v787 = vadd.f32 %v785, 1.0
    %v788 = vrcp.pop %v786
    %v789 = vmul.f32 1.0, %v788
    %v790 = vrcp.pop %v787
    %v791 = vmul.f32 1.0, %v790
    %v792 = vsel %vm692, %v789, 0.0
    %v793 = vsel %vm693, %v791, 0.0
    %v794 = vsub.f32 1.0, %v792
    %v795 = vsub.f32 1.0, %v793
    %v796 = vmul.f32 %v498, %v794
    %v797 = vmul.f32 %v499, %v795
    %v798 = vsub.f32 100.0, %v683
    %v799 = vsub.f32 100.0, %v685
    %v800 = vmul.f32 %v798, 0.01
    %v801 = vmul.f32 %v799, 0.01
    %v802 = vmax.f32 %v800, 0.0
    %v803 = vmax.f32 %v801, 0.0
    %v804 = vmin.f32 %v802, 1.0
    %v805 = vmin.f32 %v803, 1.0
    %v806 = vmul.f32 %v804, 10.0
    %v807 = vmul.f32 %v805, 10.0
    %v808 = vmul.f32 %v806, 1.442695
    %v809 = vpow.pop %v808
    %v810 = vmul.f32 %v807, 1.442695
    %v811 = vpow.pop %v810
    %v812 = vmul.f32 %v792, %v809
    %v813 = vmul.f32 %v793, %v811
    %v814 = vadd.f32 %v516, %v812
    %v815 = vadd.f32 %v517, %v813
    %v816 = vmul.f32 %v812, %v683
    %v817 = vmul.f32 %v813, %v685
    %v818 = vadd.f32 %v520, %v816
    %v819 = vadd.f32 %v521, %v817
    %820 = vset.pattern.permute.xlu0 49
    %821 = vperm.xlu0 %820, %v40
    %v822 = vpop.permute.xlu0 %821
    %v824 = vmul.f32 %v736, %v822
    %v825 = vmul.f32 %v737, %v822
    %v826 = vadd.f32 %v824, 0.5
    %v827 = vadd.f32 %v825, 0.5
    %v828 = vmul.f32 %v826, 2.0
    %v829 = vmul.f32 %v827, 2.0
    %v830 = vfloor.f32 %v828
    %v831 = vfloor.f32 %v829
    %v832 = vmax.f32 %v830, 0.0
    %v833 = vmax.f32 %v831, 0.0
    %v834 = vmin.f32 %v832, 1.0
    %v835 = vmin.f32 %v833, 1.0
    %836 = vset.pattern.permute.xlu0 50
    %837 = vperm.xlu0 %836, %v40
    %v838 = vpop.permute.xlu0 %837
    %v840 = vmul.f32 %v758, %v838
    %v841 = vmul.f32 %v759, %v838
    %v842 = vadd.f32 %v840, 0.5
    %v843 = vadd.f32 %v841, 0.5
    %v844 = vmul.f32 %v842, 2.0
    %v845 = vmul.f32 %v843, 2.0
    %v846 = vfloor.f32 %v844
    %v847 = vfloor.f32 %v845
    %v848 = vmax.f32 %v846, 0.0
    %v849 = vmax.f32 %v847, 0.0
    %v850 = vmin.f32 %v848, 1.0
    %v851 = vmin.f32 %v849, 1.0
    %v852 = vmul.f32 %v834, %v850
    %v853 = vmul.f32 %v835, %v851
    %v854 = vld [vmem:[#allocation2 + $0x8] sm:$0xff]
    %v855 = vsub.f32 %v854, %v243
    %v856 = vsub.f32 %v854, %v247
    %858 = vrot.lane.b32.xlu0 %v854, 6
    %v859 = vpop.permute.xlu0 %858
    %v861 = vsub.f32 %v854, %v859
    %862 = vrot.lane.b32.xlu0 %v854, 3
    %v863 = vpop.permute.xlu0 %862
    %v865 = vsub.f32 %v861, %v863
    %v866 = vadd.f32 %v865, %v252
    %868 = vset.pattern.permute.xlu0 1
    %869 = vperm.xlu0 %868, %v855
    %v870 = vpop.permute.xlu0 %869
    %v872 = vmul.f32 %v834, %v870
    %v873 = vmul.f32 %v835, %v870
    %874 = vset.pattern.permute.xlu0 126
    %875 = vperm.xlu0 %874, %v40
    %v876 = vpop.permute.xlu0 %875
    %v878 = vadd.f32 %v876, %v872
    %v879 = vadd.f32 %v876, %v873
    %881 = vset.pattern.permute.xlu0 4
    %882 = vperm.xlu0 %881, %v856
    %v883 = vpop.permute.xlu0 %882
    %v885 = vmul.f32 %v850, %v883
    %v886 = vmul.f32 %v851, %v883
    %v887 = vadd.f32 %v878, %v885
    %v888 = vadd.f32 %v879, %v886
    %890 = vset.pattern.permute.xlu0 7
    %891 = vperm.xlu0 %890, %v866
    %v892 = vpop.permute.xlu0 %891
    %v894 = vmul.f32 %v852, %v892
    %v895 = vmul.f32 %v853, %v892
    %v896 = vadd.f32 %v887, %v894
    %v897 = vadd.f32 %v888, %v895
    %v898 = vmul.f32 %v812, %v896
    %v899 = vmul.f32 %v813, %v897
    %v900 = vadd.f32 %v586, %v898
    %v901 = vadd.f32 %v587, %v899
    %902 = vset.pattern.permute.xlu0 2
    %903 = vperm.xlu0 %902, %v855
    %v904 = vpop.permute.xlu0 %903
    %v906 = vmul.f32 %v834, %v904
    %v907 = vmul.f32 %v835, %v904
    %908 = vset.pattern.permute.xlu0 127
    %909 = vperm.xlu0 %908, %v40
    %v910 = vpop.permute.xlu0 %909
    %v912 = vadd.f32 %v910, %v906
    %v913 = vadd.f32 %v910, %v907
    %914 = vset.pattern.permute.xlu0 5
    %915 = vperm.xlu0 %914, %v856
    %v916 = vpop.permute.xlu0 %915
    %v918 = vmul.f32 %v850, %v916
    %v919 = vmul.f32 %v851, %v916
    %v920 = vadd.f32 %v912, %v918
    %v921 = vadd.f32 %v913, %v919
    %922 = vset.pattern.permute.xlu0 8
    %923 = vperm.xlu0 %922, %v866
    %v924 = vpop.permute.xlu0 %923
    %v926 = vmul.f32 %v852, %v924
    %v927 = vmul.f32 %v853, %v924
    %v928 = vadd.f32 %v920, %v926
    %v929 = vadd.f32 %v921, %v927
    %v930 = vmul.f32 %v812, %v928
    %v931 = vmul.f32 %v813, %v929
    %v932 = vadd.f32 %v618, %v930
    %v933 = vadd.f32 %v619, %v931
    %v934 = vsub.f32 %v854, %v863
    %935 = vrot.lane.b32.xlu0 %v854, 9
    %v936 = vpop.permute.xlu0 %935
    %v938 = vadd.f32 %v865, %v936
    %940 = vset.pattern.permute.xlu0 3
    %941 = vperm.xlu0 %940, %v934
    %v942 = vpop.permute.xlu0 %941
    %v944 = vmul.f32 %v834, %v942
    %v945 = vmul.f32 %v835, %v942
    %946 = vset.pattern.permute.xlu0 0
    %947 = vperm.xlu0 %946, %v854
    %v948 = vpop.permute.xlu0 %947
    %v950 = vadd.f32 %v948, %v944
    %v951 = vadd.f32 %v948, %v945
    %953 = vset.pattern.permute.xlu0 6
    %954 = vperm.xlu0 %953, %v861
    %v955 = vpop.permute.xlu0 %954
    %v957 = vmul.f32 %v850, %v955
    %v958 = vmul.f32 %v851, %v955
    %v959 = vadd.f32 %v950, %v957
    %v960 = vadd.f32 %v951, %v958
    %962 = vset.pattern.permute.xlu0 9
    %963 = vperm.xlu0 %962, %v938
    %v964 = vpop.permute.xlu0 %963
    %v966 = vmul.f32 %v852, %v964
    %v967 = vmul.f32 %v853, %v964
    %v968 = vadd.f32 %v959, %v966
    %v969 = vadd.f32 %v960, %v967
    %v970 = vmul.f32 %v812, %v968
    %v971 = vmul.f32 %v813, %v969
    %v972 = vadd.f32 %v650, %v970
    %v973 = vadd.f32 %v651, %v971
    %974 = vset.pattern.permute.xlu0 51
    %975 = vperm.xlu0 %974, %v40
    %v976 = vpop.permute.xlu0 %975
    %v978 = vmul.f32 %v976, %v34
    %v979 = vmul.f32 %v976, %v35
    %980 = vset.pattern.permute.xlu0 52
    %981 = vperm.xlu0 %980, %v40
    %v982 = vpop.permute.xlu0 %981
    %v984 = vmul.f32 %v982, %v38
    %v985 = vmul.f32 %v982, %v39
    %v986 = vadd.f32 %v978, %v984
    %v987 = vadd.f32 %v979, %v985
    %988 = vset.pattern.permute.xlu0 53
    %989 = vperm.xlu0 %988, %v40
    %v990 = vpop.permute.xlu0 %989
    %v992 = vadd.f32 %v986, %v990
    %v993 = vadd.f32 %v987, %v990
    %v994 = vand.u32 2147483647, %v992
    %v995 = vand.u32 2147483647, %v993
    %vm996 = vcmp.gt.f32.partialorder %v994, 1e-08
    %vm997 = vcmp.gt.f32.partialorder %v995, 1e-08
    %v998 = vsel %vm996, %v992, 1.0
    %v999 = vsel %vm997, %v993, 1.0
    %1000 = vset.pattern.permute.xlu0 54
    %1001 = vperm.xlu0 %1000, %v40
    %v1002 = vpop.permute.xlu0 %1001
    %v1004 = vrcp.pop %v998
    %v1005 = vmul.f32 %v1002, %v1004
    %v1006 = vrcp.pop %v999
    %v1007 = vmul.f32 %v1002, %v1006
    %vm1008 = vcmp.gt.f32.partialorder %v1005, 1e-06
    %vm1009 = vcmp.gt.f32.partialorder %v1007, 1e-06
    %vm1010 = vmand %vm996, %vm1008
    %vm1011 = vmand %vm997, %vm1009
    %vm1012 = vcmp.lt.f32.partialorder %v1005, 100.0
    %vm1013 = vcmp.lt.f32.partialorder %v1007, 100.0
    %vm1014 = vmand %vm1010, %vm1012
    %vm1015 = vmand %vm1011, %vm1013
    %v1016 = vmul.f32 %v1005, %v34
    %v1017 = vmul.f32 %v1007, %v35
    %1018 = vset.pattern.permute.xlu0 55
    %1019 = vperm.xlu0 %1018, %v40
    %v1020 = vpop.permute.xlu0 %1019
    %v1022 = vsub.f32 %v1016, %v1020
    %v1023 = vsub.f32 %v1017, %v1020
    %v1024 = vmul.f32 %v1005, %v38
    %v1025 = vmul.f32 %v1007, %v39
    %1026 = vset.pattern.permute.xlu0 56
    %1027 = vperm.xlu0 %1026, %v40
    %v1028 = vpop.permute.xlu0 %1027
    %v1030 = vsub.f32 %v1024, %v1028
    %v1031 = vsub.f32 %v1025, %v1028
    %1032 = vset.pattern.permute.xlu0 57
    %1033 = vperm.xlu0 %1032, %v40
    %v1034 = vpop.permute.xlu0 %1033
    %v1036 = vsub.f32 %v1005, %v1034
    %v1037 = vsub.f32 %v1007, %v1034
    %1038 = vset.pattern.permute.xlu0 58
    %1039 = vperm.xlu0 %1038, %v40
    %v1040 = vpop.permute.xlu0 %1039
    %v1042 = vmul.f32 %v1040, %v1022
    %v1043 = vmul.f32 %v1040, %v1023
    %1044 = vset.pattern.permute.xlu0 59
    %1045 = vperm.xlu0 %1044, %v40
    %v1046 = vpop.permute.xlu0 %1045
    %v1048 = vmul.f32 %v1046, %v1030
    %v1049 = vmul.f32 %v1046, %v1031
    %v1050 = vadd.f32 %v1042, %v1048
    %v1051 = vadd.f32 %v1043, %v1049
    %1052 = vset.pattern.permute.xlu0 60
    %1053 = vperm.xlu0 %1052, %v40
    %v1054 = vpop.permute.xlu0 %1053
    %v1056 = vmul.f32 %v1054, %v1036
    %v1057 = vmul.f32 %v1054, %v1037
    %v1058 = vadd.f32 %v1050, %v1056
    %v1059 = vadd.f32 %v1051, %v1057
    %1060 = vset.pattern.permute.xlu0 61
    %1061 = vperm.xlu0 %1060, %v40
    %v1062 = vpop.permute.xlu0 %1061
    %v1064 = vmul.f32 %v1062, %v1022
    %v1065 = vmul.f32 %v1062, %v1023
    %1066 = vset.pattern.permute.xlu0 62
    %1067 = vperm.xlu0 %1066, %v40
    %v1068 = vpop.permute.xlu0 %1067
    %v1070 = vmul.f32 %v1068, %v1030
    %v1071 = vmul.f32 %v1068, %v1031
    %v1072 = vadd.f32 %v1064, %v1070
    %v1073 = vadd.f32 %v1065, %v1071
    %1074 = vset.pattern.permute.xlu0 63
    %1075 = vperm.xlu0 %1074, %v40
    %v1076 = vpop.permute.xlu0 %1075
    %v1078 = vmul.f32 %v1076, %v1036
    %v1079 = vmul.f32 %v1076, %v1037
    %v1080 = vadd.f32 %v1072, %v1078
    %v1081 = vadd.f32 %v1073, %v1079
    %v1082 = vand.u32 2147483647, %v1058
    %v1083 = vand.u32 2147483647, %v1059
    %1084 = vset.pattern.permute.xlu0 64
    %1085 = vperm.xlu0 %1084, %v40
    %v1086 = vpop.permute.xlu0 %1085
    %v1088 = vsub.f32 %v1086, %v1082
    %v1089 = vsub.f32 %v1086, %v1083
    %v1090 = vand.u32 2147483647, %v1080
    %v1091 = vand.u32 2147483647, %v1081
    %1092 = vset.pattern.permute.xlu0 65
    %1093 = vperm.xlu0 %1092, %v40
    %v1094 = vpop.permute.xlu0 %1093
    %v1096 = vsub.f32 %v1094, %v1090
    %v1097 = vsub.f32 %v1094, %v1091
    %v1098 = vmin.f32 %v1088, %v1096
    %v1099 = vmin.f32 %v1089, %v1097
    %v1100 = vmul.f32 %v1098, 100.0
    %v1101 = vmul.f32 %v1099, 100.0
    %v1102 = vxor.u32 %v1100, 2147483648
    %v1103 = vxor.u32 %v1101, 2147483648
    %v1104 = vmul.f32 %v1102, 1.442695
    %v1105 = vpow.pop %v1104
    %v1106 = vmul.f32 %v1103, 1.442695
    %v1107 = vpow.pop %v1106
    %v1108 = vadd.f32 %v1105, 1.0
    %v1109 = vadd.f32 %v1107, 1.0
    %v1110 = vrcp.pop %v1108
    %v1111 = vmul.f32 1.0, %v1110
    %v1112 = vrcp.pop %v1109
    %v1113 = vmul.f32 1.0, %v1112
    %v1114 = vsel %vm1014, %v1111, 0.0
    %v1115 = vsel %vm1015, %v1113, 0.0
    %v1116 = vsub.f32 1.0, %v1114
    %v1117 = vsub.f32 1.0, %v1115
    %v1118 = vmul.f32 %v796, %v1116
    %v1119 = vmul.f32 %v797, %v1117
    %v1120 = vsub.f32 100.0, %v1005
    %v1121 = vsub.f32 100.0, %v1007
    %v1122 = vmul.f32 %v1120, 0.01
    %v1123 = vmul.f32 %v1121, 0.01
    %v1124 = vmax.f32 %v1122, 0.0
    %v1125 = vmax.f32 %v1123, 0.0
    %v1126 = vmin.f32 %v1124, 1.0
    %v1127 = vmin.f32 %v1125, 1.0
    %v1128 = vmul.f32 %v1126, 10.0
    %v1129 = vmul.f32 %v1127, 10.0
    %v1130 = vmul.f32 %v1128, 1.442695
    %v1131 = vpow.pop %v1130
    %v1132 = vmul.f32 %v1129, 1.442695
    %v1133 = vpow.pop %v1132
    %v1134 = vmul.f32 %v1114, %v1131
    %v1135 = vmul.f32 %v1115, %v1133
    %v1136 = vadd.f32 %v814, %v1134
    %v1137 = vadd.f32 %v815, %v1135
    %v1138 = vmul.f32 %v1134, %v1005
    %v1139 = vmul.f32 %v1135, %v1007
    %v1140 = vadd.f32 %v818, %v1138
    %v1141 = vadd.f32 %v819, %v1139
    %1142 = vset.pattern.permute.xlu0 66
    %1143 = vperm.xlu0 %1142, %v40
    %v1144 = vpop.permute.xlu0 %1143
    %v1146 = vmul.f32 %v1058, %v1144
    %v1147 = vmul.f32 %v1059, %v1144
    %v1148 = vadd.f32 %v1146, 0.5
    %v1149 = vadd.f32 %v1147, 0.5
    %v1150 = vmul.f32 %v1148, 2.0
    %v1151 = vmul.f32 %v1149, 2.0
    %v1152 = vfloor.f32 %v1150
    %v1153 = vfloor.f32 %v1151
    %v1154 = vmax.f32 %v1152, 0.0
    %v1155 = vmax.f32 %v1153, 0.0
    %v1156 = vmin.f32 %v1154, 1.0
    %v1157 = vmin.f32 %v1155, 1.0
    %1158 = vset.pattern.permute.xlu0 67
    %1159 = vperm.xlu0 %1158, %v40
    %v1160 = vpop.permute.xlu0 %1159
    %v1162 = vmul.f32 %v1080, %v1160
    %v1163 = vmul.f32 %v1081, %v1160
    %v1164 = vadd.f32 %v1162, 0.5
    %v1165 = vadd.f32 %v1163, 0.5
    %v1166 = vmul.f32 %v1164, 2.0
    %v1167 = vmul.f32 %v1165, 2.0
    %v1168 = vfloor.f32 %v1166
    %v1169 = vfloor.f32 %v1167
    %v1170 = vmax.f32 %v1168, 0.0
    %v1171 = vmax.f32 %v1169, 0.0
    %v1172 = vmin.f32 %v1170, 1.0
    %v1173 = vmin.f32 %v1171, 1.0
    %v1174 = vmul.f32 %v1156, %v1172
    %v1175 = vmul.f32 %v1157, %v1173
    %1176 = vset.pattern.permute.xlu0 13
    %1177 = vperm.xlu0 %1176, %v934
    %v1178 = vpop.permute.xlu0 %1177
    %v1180 = vmul.f32 %v1156, %v1178
    %v1181 = vmul.f32 %v1157, %v1178
    %1182 = vset.pattern.permute.xlu0 10
    %1183 = vperm.xlu0 %1182, %v854
    %v1184 = vpop.permute.xlu0 %1183
    %v1186 = vadd.f32 %v1184, %v1180
    %v1187 = vadd.f32 %v1184, %v1181
    %1188 = vset.pattern.permute.xlu0 16
    %1189 = vperm.xlu0 %1188, %v861
    %v1190 = vpop.permute.xlu0 %1189
    %v1192 = vmul.f32 %v1172, %v1190
    %v1193 = vmul.f32 %v1173, %v1190
    %v1194 = vadd.f32 %v1186, %v1192
    %v1195 = vadd.f32 %v1187, %v1193
    %1196 = vset.pattern.permute.xlu0 19
    %1197 = vperm.xlu0 %1196, %v938
    %v1198 = vpop.permute.xlu0 %1197
    %v1200 = vmul.f32 %v1174, %v1198
    %v1201 = vmul.f32 %v1175, %v1198
    %v1202 = vadd.f32 %v1194, %v1200
    %v1203 = vadd.f32 %v1195, %v1201
    %v1204 = vmul.f32 %v1134, %v1202
    %v1205 = vmul.f32 %v1135, %v1203
    %v1206 = vadd.f32 %v900, %v1204
    %v1207 = vadd.f32 %v901, %v1205
    %1208 = vset.pattern.permute.xlu0 14
    %1209 = vperm.xlu0 %1208, %v934
    %v1210 = vpop.permute.xlu0 %1209
    %v1212 = vmul.f32 %v1156, %v1210
    %v1213 = vmul.f32 %v1157, %v1210
    %1214 = vset.pattern.permute.xlu0 11
    %1215 = vperm.xlu0 %1214, %v854
    %v1216 = vpop.permute.xlu0 %1215
    %v1218 = vadd.f32 %v1216, %v1212
    %v1219 = vadd.f32 %v1216, %v1213
    %1220 = vset.pattern.permute.xlu0 17
    %1221 = vperm.xlu0 %1220, %v861
    %v1222 = vpop.permute.xlu0 %1221
    %v1224 = vmul.f32 %v1172, %v1222
    %v1225 = vmul.f32 %v1173, %v1222
    %v1226 = vadd.f32 %v1218, %v1224
    %v1227 = vadd.f32 %v1219, %v1225
    %1228 = vset.pattern.permute.xlu0 20
    %1229 = vperm.xlu0 %1228, %v938
    %v1230 = vpop.permute.xlu0 %1229
    %v1232 = vmul.f32 %v1174, %v1230
    %v1233 = vmul.f32 %v1175, %v1230
    %v1234 = vadd.f32 %v1226, %v1232
    %v1235 = vadd.f32 %v1227, %v1233
    %v1236 = vmul.f32 %v1134, %v1234
    %v1237 = vmul.f32 %v1135, %v1235
    %v1238 = vadd.f32 %v932, %v1236
    %v1239 = vadd.f32 %v933, %v1237
    %1240 = vset.pattern.permute.xlu0 15
    %1241 = vperm.xlu0 %1240, %v934
    %v1242 = vpop.permute.xlu0 %1241
    %v1244 = vmul.f32 %v1156, %v1242
    %v1245 = vmul.f32 %v1157, %v1242
    %1246 = vset.pattern.permute.xlu0 12
    %1247 = vperm.xlu0 %1246, %v854
    %v1248 = vpop.permute.xlu0 %1247
    %v1250 = vadd.f32 %v1248, %v1244
    %v1251 = vadd.f32 %v1248, %v1245
    %1252 = vset.pattern.permute.xlu0 18
    %1253 = vperm.xlu0 %1252, %v861
    %v1254 = vpop.permute.xlu0 %1253
    %v1256 = vmul.f32 %v1172, %v1254
    %v1257 = vmul.f32 %v1173, %v1254
    %v1258 = vadd.f32 %v1250, %v1256
    %v1259 = vadd.f32 %v1251, %v1257
    %1260 = vset.pattern.permute.xlu0 21
    %1261 = vperm.xlu0 %1260, %v938
    %v1262 = vpop.permute.xlu0 %1261
    %v1264 = vmul.f32 %v1174, %v1262
    %v1265 = vmul.f32 %v1175, %v1262
    %v1266 = vadd.f32 %v1258, %v1264
    %v1267 = vadd.f32 %v1259, %v1265
    %v1268 = vmul.f32 %v1134, %v1266
    %v1269 = vmul.f32 %v1135, %v1267
    %v1270 = vadd.f32 %v972, %v1268
    %v1271 = vadd.f32 %v973, %v1269
    %1272 = vset.pattern.permute.xlu0 68
    %1273 = vperm.xlu0 %1272, %v40
    %v1274 = vpop.permute.xlu0 %1273
    %v1276 = vmul.f32 %v1274, %v34
    %v1277 = vmul.f32 %v1274, %v35
    %1278 = vset.pattern.permute.xlu0 69
    %1279 = vperm.xlu0 %1278, %v40
    %v1280 = vpop.permute.xlu0 %1279
    %v1282 = vmul.f32 %v1280, %v38
    %v1283 = vmul.f32 %v1280, %v39
    %v1284 = vadd.f32 %v1276, %v1282
    %v1285 = vadd.f32 %v1277, %v1283
    %1286 = vset.pattern.permute.xlu0 70
    %1287 = vperm.xlu0 %1286, %v40
    %v1288 = vpop.permute.xlu0 %1287
    %v1290 = vadd.f32 %v1284, %v1288
    %v1291 = vadd.f32 %v1285, %v1288
    %v1292 = vand.u32 2147483647, %v1290
    %v1293 = vand.u32 2147483647, %v1291
    %vm1294 = vcmp.gt.f32.partialorder %v1292, 1e-08
    %vm1295 = vcmp.gt.f32.partialorder %v1293, 1e-08
    %v1296 = vsel %vm1294, %v1290, 1.0
    %v1297 = vsel %vm1295, %v1291, 1.0
    %1298 = vset.pattern.permute.xlu0 71
    %1299 = vperm.xlu0 %1298, %v40
    %v1300 = vpop.permute.xlu0 %1299
    %v1302 = vrcp.pop %v1296
    %v1303 = vmul.f32 %v1300, %v1302
    %v1304 = vrcp.pop %v1297
    %v1305 = vmul.f32 %v1300, %v1304
    %vm1306 = vcmp.gt.f32.partialorder %v1303, 1e-06
    %vm1307 = vcmp.gt.f32.partialorder %v1305, 1e-06
    %vm1308 = vmand %vm1294, %vm1306
    %vm1309 = vmand %vm1295, %vm1307
    %vm1310 = vcmp.lt.f32.partialorder %v1303, 100.0
    %vm1311 = vcmp.lt.f32.partialorder %v1305, 100.0
    %vm1312 = vmand %vm1308, %vm1310
    %vm1313 = vmand %vm1309, %vm1311
    %v1314 = vmul.f32 %v1303, %v34
    %v1315 = vmul.f32 %v1305, %v35
    %1316 = vset.pattern.permute.xlu0 72
    %1317 = vperm.xlu0 %1316, %v40
    %v1318 = vpop.permute.xlu0 %1317
    %v1320 = vsub.f32 %v1314, %v1318
    %v1321 = vsub.f32 %v1315, %v1318
    %v1322 = vmul.f32 %v1303, %v38
    %v1323 = vmul.f32 %v1305, %v39
    %1324 = vset.pattern.permute.xlu0 73
    %1325 = vperm.xlu0 %1324, %v40
    %v1326 = vpop.permute.xlu0 %1325
    %v1328 = vsub.f32 %v1322, %v1326
    %v1329 = vsub.f32 %v1323, %v1326
    %1330 = vset.pattern.permute.xlu0 74
    %1331 = vperm.xlu0 %1330, %v40
    %v1332 = vpop.permute.xlu0 %1331
    %v1334 = vsub.f32 %v1303, %v1332
    %v1335 = vsub.f32 %v1305, %v1332
    %1336 = vset.pattern.permute.xlu0 75
    %1337 = vperm.xlu0 %1336, %v40
    %v1338 = vpop.permute.xlu0 %1337
    %v1340 = vmul.f32 %v1338, %v1320
    %v1341 = vmul.f32 %v1338, %v1321
    %1342 = vset.pattern.permute.xlu0 76
    %1343 = vperm.xlu0 %1342, %v40
    %v1344 = vpop.permute.xlu0 %1343
    %v1346 = vmul.f32 %v1344, %v1328
    %v1347 = vmul.f32 %v1344, %v1329
    %v1348 = vadd.f32 %v1340, %v1346
    %v1349 = vadd.f32 %v1341, %v1347
    %1350 = vset.pattern.permute.xlu0 77
    %1351 = vperm.xlu0 %1350, %v40
    %v1352 = vpop.permute.xlu0 %1351
    %v1354 = vmul.f32 %v1352, %v1334
    %v1355 = vmul.f32 %v1352, %v1335
    %v1356 = vadd.f32 %v1348, %v1354
    %v1357 = vadd.f32 %v1349, %v1355
    %1358 = vset.pattern.permute.xlu0 78
    %1359 = vperm.xlu0 %1358, %v40
    %v1360 = vpop.permute.xlu0 %1359
    %v1362 = vmul.f32 %v1360, %v1320
    %v1363 = vmul.f32 %v1360, %v1321
    %1364 = vset.pattern.permute.xlu0 79
    %1365 = vperm.xlu0 %1364, %v40
    %v1366 = vpop.permute.xlu0 %1365
    %v1368 = vmul.f32 %v1366, %v1328
    %v1369 = vmul.f32 %v1366, %v1329
    %v1370 = vadd.f32 %v1362, %v1368
    %v1371 = vadd.f32 %v1363, %v1369
    %1372 = vset.pattern.permute.xlu0 80
    %1373 = vperm.xlu0 %1372, %v40
    %v1374 = vpop.permute.xlu0 %1373
    %v1376 = vmul.f32 %v1374, %v1334
    %v1377 = vmul.f32 %v1374, %v1335
    %v1378 = vadd.f32 %v1370, %v1376
    %v1379 = vadd.f32 %v1371, %v1377
    %v1380 = vand.u32 2147483647, %v1356
    %v1381 = vand.u32 2147483647, %v1357
    %1382 = vset.pattern.permute.xlu0 81
    %1383 = vperm.xlu0 %1382, %v40
    %v1384 = vpop.permute.xlu0 %1383
    %v1386 = vsub.f32 %v1384, %v1380
    %v1387 = vsub.f32 %v1384, %v1381
    %v1388 = vand.u32 2147483647, %v1378
    %v1389 = vand.u32 2147483647, %v1379
    %1390 = vset.pattern.permute.xlu0 82
    %1391 = vperm.xlu0 %1390, %v40
    %v1392 = vpop.permute.xlu0 %1391
    %v1394 = vsub.f32 %v1392, %v1388
    %v1395 = vsub.f32 %v1392, %v1389
    %v1396 = vmin.f32 %v1386, %v1394
    %v1397 = vmin.f32 %v1387, %v1395
    %v1398 = vmul.f32 %v1396, 100.0
    %v1399 = vmul.f32 %v1397, 100.0
    %v1400 = vxor.u32 %v1398, 2147483648
    %v1401 = vxor.u32 %v1399, 2147483648
    %v1402 = vmul.f32 %v1400, 1.442695
    %v1403 = vpow.pop %v1402
    %v1404 = vmul.f32 %v1401, 1.442695
    %v1405 = vpow.pop %v1404
    %v1406 = vadd.f32 %v1403, 1.0
    %v1407 = vadd.f32 %v1405, 1.0
    %v1408 = vrcp.pop %v1406
    %v1409 = vmul.f32 1.0, %v1408
    %v1410 = vrcp.pop %v1407
    %v1411 = vmul.f32 1.0, %v1410
    %v1412 = vsel %vm1312, %v1409, 0.0
    %v1413 = vsel %vm1313, %v1411, 0.0
    %v1414 = vsub.f32 1.0, %v1412
    %v1415 = vsub.f32 1.0, %v1413
    %v1416 = vmul.f32 %v1118, %v1414
    %v1417 = vmul.f32 %v1119, %v1415
    %v1418 = vsub.f32 100.0, %v1303
    %v1419 = vsub.f32 100.0, %v1305
    %v1420 = vmul.f32 %v1418, 0.01
    %v1421 = vmul.f32 %v1419, 0.01
    %v1422 = vmax.f32 %v1420, 0.0
    %v1423 = vmax.f32 %v1421, 0.0
    %v1424 = vmin.f32 %v1422, 1.0
    %v1425 = vmin.f32 %v1423, 1.0
    %v1426 = vmul.f32 %v1424, 10.0
    %v1427 = vmul.f32 %v1425, 10.0
    %v1428 = vmul.f32 %v1426, 1.442695
    %v1429 = vpow.pop %v1428
    %v1430 = vmul.f32 %v1427, 1.442695
    %v1431 = vpow.pop %v1430
    %v1432 = vmul.f32 %v1412, %v1429
    %v1433 = vmul.f32 %v1413, %v1431
    %v1434 = vadd.f32 %v1136, %v1432
    %v1435 = vadd.f32 %v1137, %v1433
    %v1436 = vmul.f32 %v1432, %v1303
    %v1437 = vmul.f32 %v1433, %v1305
    %v1438 = vadd.f32 %v1140, %v1436
    %v1439 = vadd.f32 %v1141, %v1437
    %1440 = vset.pattern.permute.xlu0 83
    %1441 = vperm.xlu0 %1440, %v40
    %v1442 = vpop.permute.xlu0 %1441
    %v1444 = vmul.f32 %v1356, %v1442
    %v1445 = vmul.f32 %v1357, %v1442
    %v1446 = vadd.f32 %v1444, 0.5
    %v1447 = vadd.f32 %v1445, 0.5
    %v1448 = vmul.f32 %v1446, 2.0
    %v1449 = vmul.f32 %v1447, 2.0
    %v1450 = vfloor.f32 %v1448
    %v1451 = vfloor.f32 %v1449
    %v1452 = vmax.f32 %v1450, 0.0
    %v1453 = vmax.f32 %v1451, 0.0
    %v1454 = vmin.f32 %v1452, 1.0
    %v1455 = vmin.f32 %v1453, 1.0
    %1456 = vset.pattern.permute.xlu0 84
    %1457 = vperm.xlu0 %1456, %v40
    %v1458 = vpop.permute.xlu0 %1457
    %v1460 = vmul.f32 %v1378, %v1458
    %v1461 = vmul.f32 %v1379, %v1458
    %v1462 = vadd.f32 %v1460, 0.5
    %v1463 = vadd.f32 %v1461, 0.5
    %v1464 = vmul.f32 %v1462, 2.0
    %v1465 = vmul.f32 %v1463, 2.0
    %v1466 = vfloor.f32 %v1464
    %v1467 = vfloor.f32 %v1465
    %v1468 = vmax.f32 %v1466, 0.0
    %v1469 = vmax.f32 %v1467, 0.0
    %v1470 = vmin.f32 %v1468, 1.0
    %v1471 = vmin.f32 %v1469, 1.0
    %v1472 = vmul.f32 %v1454, %v1470
    %v1473 = vmul.f32 %v1455, %v1471
    %1474 = vset.pattern.permute.xlu0 25
    %1475 = vperm.xlu0 %1474, %v934
    %v1476 = vpop.permute.xlu0 %1475
    %v1478 = vmul.f32 %v1454, %v1476
    %v1479 = vmul.f32 %v1455, %v1476
    %1480 = vset.pattern.permute.xlu0 22
    %1481 = vperm.xlu0 %1480, %v854
    %v1482 = vpop.permute.xlu0 %1481
    %v1484 = vadd.f32 %v1482, %v1478
    %v1485 = vadd.f32 %v1482, %v1479
    %1486 = vset.pattern.permute.xlu0 28
    %1487 = vperm.xlu0 %1486, %v861
    %v1488 = vpop.permute.xlu0 %1487
    %v1490 = vmul.f32 %v1470, %v1488
    %v1491 = vmul.f32 %v1471, %v1488
    %v1492 = vadd.f32 %v1484, %v1490
    %v1493 = vadd.f32 %v1485, %v1491
    %1494 = vset.pattern.permute.xlu0 31
    %1495 = vperm.xlu0 %1494, %v938
    %v1496 = vpop.permute.xlu0 %1495
    %v1498 = vmul.f32 %v1472, %v1496
    %v1499 = vmul.f32 %v1473, %v1496
    %v1500 = vadd.f32 %v1492, %v1498
    %v1501 = vadd.f32 %v1493, %v1499
    %v1502 = vmul.f32 %v1432, %v1500
    %v1503 = vmul.f32 %v1433, %v1501
    %v1504 = vadd.f32 %v1206, %v1502
    %v1505 = vadd.f32 %v1207, %v1503
    %1506 = vset.pattern.permute.xlu0 26
    %1507 = vperm.xlu0 %1506, %v934
    %v1508 = vpop.permute.xlu0 %1507
    %v1510 = vmul.f32 %v1454, %v1508
    %v1511 = vmul.f32 %v1455, %v1508
    %1512 = vset.pattern.permute.xlu0 23
    %1513 = vperm.xlu0 %1512, %v854
    %v1514 = vpop.permute.xlu0 %1513
    %v1516 = vadd.f32 %v1514, %v1510
    %v1517 = vadd.f32 %v1514, %v1511
    %1518 = vset.pattern.permute.xlu0 29
    %1519 = vperm.xlu0 %1518, %v861
    %v1520 = vpop.permute.xlu0 %1519
    %v1522 = vmul.f32 %v1470, %v1520
    %v1523 = vmul.f32 %v1471, %v1520
    %v1524 = vadd.f32 %v1516, %v1522
    %v1525 = vadd.f32 %v1517, %v1523
    %1526 = vset.pattern.permute.xlu0 32
    %1527 = vperm.xlu0 %1526, %v938
    %v1528 = vpop.permute.xlu0 %1527
    %v1530 = vmul.f32 %v1472, %v1528
    %v1531 = vmul.f32 %v1473, %v1528
    %v1532 = vadd.f32 %v1524, %v1530
    %v1533 = vadd.f32 %v1525, %v1531
    %v1534 = vmul.f32 %v1432, %v1532
    %v1535 = vmul.f32 %v1433, %v1533
    %v1536 = vadd.f32 %v1238, %v1534
    %v1537 = vadd.f32 %v1239, %v1535
    %1538 = vset.pattern.permute.xlu0 27
    %1539 = vperm.xlu0 %1538, %v934
    %v1540 = vpop.permute.xlu0 %1539
    %v1542 = vmul.f32 %v1454, %v1540
    %v1543 = vmul.f32 %v1455, %v1540
    %1544 = vset.pattern.permute.xlu0 24
    %1545 = vperm.xlu0 %1544, %v854
    %v1546 = vpop.permute.xlu0 %1545
    %v1548 = vadd.f32 %v1546, %v1542
    %v1549 = vadd.f32 %v1546, %v1543
    %1550 = vset.pattern.permute.xlu0 30
    %1551 = vperm.xlu0 %1550, %v861
    %v1552 = vpop.permute.xlu0 %1551
    %v1554 = vmul.f32 %v1470, %v1552
    %v1555 = vmul.f32 %v1471, %v1552
    %v1556 = vadd.f32 %v1548, %v1554
    %v1557 = vadd.f32 %v1549, %v1555
    %1558 = vset.pattern.permute.xlu0 33
    %1559 = vperm.xlu0 %1558, %v938
    %v1560 = vpop.permute.xlu0 %1559
    %v1562 = vmul.f32 %v1472, %v1560
    %v1563 = vmul.f32 %v1473, %v1560
    %v1564 = vadd.f32 %v1556, %v1562
    %v1565 = vadd.f32 %v1557, %v1563
    %v1566 = vmul.f32 %v1432, %v1564
    %v1567 = vmul.f32 %v1433, %v1565
    %v1568 = vadd.f32 %v1270, %v1566
    %v1569 = vadd.f32 %v1271, %v1567
    %1570 = vset.pattern.permute.xlu0 85
    %1571 = vperm.xlu0 %1570, %v40
    %v1572 = vpop.permute.xlu0 %1571
    %v1574 = vmul.f32 %v1572, %v34
    %v1575 = vmul.f32 %v1572, %v35
    %1576 = vset.pattern.permute.xlu0 86
    %1577 = vperm.xlu0 %1576, %v40
    %v1578 = vpop.permute.xlu0 %1577
    %v1580 = vmul.f32 %v1578, %v38
    %v1581 = vmul.f32 %v1578, %v39
    %v1582 = vadd.f32 %v1574, %v1580
    %v1583 = vadd.f32 %v1575, %v1581
    %1584 = vset.pattern.permute.xlu0 87
    %1585 = vperm.xlu0 %1584, %v40
    %v1586 = vpop.permute.xlu0 %1585
    %v1588 = vadd.f32 %v1582, %v1586
    %v1589 = vadd.f32 %v1583, %v1586
    %v1590 = vand.u32 2147483647, %v1588
    %v1591 = vand.u32 2147483647, %v1589
    %vm1592 = vcmp.gt.f32.partialorder %v1590, 1e-08
    %vm1593 = vcmp.gt.f32.partialorder %v1591, 1e-08
    %v1594 = vsel %vm1592, %v1588, 1.0
    %v1595 = vsel %vm1593, %v1589, 1.0
    %1596 = vset.pattern.permute.xlu0 88
    %1597 = vperm.xlu0 %1596, %v40
    %v1598 = vpop.permute.xlu0 %1597
    %v1600 = vrcp.pop %v1594
    %v1601 = vmul.f32 %v1598, %v1600
    %v1602 = vrcp.pop %v1595
    %v1603 = vmul.f32 %v1598, %v1602
    %vm1604 = vcmp.gt.f32.partialorder %v1601, 1e-06
    %vm1605 = vcmp.gt.f32.partialorder %v1603, 1e-06
    %vm1606 = vmand %vm1592, %vm1604
    %vm1607 = vmand %vm1593, %vm1605
    %vm1608 = vcmp.lt.f32.partialorder %v1601, 100.0
    %vm1609 = vcmp.lt.f32.partialorder %v1603, 100.0
    %vm1610 = vmand %vm1606, %vm1608
    %vm1611 = vmand %vm1607, %vm1609
    %v1612 = vmul.f32 %v1601, %v34
    %v1613 = vmul.f32 %v1603, %v35
    %1614 = vset.pattern.permute.xlu0 89
    %1615 = vperm.xlu0 %1614, %v40
    %v1616 = vpop.permute.xlu0 %1615
    %v1618 = vsub.f32 %v1612, %v1616
    %v1619 = vsub.f32 %v1613, %v1616
    %v1620 = vmul.f32 %v1601, %v38
    %v1621 = vmul.f32 %v1603, %v39
    %1622 = vset.pattern.permute.xlu0 90
    %1623 = vperm.xlu0 %1622, %v40
    %v1624 = vpop.permute.xlu0 %1623
    %v1626 = vsub.f32 %v1620, %v1624
    %v1627 = vsub.f32 %v1621, %v1624
    %1628 = vset.pattern.permute.xlu0 91
    %1629 = vperm.xlu0 %1628, %v40
    %v1630 = vpop.permute.xlu0 %1629
    %v1632 = vsub.f32 %v1601, %v1630
    %v1633 = vsub.f32 %v1603, %v1630
    %1634 = vset.pattern.permute.xlu0 92
    %1635 = vperm.xlu0 %1634, %v40
    %v1636 = vpop.permute.xlu0 %1635
    %v1638 = vmul.f32 %v1636, %v1618
    %v1639 = vmul.f32 %v1636, %v1619
    %1640 = vset.pattern.permute.xlu0 93
    %1641 = vperm.xlu0 %1640, %v40
    %v1642 = vpop.permute.xlu0 %1641
    %v1644 = vmul.f32 %v1642, %v1626
    %v1645 = vmul.f32 %v1642, %v1627
    %v1646 = vadd.f32 %v1638, %v1644
    %v1647 = vadd.f32 %v1639, %v1645
    %1648 = vset.pattern.permute.xlu0 94
    %1649 = vperm.xlu0 %1648, %v40
    %v1650 = vpop.permute.xlu0 %1649
    %v1652 = vmul.f32 %v1650, %v1632
    %v1653 = vmul.f32 %v1650, %v1633
    %v1654 = vadd.f32 %v1646, %v1652
    %v1655 = vadd.f32 %v1647, %v1653
    %1656 = vset.pattern.permute.xlu0 95
    %1657 = vperm.xlu0 %1656, %v40
    %v1658 = vpop.permute.xlu0 %1657
    %v1660 = vmul.f32 %v1658, %v1618
    %v1661 = vmul.f32 %v1658, %v1619
    %1662 = vset.pattern.permute.xlu0 96
    %1663 = vperm.xlu0 %1662, %v40
    %v1664 = vpop.permute.xlu0 %1663
    %v1666 = vmul.f32 %v1664, %v1626
    %v1667 = vmul.f32 %v1664, %v1627
    %v1668 = vadd.f32 %v1660, %v1666
    %v1669 = vadd.f32 %v1661, %v1667
    %1670 = vset.pattern.permute.xlu0 97
    %1671 = vperm.xlu0 %1670, %v40
    %v1672 = vpop.permute.xlu0 %1671
    %v1674 = vmul.f32 %v1672, %v1632
    %v1675 = vmul.f32 %v1672, %v1633
    %v1676 = vadd.f32 %v1668, %v1674
    %v1677 = vadd.f32 %v1669, %v1675
    %v1678 = vand.u32 2147483647, %v1654
    %v1679 = vand.u32 2147483647, %v1655
    %1680 = vset.pattern.permute.xlu0 98
    %1681 = vperm.xlu0 %1680, %v40
    %v1682 = vpop.permute.xlu0 %1681
    %v1684 = vsub.f32 %v1682, %v1678
    %v1685 = vsub.f32 %v1682, %v1679
    %v1686 = vand.u32 2147483647, %v1676
    %v1687 = vand.u32 2147483647, %v1677
    %1688 = vset.pattern.permute.xlu0 99
    %1689 = vperm.xlu0 %1688, %v40
    %v1690 = vpop.permute.xlu0 %1689
    %v1692 = vsub.f32 %v1690, %v1686
    %v1693 = vsub.f32 %v1690, %v1687
    %v1694 = vmin.f32 %v1684, %v1692
    %v1695 = vmin.f32 %v1685, %v1693
    %v1696 = vmul.f32 %v1694, 100.0
    %v1697 = vmul.f32 %v1695, 100.0
    %v1698 = vxor.u32 %v1696, 2147483648
    %v1699 = vxor.u32 %v1697, 2147483648
    %v1700 = vmul.f32 %v1698, 1.442695
    %v1701 = vpow.pop %v1700
    %v1702 = vmul.f32 %v1699, 1.442695
    %v1703 = vpow.pop %v1702
    %v1704 = vadd.f32 %v1701, 1.0
    %v1705 = vadd.f32 %v1703, 1.0
    %v1706 = vrcp.pop %v1704
    %v1707 = vmul.f32 1.0, %v1706
    %v1708 = vrcp.pop %v1705
    %v1709 = vmul.f32 1.0, %v1708
    %v1710 = vsel %vm1610, %v1707, 0.0
    %v1711 = vsel %vm1611, %v1709, 0.0
    %v1712 = vsub.f32 1.0, %v1710
    %v1713 = vsub.f32 1.0, %v1711
    %v1714 = vmul.f32 %v1416, %v1712
    %v1715 = vmul.f32 %v1417, %v1713
    %v1716 = vsub.f32 100.0, %v1601
    %v1717 = vsub.f32 100.0, %v1603
    %v1718 = vmul.f32 %v1716, 0.01
    %v1719 = vmul.f32 %v1717, 0.01
    %v1720 = vmax.f32 %v1718, 0.0
    %v1721 = vmax.f32 %v1719, 0.0
    %v1722 = vmin.f32 %v1720, 1.0
    %v1723 = vmin.f32 %v1721, 1.0
    %v1724 = vmul.f32 %v1722, 10.0
    %v1725 = vmul.f32 %v1723, 10.0
    %v1726 = vmul.f32 %v1724, 1.442695
    %v1727 = vpow.pop %v1726
    %v1728 = vmul.f32 %v1725, 1.442695
    %v1729 = vpow.pop %v1728
    %v1730 = vmul.f32 %v1710, %v1727
    %v1731 = vmul.f32 %v1711, %v1729
    %v1732 = vadd.f32 %v1434, %v1730
    %v1733 = vadd.f32 %v1435, %v1731
    %v1734 = vmul.f32 %v1730, %v1601
    %v1735 = vmul.f32 %v1731, %v1603
    %v1736 = vadd.f32 %v1438, %v1734
    %v1737 = vadd.f32 %v1439, %v1735
    %1738 = vset.pattern.permute.xlu0 100
    %1739 = vperm.xlu0 %1738, %v40
    %v1740 = vpop.permute.xlu0 %1739
    %v1742 = vmul.f32 %v1654, %v1740
    %v1743 = vmul.f32 %v1655, %v1740
    %v1744 = vadd.f32 %v1742, 0.5
    %v1745 = vadd.f32 %v1743, 0.5
    %v1746 = vmul.f32 %v1744, 2.0
    %v1747 = vmul.f32 %v1745, 2.0
    %v1748 = vfloor.f32 %v1746
    %v1749 = vfloor.f32 %v1747
    %v1750 = vmax.f32 %v1748, 0.0
    %v1751 = vmax.f32 %v1749, 0.0
    %v1752 = vmin.f32 %v1750, 1.0
    %v1753 = vmin.f32 %v1751, 1.0
    %1754 = vset.pattern.permute.xlu0 101
    %1755 = vperm.xlu0 %1754, %v40
    %v1756 = vpop.permute.xlu0 %1755
    %v1758 = vmul.f32 %v1676, %v1756
    %v1759 = vmul.f32 %v1677, %v1756
    %v1760 = vadd.f32 %v1758, 0.5
    %v1761 = vadd.f32 %v1759, 0.5
    %v1762 = vmul.f32 %v1760, 2.0
    %v1763 = vmul.f32 %v1761, 2.0
    %v1764 = vfloor.f32 %v1762
    %v1765 = vfloor.f32 %v1763
    %v1766 = vmax.f32 %v1764, 0.0
    %v1767 = vmax.f32 %v1765, 0.0
    %v1768 = vmin.f32 %v1766, 1.0
    %v1769 = vmin.f32 %v1767, 1.0
    %v1770 = vmul.f32 %v1752, %v1768
    %v1771 = vmul.f32 %v1753, %v1769
    %1772 = vset.pattern.permute.xlu0 37
    %1773 = vperm.xlu0 %1772, %v934
    %v1774 = vpop.permute.xlu0 %1773
    %v1776 = vmul.f32 %v1752, %v1774
    %v1777 = vmul.f32 %v1753, %v1774
    %1778 = vset.pattern.permute.xlu0 34
    %1779 = vperm.xlu0 %1778, %v854
    %v1780 = vpop.permute.xlu0 %1779
    %v1782 = vadd.f32 %v1780, %v1776
    %v1783 = vadd.f32 %v1780, %v1777
    %1784 = vset.pattern.permute.xlu0 40
    %1785 = vperm.xlu0 %1784, %v861
    %v1786 = vpop.permute.xlu0 %1785
    %v1788 = vmul.f32 %v1768, %v1786
    %v1789 = vmul.f32 %v1769, %v1786
    %v1790 = vadd.f32 %v1782, %v1788
    %v1791 = vadd.f32 %v1783, %v1789
    %1792 = vset.pattern.permute.xlu0 43
    %1793 = vperm.xlu0 %1792, %v938
    %v1794 = vpop.permute.xlu0 %1793
    %v1796 = vmul.f32 %v1770, %v1794
    %v1797 = vmul.f32 %v1771, %v1794
    %v1798 = vadd.f32 %v1790, %v1796
    %v1799 = vadd.f32 %v1791, %v1797
    %v1800 = vmul.f32 %v1730, %v1798
    %v1801 = vmul.f32 %v1731, %v1799
    %v1802 = vadd.f32 %v1504, %v1800
    %v1803 = vadd.f32 %v1505, %v1801
    %1804 = vset.pattern.permute.xlu0 38
    %1805 = vperm.xlu0 %1804, %v934
    %v1806 = vpop.permute.xlu0 %1805
    %v1808 = vmul.f32 %v1752, %v1806
    %v1809 = vmul.f32 %v1753, %v1806
    %1810 = vset.pattern.permute.xlu0 35
    %1811 = vperm.xlu0 %1810, %v854
    %v1812 = vpop.permute.xlu0 %1811
    %v1814 = vadd.f32 %v1812, %v1808
    %v1815 = vadd.f32 %v1812, %v1809
    %1816 = vset.pattern.permute.xlu0 41
    %1817 = vperm.xlu0 %1816, %v861
    %v1818 = vpop.permute.xlu0 %1817
    %v1820 = vmul.f32 %v1768, %v1818
    %v1821 = vmul.f32 %v1769, %v1818
    %v1822 = vadd.f32 %v1814, %v1820
    %v1823 = vadd.f32 %v1815, %v1821
    %1824 = vset.pattern.permute.xlu0 44
    %1825 = vperm.xlu0 %1824, %v938
    %v1826 = vpop.permute.xlu0 %1825
    %v1828 = vmul.f32 %v1770, %v1826
    %v1829 = vmul.f32 %v1771, %v1826
    %v1830 = vadd.f32 %v1822, %v1828
    %v1831 = vadd.f32 %v1823, %v1829
    %v1832 = vmul.f32 %v1730, %v1830
    %v1833 = vmul.f32 %v1731, %v1831
    %v1834 = vadd.f32 %v1536, %v1832
    %v1835 = vadd.f32 %v1537, %v1833
    %1836 = vset.pattern.permute.xlu0 39
    %1837 = vperm.xlu0 %1836, %v934
    %v1838 = vpop.permute.xlu0 %1837
    %v1840 = vmul.f32 %v1752, %v1838
    %v1841 = vmul.f32 %v1753, %v1838
    %1842 = vset.pattern.permute.xlu0 36
    %1843 = vperm.xlu0 %1842, %v854
    %v1844 = vpop.permute.xlu0 %1843
    %v1846 = vadd.f32 %v1844, %v1840
    %v1847 = vadd.f32 %v1844, %v1841
    %1848 = vset.pattern.permute.xlu0 42
    %1849 = vperm.xlu0 %1848, %v861
    %v1850 = vpop.permute.xlu0 %1849
    %v1852 = vmul.f32 %v1768, %v1850
    %v1853 = vmul.f32 %v1769, %v1850
    %v1854 = vadd.f32 %v1846, %v1852
    %v1855 = vadd.f32 %v1847, %v1853
    %1856 = vset.pattern.permute.xlu0 45
    %1857 = vperm.xlu0 %1856, %v938
    %v1858 = vpop.permute.xlu0 %1857
    %v1860 = vmul.f32 %v1770, %v1858
    %v1861 = vmul.f32 %v1771, %v1858
    %v1862 = vadd.f32 %v1854, %v1860
    %v1863 = vadd.f32 %v1855, %v1861
    %v1864 = vmul.f32 %v1730, %v1862
    %v1865 = vmul.f32 %v1731, %v1863
    %v1866 = vadd.f32 %v1568, %v1864
    %v1867 = vadd.f32 %v1569, %v1865
    %v1868 = vrcp.pop %v1732
    %v1869 = vrcp.pop %v1733
    %v1870 = vmul.f32 %v1802, %v1868
    %v1871 = vmul.f32 %v1803, %v1869
    %1872 = vst [vmem:[#allocation5] sm:$0xff] %v1870
    %1873 = vst [vmem:[#allocation5 + $0x8] sm:$0xff] %v1871
    %v1874 = vmul.f32 %v1834, %v1868
    %v1875 = vmul.f32 %v1835, %v1869
    %1876 = vst [vmem:[#allocation5 + $0x10] sm:$0xff] %v1874
    %1877 = vst [vmem:[#allocation5 + $0x18] sm:$0xff] %v1875
    %v1878 = vmul.f32 %v1866, %v1868
    %v1879 = vmul.f32 %v1867, %v1869
    %1880 = vst [vmem:[#allocation5 + $0x20] sm:$0xff] %v1878
    %1881 = vst [vmem:[#allocation5 + $0x28] sm:$0xff] %v1879
    %v1882 = vsub.f32 1.0, %v1714
    %v1883 = vsub.f32 1.0, %v1715
    %1884 = vst [vmem:[#allocation5 + $0x30] sm:$0xff] %v1882
    %1885 = vst [vmem:[#allocation5 + $0x38] sm:$0xff] %v1883
    %v1886 = vmul.f32 %v1736, %v1868
    %v1887 = vmul.f32 %v1737, %v1869
    %1888 = vst [vmem:[#allocation5 + $0x40] sm:$0xff] %v1886
    %1889 = vst [vmem:[#allocation5 + $0x48] sm:$0xff] %v1887
    // Predicated region
    $region10: #{tpu_custom_call.1} parent=1 // pred_check
      _
    $region11: #{tpu_custom_call.1} parent=1 // pred_check_branch
      %1891 = sbr.rel (0) target = $region13
    $region12: #{tpu_custom_call.1} parent=1 // pred_region
      %s1893 = ssub.s32 1280, 1280
      %1894 = vsyncadd [#allocation4], %s1893
      %s1896 = sshll.u32 [#allocation5], 4
      %s1897 = int_to_ptr.vmem [resolvable:$true] %s1896
      %1899 = dma.vmem_to_hbm [thread:$0]  %s1897, 1280, %s1, [#allocation4]
    $region13: #{tpu_custom_call.1} parent=1 // pred_fallthru
      _
    // Predicated region
    $region14: #{tpu_custom_call.1} parent=1 // pred_check
      _
    $region15: #{tpu_custom_call.1} parent=1 // pred_check_branch
      %1901 = sbr.rel (0) target = $region17
    $region16: #{tpu_custom_call.1} parent=1 // pred_region
      %1902 = dma.done [#allocation4], 1280
    $region17: #{tpu_custom_call.1} parent=1 // pred_fallthru
      _
    %1903 = vsyncpa [#allocation3], 1
    %1904 = vsyncpa [#allocation4], 1

</llo_original>
